<compile_context>
chip_gen: v7x
topology: tpu7x:2x2x1
jax: 0.10.0
libtpu: 0.0.40
codegen_flags: <defaults>
</compile_context>

<pallas_src>
import functools

import jax
import jax.numpy as jnp
from jax import lax
from jax.experimental import pallas as pl
from jax.experimental.pallas import tpu as pltpu

HIDDEN = 256          # hidden_sizes = [256, 256]
H = HIDDEN
S = 64                # stateSize == messageSize
LN_EPS = 1e-5         # PyTorch LayerNorm default eps
F_PAD = 32            # padded node-input feature width (20 -> 32, keeps slab 16-row aligned)
OUT_PAD = 128         # padded output width (1 -> 128, lane-dense store)

# ---- packed 256-lane weight slab row offsets (all multiples of 16 for bf16 tiles) ----
_O_IW1 = 0
_O_IW2 = _O_IW1 + F_PAD          # 32
_O_MW1S = _O_IW2 + H             # 288
_O_MW2 = _O_MW1S + S             # 352
_O_UW1 = _O_MW2 + H              # 608  (fused [uW1_m ; uW1_state], 128 rows)
_O_UW2 = _O_UW1 + 2 * S          # 736
_O_OW1 = _O_UW2 + H              # 992
_O_OW2 = _O_OW1 + S              # 1056
_W256_ROWS = _O_OW2 + H          # 1312

# ---- packed 64-lane W3 slab row offsets ----
_O_IW3, _O_MW3, _O_UW3 = 0, H, 2 * H
_W64_ROWS = 3 * H

# ---- packed bias / gamma / beta row indices in the f32 (32,256) vec slab ----
(_V_IB1, _V_IG1, _V_IBE1, _V_IB2, _V_IG2, _V_IBE2, _V_IB3) = range(0, 7)
(_V_MG1, _V_MBE1, _V_MB2, _V_MG2, _V_MBE2, _V_MB3) = range(7, 13)
(_V_UB1, _V_UG1, _V_UBE1, _V_UB2, _V_UG2, _V_UBE2, _V_UB3) = range(13, 20)
(_V_OB1, _V_OG1, _V_OBE1, _V_OB2, _V_OG2, _V_OBE2, _V_OB3) = range(20, 27)
_VEC_ROWS = 32


# ----------------------------------------------------------------------------
# Fused whole-GNN kernel (single grid point; everything resident in VMEM)
# ----------------------------------------------------------------------------
def _gnn_kernel(num_mp_iters,
                x_ref,       # (N*B, F_PAD)  bf16 padded node input
                ct_ref,      # (E*B, H)      f32  iteration-invariant message const
                g_ref,       # (E*B, N*B)    bf16 src-gather operator (0/1)
                a_ref,       # (N*B, E*B)    bf16 dst-sum operator (0/1)
                idg_ref,     # (N*B, 1)      f32  1/in-degree per node row
                w256_ref,    # (_W256_ROWS, H)  bf16 weight slab
                w64_ref,     # (_W64_ROWS, 64)  bf16 W3 slab
                ow3_ref,     # (H, OUT_PAD)  bf16 output-net W3 (lane padded)
                vec_ref,     # (_VEC_ROWS, H) f32 bias/gamma/beta rows
                out_ref):    # (N*B, OUT_PAD) f32
    f32 = jnp.float32
    bf16 = jnp.bfloat16

    def vrow(r, w=H):
        return vec_ref[r:r + 1, 0:w]                 # static slice -> (1, w) f32

    def dot(a, b):
        return jnp.dot(a, b, preferred_element_type=f32)

    def ln_relu(h, g_row, be_row):
        # var = E[x^2] - mu^2 : the two lane reductions are independent
        mu = jnp.mean(h, axis=-1, keepdims=True)
        var = jnp.mean(h * h, axis=-1, keepdims=True) - mu * mu
        hn = (h - mu) * lax.rsqrt(jnp.maximum(var, 0.0) + LN_EPS)
        return jnp.maximum(hn * vrow(g_row) + vrow(be_row), 0.0)

    def mlp_tail(h1, g1, be1, w2, b2, g2, be2, w3, b3):
        # h1 = f32 pre-activation of layer 1 (bias already included by the caller)
        h = ln_relu(h1, g1, be1)
        h = dot(h.astype(bf16), w2) + vrow(b2)
        h = ln_relu(h, g2, be2)
        return dot(h.astype(bf16), w3) + b3

    # --- inputNetwork -> initial node states (N*B, S) ------------------------
    ih1 = dot(x_ref[...], w256_ref[_O_IW1:_O_IW1 + F_PAD, :]) + vrow(_V_IB1)
    node_state = mlp_tail(ih1, _V_IG1, _V_IBE1,
                          w256_ref[_O_IW2:_O_IW2 + H, :], _V_IB2, _V_IG2, _V_IBE2,
                          w64_ref[_O_IW3:_O_IW3 + H, :], vrow(_V_IB3, S))

    # --- message passing: fori_loop keeps weight-tile live ranges per-iteration
    def mp_body(_, node_state):
        G = g_ref[...]
        A = a_ref[...]
        inv_deg = idg_ref[...]

        src_state = dot(G, node_state.astype(bf16))                     # (E*B, S)
        mh1 = dot(src_state.astype(bf16),
                  w256_ref[_O_MW1S:_O_MW1S + S, :]) + ct_ref[...]       # (E*B, H)
        m = jnp.tanh(mlp_tail(mh1, _V_MG1, _V_MBE1,
                              w256_ref[_O_MW2:_O_MW2 + H, :], _V_MB2, _V_MG2, _V_MBE2,
                              w64_ref[_O_MW3:_O_MW3 + H, :], vrow(_V_MB3, S)))
        m_hat = dot(A, m.astype(bf16)) * inv_deg                        # (N*B, S) mean-agg

        upd_in = jnp.concatenate([m_hat, node_state], axis=-1).astype(bf16)  # (N*B, 2S)
        uh1 = dot(upd_in, w256_ref[_O_UW1:_O_UW1 + 2 * S, :]) + vrow(_V_UB1)
        return mlp_tail(uh1, _V_UG1, _V_UBE1,
                        w256_ref[_O_UW2:_O_UW2 + H, :], _V_UB2, _V_UG2, _V_UBE2,
                        w64_ref[_O_UW3:_O_UW3 + H, :], vrow(_V_UB3, S))

    node_state = lax.fori_loop(0, num_mp_iters, mp_body, node_state)

    # --- outputNetwork --------------------------------------------------------
    oh1 = dot(node_state.astype(bf16), w256_ref[_O_OW1:_O_OW1 + S, :]) + vrow(_V_OB1)
    out = jnp.tanh(mlp_tail(oh1, _V_OG1, _V_OBE1,
                            w256_ref[_O_OW2:_O_OW2 + H, :], _V_OB2, _V_OG2, _V_OBE2,
                            ow3_ref[...], vrow(_V_OB3, OUT_PAD)))
    out_ref[...] = out                                                   # lane-dense store


# ----------------------------------------------------------------------------
# Deterministic parameter init (matches PyTorch Linear/LayerNorm defaults)
# ----------------------------------------------------------------------------
def init_linear(key, fan_in, fan_out):
    kw, kb = jax.random.split(key)
    bound = 1.0 / float(fan_in) ** 0.5
    W = jax.random.uniform(kw, (fan_in, fan_out), jnp.float32, -bound, bound)
    b = jax.random.uniform(kb, (fan_out,), jnp.float32, -bound, bound)
    return W, b


def init_network(key, in_size, out_size, hidden=HIDDEN):
    k1, k2, k3 = jax.random.split(key, 3)
    W1, b1 = init_linear(k1, in_size, hidden)
    W2, b2 = init_linear(k2, hidden, hidden)
    W3, b3 = init_linear(k3, hidden, out_size)
    g1, be1 = jnp.ones((hidden,), jnp.float32), jnp.zeros((hidden,), jnp.float32)
    g2, be2 = jnp.ones((hidden,), jnp.float32), jnp.zeros((hidden,), jnp.float32)
    return (W1, b1, g1, be1, W2, b2, g2, be2, W3, b3)


# ----------------------------------------------------------------------------
# One-time preprocessing: pack weights + build graph operators (outside forward)
# ----------------------------------------------------------------------------
def prepare_gnn(params, node_feature, edge_src, edge_dst, edge_feature, batch_size):
    input_p, message_p, update_p, output_p = params
    iW1, ib1, ig1, ibe1, iW2, ib2, ig2, ibe2, iW3, ib3 = input_p
    mW1, mb1, mg1, mbe1, mW2, mb2, mg2, mbe2, mW3, mb3 = message_p
    uW1, ub1, ug1, ube1, uW2, ub2, ug2, ube2, uW3, ub3 = update_p
    oW1, ob1, og1, obe1, oW2, ob2, og2, obe2, oW3, ob3 = output_p

    assert iW1.shape[0] <= F_PAD and uW1.shape[0] == 2 * S and oW1.shape[0] == S

    # message-net first layer split: rows = [state | edge scalar | node input]
    mW1s = mW1[:S]
    mW1e = mW1[S:S + 1]
    mW1i = mW1[S + 1:]

    # --- bf16 256-lane weight slab -------------------------------------------
    w256 = jnp.zeros((_W256_ROWS, H), jnp.float32)
    w256 = w256.at[_O_IW1:_O_IW1 + iW1.shape[0], :].set(iW1)
    w256 = w256.at[_O_IW2:_O_IW2 + H, :].set(iW2)
    w256 = w256.at[_O_MW1S:_O_MW1S + S, :].set(mW1s)
    w256 = w256.at[_O_MW2:_O_MW2 + H, :].set(mW2)
    w256 = w256.at[_O_UW1:_O_UW1 + 2 * S, :].set(uW1)      # fused [m_hat ; state] rows
    w256 = w256.at[_O_UW2:_O_UW2 + H, :].set(uW2)
    w256 = w256.at[_O_OW1:_O_OW1 + S, :].set(oW1)
    w256 = w256.at[_O_OW2:_O_OW2 + H, :].set(oW2)
    w256 = w256.astype(jnp.bfloat16)

    # --- bf16 64-lane W3 slab + padded output W3 ------------------------------
    w64 = jnp.concatenate([iW3, mW3, uW3], axis=0).astype(jnp.bfloat16)       # (768, 64)
    oW3p = (jnp.zeros((H, OUT_PAD), jnp.float32)
            .at[:, :oW3.shape[1]].set(oW3).astype(jnp.bfloat16))              # (256, 128)

    # --- f32 bias / gamma / beta slab -----------------------------------------
    vec = jnp.zeros((_VEC_ROWS, H), jnp.float32)
    for r, v in [(_V_IB1, ib1), (_V_IG1, ig1), (_V_IBE1, ibe1), (_V_IB2, ib2),
                 (_V_IG2, ig2), (_V_IBE2, ibe2),
                 (_V_MG1, mg1), (_V_MBE1, mbe1), (_V_MB2, mb2), (_V_MG2, mg2),
                 (_V_MBE2, mbe2),
                 (_V_UB1, ub1), (_V_UG1, ug1), (_V_UBE1, ube1), (_V_UB2, ub2),
                 (_V_UG2, ug2), (_V_UBE2, ube2),
                 (_V_OB1, ob1), (_V_OG1, og1), (_V_OBE1, obe1), (_V_OB2, ob2),
                 (_V_OG2, og2), (_V_OBE2, obe2)]:
        vec = vec.at[r, :].set(v.astype(jnp.float32))
    for r, v in [(_V_IB3, ib3), (_V_MB3, mb3), (_V_UB3, ub3), (_V_OB3, ob3)]:
        vec = vec.at[r, :v.shape[0]].set(v.astype(jnp.float32))

    # --- graph operators (row layout: node rows n*B+b, edge rows e*B+b) -------
    N = node_feature.shape[0]
    B = batch_size
    src_oh = jax.nn.one_hot(edge_src, N, dtype=jnp.float32)                   # (E, N)
    dst_oh = jax.nn.one_hot(edge_dst, N, dtype=jnp.float32)                   # (E, N)
    deg = jnp.maximum(jnp.sum(dst_oh, axis=0), 1.0)                           # DGL mean (0-deg safe)
    eyeB = jnp.eye(B, dtype=jnp.float32)
    gsrc = jnp.kron(src_oh, eyeB).astype(jnp.bfloat16)                        # (E*B, N*B)
    asum = jnp.kron(dst_oh.T, eyeB).astype(jnp.bfloat16)                      # (N*B, E*B)
    inv_deg = jnp.repeat(1.0 / deg, B)[:, None].astype(jnp.float32)           # (N*B, 1)

    # edge-dependent, state-independent part of the message first layer
    edge_bias = (edge_feature.astype(jnp.float32)[:, None] * mW1e
                 + mb1[None, :]).astype(jnp.float32)                          # (E, H)

    return dict(node_feature=node_feature.astype(jnp.float32),
                edge_src=edge_src.astype(jnp.int32),
                edge_bias=edge_bias, mW1i=mW1i.astype(jnp.float32),
                gsrc=gsrc, asum=asum, inv_deg=inv_deg,
                w256=w256, w64=w64, oW3p=oW3p, vec=vec)


# ----------------------------------------------------------------------------
# Per-step forward: assemble node input + message constant, launch the kernel
# ----------------------------------------------------------------------------
@functools.partial(jax.jit, static_argnames=("num_mp_iters",))
def gnn_forward(prepared, state, num_mp_iters=6):
    if state.ndim == 1:
        state = state[None, :]
    node_feature = prepared["node_feature"]
    N = node_feature.shape[0]
    B = state.shape[0]
    numStateVar = state.shape[1] // 2

    # --- update_states_in_graph: per-node 20-dim input features ---------------
    globalInfo = jnp.concatenate(
        [state[:, 0:5], state[:, numStateVar:numStateVar + 5]], axis=-1)       # (B, 10)
    feat_part = jnp.broadcast_to(node_feature[:, None, :],
                                 (N, B, node_feature.shape[1]))                # (N, B, 6)
    global_part = jnp.broadcast_to(globalInfo[None, :, :], (N, B, 10))
    c16 = jnp.transpose(state[:, 5:5 + N])[:, :, None]
    c17 = jnp.transpose(state[:, 5 + N:5 + 2 * N])[:, :, None]
    c18 = jnp.transpose(state[:, numStateVar + 5:numStateVar + 5 + N])[:, :, None]
    c19 = jnp.transpose(state[:, numStateVar + 5 + N:numStateVar + 5 + 2 * N])[:, :, None]
    node_input = jnp.concatenate(
        [feat_part, global_part, c16, c17, c18, c19], axis=-1).astype(jnp.float32)  # (N,B,20)
    Fin = node_input.shape[-1]

    x = node_input.reshape(N * B, Fin)
    x_pad = (jnp.zeros((N * B, F_PAD), jnp.float32)
             .at[:, :Fin].set(x).astype(jnp.bfloat16))                          # (N*B, F_PAD)

    # iteration-invariant message-net first-layer constant (hoisted out of kernel)
    src_input = node_input[prepared["edge_src"]]                                # (E, B, Fin)
    const_term = (jnp.einsum("ebf,fh->ebh", src_input, prepared["mW1i"],
                             precision=lax.Precision.HIGHEST)
                  + prepared["edge_bias"][:, None, :]).reshape(-1, H)           # (E*B, H)

    inputs = (x_pad, const_term, prepared["gsrc"], prepared["asum"],
              prepared["inv_deg"], prepared["w256"], prepared["w64"],
              prepared["oW3p"], prepared["vec"])

    def full(a):
        return pl.BlockSpec(a.shape, lambda i: (0, 0))

    out = pl.pallas_call(
        functools.partial(_gnn_kernel, num_mp_iters),
        out_shape=jax.ShapeDtypeStruct((N * B, OUT_PAD), jnp.float32),
        grid_spec=pltpu.PrefetchScalarGridSpec(
            num_scalar_prefetch=0,
            grid=(1,),
            in_specs=[full(a) for a in inputs],
            out_specs=pl.BlockSpec((N * B, OUT_PAD), lambda i: (0, 0)),
        ),
        compiler_params=pltpu.CompilerParams(
            dimension_semantics=("arbitrary",)),
    )(*inputs)

    # (N*B, OUT_PAD) -> real output column -> (B, N)  (matches torch transpose+squeeze)
    return out[:, 0].reshape(N, B).T


# ----------------------------------------------------------------------------
# Pure-JAX reference (mirrors the PyTorch module) for a correctness check
# ----------------------------------------------------------------------------
def _mlp_ref(x, p, final_act):
    W1, b1, g1, be1, W2, b2, g2, be2, W3, b3 = p
    hp = jax.lax.Precision.HIGHEST

    def ln_relu(h, g, be):
        mu = h.mean(-1, keepdims=True)
        var = jnp.square(h - mu).mean(-1, keepdims=True)
        return jnp.maximum((h - mu) / jnp.sqrt(var + LN_EPS) * g + be, 0.0)

    h = ln_relu(jnp.dot(x, W1, precision=hp) + b1, g1, be1)
    h = ln_relu(jnp.dot(h, W2, precision=hp) + b2, g2, be2)
    out = jnp.dot(h, W3, precision=hp) + b3
    return jnp.tanh(out) if final_act == "tanh" else out


def gnn_forward_ref(params, node_feature, edge_src, edge_dst, edge_feature,
                    state, num_mp_iters=6):
    input_p, message_p, update_p, output_p = params
    N = node_feature.shape[0]
    if state.ndim == 1:
        state = state[None, :]
    B = state.shape[0]
    numStateVar = state.shape[1] // 2
    globalInfo = jnp.concatenate(
        [state[:, 0:5], state[:, numStateVar:numStateVar + 5]], axis=-1)
    feat_part = jnp.broadcast_to(node_feature[:, None, :],
                                 (N, B, node_feature.shape[1]))
    global_part = jnp.broadcast_to(globalInfo[None, :, :], (N, B, 10))
    c16 = jnp.transpose(state[:, 5:5 + N])[:, :, None]
    c17 = jnp.transpose(state[:, 5 + N:5 + 2 * N])[:, :, None]
    c18 = jnp.transpose(state[:, numStateVar + 5:numStateVar + 5 + N])[:, :, None]
    c19 = jnp.transpose(state[:, numStateVar + 5 + N:numStateVar + 5 + 2 * N])[:, :, None]
    node_input = jnp.concatenate(
        [feat_part, global_part, c16, c17, c18, c19], axis=-1)

    node_state = _mlp_ref(node_input, input_p, "none")
    E = edge_src.shape[0]
    edge_data = jnp.broadcast_to(edge_feature[:, None, None], (E, B, 1))
    src_input = node_input[edge_src]
    deg = jnp.maximum(
        jax.ops.segment_sum(jnp.ones((E,), jnp.float32), edge_dst, num_segments=N), 1.0)
    for _ in range(num_mp_iters):
        src_state = node_state[edge_src]
        msg_in = jnp.concatenate([src_state, edge_data, src_input], axis=-1)
        m = _mlp_ref(msg_in, message_p, "tanh")
        m_hat = jax.ops.segment_sum(m, edge_dst, num_segments=N) / deg[:, None, None]
        node_state = _mlp_ref(jnp.concatenate([m_hat, node_state], axis=-1),
                              update_p, "none")
    out = _mlp_ref(node_state, output_p, "tanh")
    return jnp.transpose(out, (1, 0, 2))[:, :, 0]


if __name__ == "__main__":
    key = jax.random.PRNGKey(0)
    k_in, k_msg, k_upd, k_out, k_state, k_nf, k_ef = jax.random.split(key, 7)

    inputSize, stateSize, messageSize, outputSize = 20, 64, 64, 1
    params = (
        init_network(k_in, inputSize, stateSize),                      # inputNetwork
        init_network(k_msg, stateSize + inputSize + 1, messageSize),   # messageNetwork
        init_network(k_upd, stateSize + messageSize, stateSize),       # updateNetwork
        init_network(k_out, stateSize, outputSize),                    # outputNetwork
    )

    numNodes = 3
    batch = 8
    state_dim = 2 * (5 + 2 * numNodes)   # 22 -> numStateVar=11 -> numNodes=3
    state = jax.random.normal(k_state, (batch, state_dim), jnp.float32)
    node_feature = jax.random.normal(k_nf, (numNodes, 6), jnp.float32)

    # deterministic bidirectional chain graph 0 - 1 - 2
    edge_src = jnp.array([0, 1, 1, 2], jnp.int32)
    edge_dst = jnp.array([1, 0, 2, 1], jnp.int32)
    edge_feature = jax.random.normal(k_ef, (edge_src.shape[0],), jnp.float32)

    prepared = prepare_gnn(params, node_feature, edge_src, edge_dst,
                           edge_feature, batch_size=batch)
    out = gnn_forward(prepared, state, num_mp_iters=6)
    out = jax.block_until_ready(out)
    assert out.shape == (batch, numNodes), out.shape
    assert bool(jnp.all(jnp.isfinite(out)))

    ref = gnn_forward_ref(params, node_feature, edge_src, edge_dst,
                          edge_feature, state, num_mp_iters=6)
    max_err = float(jnp.max(jnp.abs(out - ref)))
    # Tolerance accounts for bf16 MXU operands through ~24 sequential layers.
    assert jnp.allclose(out, ref, atol=3e-2, rtol=3e-2), max_err
    print("KERNEL_OK")
</pallas_src>

<mosaic_0001>
module attributes {stable_mosaic.version = 11 : i64} {
  func.func @_gnn_kernel(%arg0: i32, %arg1: memref<24x32xbf16, #tpu.memory_space<vmem>>, %arg2: memref<32x256xf32, #tpu.memory_space<vmem>>, %arg3: memref<32x24xbf16, #tpu.memory_space<vmem>>, %arg4: memref<24x32xbf16, #tpu.memory_space<vmem>>, %arg5: memref<24x1xf32, #tpu.memory_space<vmem>>, %arg6: memref<1312x256xbf16, #tpu.memory_space<vmem>>, %arg7: memref<768x64xbf16, #tpu.memory_space<vmem>>, %arg8: memref<256x128xbf16, #tpu.memory_space<vmem>>, %arg9: memref<32x256xf32, #tpu.memory_space<vmem>>, %arg10: memref<24x128xf32, #tpu.memory_space<vmem>>) attributes {dimension_semantics = [#tpu.dimension_semantics<arbitrary>], iteration_bounds = array<i64: 1>, scalar_prefetch = 0 : i64, scratch_operands = 0 : i64, tpu.core_type = #tpu.core_type<tc>, window_params = [{pipeline_mode = #tpu.pipeline_mode<synchronous>, transform_indices = @transform_0, window_bounds = array<i64: 24, 32>}, {pipeline_mode = #tpu.pipeline_mode<synchronous>, transform_indices = @transform_1, window_bounds = array<i64: 32, 256>}, {pipeline_mode = #tpu.pipeline_mode<synchronous>, transform_indices = @transform_2, window_bounds = array<i64: 32, 24>}, {pipeline_mode = #tpu.pipeline_mode<synchronous>, transform_indices = @transform_3, window_bounds = array<i64: 24, 32>}, {pipeline_mode = #tpu.pipeline_mode<synchronous>, transform_indices = @transform_4, window_bounds = array<i64: 24, 1>}, {pipeline_mode = #tpu.pipeline_mode<synchronous>, transform_indices = @transform_5, window_bounds = array<i64: 1312, 256>}, {pipeline_mode = #tpu.pipeline_mode<synchronous>, transform_indices = @transform_6, window_bounds = array<i64: 768, 64>}, {pipeline_mode = #tpu.pipeline_mode<synchronous>, transform_indices = @transform_7, window_bounds = array<i64: 256, 128>}, {pipeline_mode = #tpu.pipeline_mode<synchronous>, transform_indices = @transform_8, window_bounds = array<i64: 32, 256>}, {pipeline_mode = #tpu.pipeline_mode<synchronous>, transform_indices = @transform_9, window_bounds = array<i64: 24, 128>}]} {
    %c0 = arith.constant 0 : index
    %c0_0 = arith.constant 0 : index
    %0 = vector.load %arg1[%c0, %c0_0] : memref<24x32xbf16, #tpu.memory_space<vmem>>, vector<24x32xbf16>
    %c0_1 = arith.constant 0 : index
    %c0_2 = arith.constant 0 : index
    %1 = vector.load %arg6[%c0_1, %c0_2] : memref<1312x256xbf16, #tpu.memory_space<vmem>>, vector<32x256xbf16>
    %cst = arith.constant dense<0.000000e+00> : vector<24x256xf32>
    %2 = tpu.matmul %0, %1, %cst {dimension_numbers = #tpu.dot_dimension_numbers<[1], [0], [0], [1], [0, 0, 1, 1], [], []>} : vector<24x32xbf16>, vector<32x256xbf16>, vector<24x256xf32> -> vector<24x256xf32>
    %c0_3 = arith.constant 0 : index
    %c0_4 = arith.constant 0 : index
    %3 = vector.load %arg9[%c0_3, %c0_4] : memref<32x256xf32, #tpu.memory_space<vmem>>, vector<1x256xf32>
    %4 = vector.broadcast %3 : vector<1x256xf32> to vector<24x256xf32>
    %5 = arith.addf %2, %4 : vector<24x256xf32>
    %c32 = arith.constant 32 : index
    %c0_5 = arith.constant 0 : index
    %6 = vector.load %arg6[%c32, %c0_5] : memref<1312x256xbf16, #tpu.memory_space<vmem>>, vector<256x256xbf16>
    %c0_6 = arith.constant 0 : index
    %c0_7 = arith.constant 0 : index
    %7 = vector.load %arg7[%c0_6, %c0_7] : memref<768x64xbf16, #tpu.memory_space<vmem>>, vector<256x64xbf16>
    %c6 = arith.constant 6 : index
    %c0_8 = arith.constant 0 : index
    %8 = vector.load %arg9[%c6, %c0_8] : memref<32x256xf32, #tpu.memory_space<vmem>>, vector<1x64xf32>
    %cst_9 = arith.constant dense<0.000000e+00> : vector<24xf32>
    %9 = vector.multi_reduction <add>, %5, %cst_9 [1] : vector<24x256xf32> to vector<24xf32>
    %10 = vector.shape_cast %9 : vector<24xf32> to vector<24x1xf32>
    %cst_10 = arith.constant 2.560000e+02 : f32
    %11 = vector.broadcast %cst_10 : f32 to vector<24x1xf32>
    %12 = arith.divf %10, %11 : vector<24x1xf32>
    %13 = arith.mulf %5, %5 : vector<24x256xf32>
    %cst_11 = arith.constant dense<0.000000e+00> : vector<24xf32>
    %14 = vector.multi_reduction <add>, %13, %cst_11 [1] : vector<24x256xf32> to vector<24xf32>
    %15 = vector.shape_cast %14 : vector<24xf32> to vector<24x1xf32>
    %cst_12 = arith.constant 2.560000e+02 : f32
    %16 = vector.broadcast %cst_12 : f32 to vector<24x1xf32>
    %17 = arith.divf %15, %16 : vector<24x1xf32>
    %18 = arith.mulf %12, %12 : vector<24x1xf32>
    %19 = arith.subf %17, %18 : vector<24x1xf32>
    %20 = vector.broadcast %12 : vector<24x1xf32> to vector<24x256xf32>
    %21 = arith.subf %5, %20 : vector<24x256xf32>
    %cst_13 = arith.constant 0.000000e+00 : f32
    %22 = vector.broadcast %cst_13 : f32 to vector<24x1xf32>
    %23 = arith.maximumf %19, %22 : vector<24x1xf32>
    %cst_14 = arith.constant 9.99999974E-6 : f32
    %24 = vector.broadcast %cst_14 : f32 to vector<24x1xf32>
    %25 = arith.addf %23, %24 : vector<24x1xf32>
    %26 = math.rsqrt %25 : vector<24x1xf32>
    %27 = vector.broadcast %26 : vector<24x1xf32> to vector<24x256xf32>
    %28 = arith.mulf %21, %27 : vector<24x256xf32>
    %c1 = arith.constant 1 : index
    %c0_15 = arith.constant 0 : index
    %29 = vector.load %arg9[%c1, %c0_15] : memref<32x256xf32, #tpu.memory_space<vmem>>, vector<1x256xf32>
    %30 = vector.broadcast %29 : vector<1x256xf32> to vector<24x256xf32>
    %31 = arith.mulf %28, %30 : vector<24x256xf32>
    %c2 = arith.constant 2 : index
    %c0_16 = arith.constant 0 : index
    %32 = vector.load %arg9[%c2, %c0_16] : memref<32x256xf32, #tpu.memory_space<vmem>>, vector<1x256xf32>
    %33 = vector.broadcast %32 : vector<1x256xf32> to vector<24x256xf32>
    %34 = arith.addf %31, %33 : vector<24x256xf32>
    %cst_17 = arith.constant 0.000000e+00 : f32
    %35 = vector.broadcast %cst_17 : f32 to vector<24x256xf32>
    %36 = arith.maximumf %34, %35 : vector<24x256xf32>
    %37 = arith.truncf %36 : vector<24x256xf32> to vector<24x256xbf16>
    %cst_18 = arith.constant dense<0.000000e+00> : vector<24x256xf32>
    %38 = tpu.matmul %37, %6, %cst_18 {dimension_numbers = #tpu.dot_dimension_numbers<[1], [0], [0], [1], [0, 0, 1, 1], [], []>} : vector<24x256xbf16>, vector<256x256xbf16>, vector<24x256xf32> -> vector<24x256xf32>
    %c3 = arith.constant 3 : index
    %c0_19 = arith.constant 0 : index
    %39 = vector.load %arg9[%c3, %c0_19] : memref<32x256xf32, #tpu.memory_space<vmem>>, vector<1x256xf32>
    %40 = vector.broadcast %39 : vector<1x256xf32> to vector<24x256xf32>
    %41 = arith.addf %38, %40 : vector<24x256xf32>
    %cst_20 = arith.constant dense<0.000000e+00> : vector<24xf32>
    %42 = vector.multi_reduction <add>, %41, %cst_20 [1] : vector<24x256xf32> to vector<24xf32>
    %43 = vector.shape_cast %42 : vector<24xf32> to vector<24x1xf32>
    %cst_21 = arith.constant 2.560000e+02 : f32
    %44 = vector.broadcast %cst_21 : f32 to vector<24x1xf32>
    %45 = arith.divf %43, %44 : vector<24x1xf32>
    %46 = arith.mulf %41, %41 : vector<24x256xf32>
    %cst_22 = arith.constant dense<0.000000e+00> : vector<24xf32>
    %47 = vector.multi_reduction <add>, %46, %cst_22 [1] : vector<24x256xf32> to vector<24xf32>
    %48 = vector.shape_cast %47 : vector<24xf32> to vector<24x1xf32>
    %cst_23 = arith.constant 2.560000e+02 : f32
    %49 = vector.broadcast %cst_23 : f32 to vector<24x1xf32>
    %50 = arith.divf %48, %49 : vector<24x1xf32>
    %51 = arith.mulf %45, %45 : vector<24x1xf32>
    %52 = arith.subf %50, %51 : vector<24x1xf32>
    %53 = vector.broadcast %45 : vector<24x1xf32> to vector<24x256xf32>
    %54 = arith.subf %41, %53 : vector<24x256xf32>
    %cst_24 = arith.constant 0.000000e+00 : f32
    %55 = vector.broadcast %cst_24 : f32 to vector<24x1xf32>
    %56 = arith.maximumf %52, %55 : vector<24x1xf32>
    %cst_25 = arith.constant 9.99999974E-6 : f32
    %57 = vector.broadcast %cst_25 : f32 to vector<24x1xf32>
    %58 = arith.addf %56, %57 : vector<24x1xf32>
    %59 = math.rsqrt %58 : vector<24x1xf32>
    %60 = vector.broadcast %59 : vector<24x1xf32> to vector<24x256xf32>
    %61 = arith.mulf %54, %60 : vector<24x256xf32>
    %c4 = arith.constant 4 : index
    %c0_26 = arith.constant 0 : index
    %62 = vector.load %arg9[%c4, %c0_26] : memref<32x256xf32, #tpu.memory_space<vmem>>, vector<1x256xf32>
    %63 = vector.broadcast %62 : vector<1x256xf32> to vector<24x256xf32>
    %64 = arith.mulf %61, %63 : vector<24x256xf32>
    %c5 = arith.constant 5 : index
    %c0_27 = arith.constant 0 : index
    %65 = vector.load %arg9[%c5, %c0_27] : memref<32x256xf32, #tpu.memory_space<vmem>>, vector<1x256xf32>
    %66 = vector.broadcast %65 : vector<1x256xf32> to vector<24x256xf32>
    %67 = arith.addf %64, %66 : vector<24x256xf32>
    %cst_28 = arith.constant 0.000000e+00 : f32
    %68 = vector.broadcast %cst_28 : f32 to vector<24x256xf32>
    %69 = arith.maximumf %67, %68 : vector<24x256xf32>
    %70 = arith.truncf %69 : vector<24x256xf32> to vector<24x256xbf16>
    %cst_29 = arith.constant dense<0.000000e+00> : vector<24x64xf32>
    %71 = tpu.matmul %70, %7, %cst_29 {dimension_numbers = #tpu.dot_dimension_numbers<[1], [0], [0], [1], [0, 0, 1, 1], [], []>} : vector<24x256xbf16>, vector<256x64xbf16>, vector<24x64xf32> -> vector<24x64xf32>
    %72 = vector.broadcast %8 : vector<1x64xf32> to vector<24x64xf32>
    %73 = arith.addf %71, %72 : vector<24x64xf32>
    %c0_i32 = arith.constant 0 : i32
    %c6_i32 = arith.constant 6 : i32
    %74 = arith.addi %c0_i32, %c6_i32 : i32
    %c1_i32 = arith.constant 1 : i32
    %75 = scf.for %arg11 = %c0_i32 to %74 step %c1_i32 iter_args(%arg12 = %73) -> (vector<24x64xf32>)  : i32 {
      %c0_60 = arith.constant 0 : index
      %c0_61 = arith.constant 0 : index
      %152 = vector.load %arg3[%c0_60, %c0_61] : memref<32x24xbf16, #tpu.memory_space<vmem>>, vector<32x24xbf16>
      %c0_62 = arith.constant 0 : index
      %c0_63 = arith.constant 0 : index
      %153 = vector.load %arg4[%c0_62, %c0_63] : memref<24x32xbf16, #tpu.memory_space<vmem>>, vector<24x32xbf16>
      %c0_64 = arith.constant 0 : index
      %c0_65 = arith.constant 0 : index
      %154 = vector.load %arg5[%c0_64, %c0_65] : memref<24x1xf32, #tpu.memory_space<vmem>>, vector<24x1xf32>
      %155 = arith.truncf %arg12 : vector<24x64xf32> to vector<24x64xbf16>
      %cst_66 = arith.constant dense<0.000000e+00> : vector<32x64xf32>
      %156 = tpu.matmul %152, %155, %cst_66 {dimension_numbers = #tpu.dot_dimension_numbers<[1], [0], [0], [1], [0, 0, 1, 1], [], []>} : vector<32x24xbf16>, vector<24x64xbf16>, vector<32x64xf32> -> vector<32x64xf32>
      %157 = arith.truncf %156 : vector<32x64xf32> to vector<32x64xbf16>
      %c288 = arith.constant 288 : index
      %c0_67 = arith.constant 0 : index
      %158 = vector.load %arg6[%c288, %c0_67] : memref<1312x256xbf16, #tpu.memory_space<vmem>>, vector<64x256xbf16>
      %cst_68 = arith.constant dense<0.000000e+00> : vector<32x256xf32>
      %159 = tpu.matmul %157, %158, %cst_68 {dimension_numbers = #tpu.dot_dimension_numbers<[1], [0], [0], [1], [0, 0, 1, 1], [], []>} : vector<32x64xbf16>, vector<64x256xbf16>, vector<32x256xf32> -> vector<32x256xf32>
      %c0_69 = arith.constant 0 : index
      %c0_70 = arith.constant 0 : index
      %160 = vector.load %arg2[%c0_69, %c0_70] : memref<32x256xf32, #tpu.memory_space<vmem>>, vector<32x256xf32>
      %161 = arith.addf %159, %160 : vector<32x256xf32>
      %c352 = arith.constant 352 : index
      %c0_71 = arith.constant 0 : index
      %162 = vector.load %arg6[%c352, %c0_71] : memref<1312x256xbf16, #tpu.memory_space<vmem>>, vector<256x256xbf16>
      %c256 = arith.constant 256 : index
      %c0_72 = arith.constant 0 : index
      %163 = vector.load %arg7[%c256, %c0_72] : memref<768x64xbf16, #tpu.memory_space<vmem>>, vector<256x64xbf16>
      %c12 = arith.constant 12 : index
      %c0_73 = arith.constant 0 : index
      %164 = vector.load %arg9[%c12, %c0_73] : memref<32x256xf32, #tpu.memory_space<vmem>>, vector<1x64xf32>
      %cst_74 = arith.constant dense<0.000000e+00> : vector<32xf32>
      %165 = vector.multi_reduction <add>, %161, %cst_74 [1] : vector<32x256xf32> to vector<32xf32>
      %166 = vector.shape_cast %165 : vector<32xf32> to vector<32x1xf32>
      %cst_75 = arith.constant 2.560000e+02 : f32
      %167 = vector.broadcast %cst_75 : f32 to vector<32x1xf32>
      %168 = arith.divf %166, %167 : vector<32x1xf32>
      %169 = arith.mulf %161, %161 : vector<32x256xf32>
      %cst_76 = arith.constant dense<0.000000e+00> : vector<32xf32>
      %170 = vector.multi_reduction <add>, %169, %cst_76 [1] : vector<32x256xf32> to vector<32xf32>
      %171 = vector.shape_cast %170 : vector<32xf32> to vector<32x1xf32>
      %cst_77 = arith.constant 2.560000e+02 : f32
      %172 = vector.broadcast %cst_77 : f32 to vector<32x1xf32>
      %173 = arith.divf %171, %172 : vector<32x1xf32>
      %174 = arith.mulf %168, %168 : vector<32x1xf32>
      %175 = arith.subf %173, %174 : vector<32x1xf32>
      %176 = vector.broadcast %168 : vector<32x1xf32> to vector<32x256xf32>
      %177 = arith.subf %161, %176 : vector<32x256xf32>
      %cst_78 = arith.constant 0.000000e+00 : f32
      %178 = vector.broadcast %cst_78 : f32 to vector<32x1xf32>
      %179 = arith.maximumf %175, %178 : vector<32x1xf32>
      %cst_79 = arith.constant 9.99999974E-6 : f32
      %180 = vector.broadcast %cst_79 : f32 to vector<32x1xf32>
      %181 = arith.addf %179, %180 : vector<32x1xf32>
      %182 = math.rsqrt %181 : vector<32x1xf32>
      %183 = vector.broadcast %182 : vector<32x1xf32> to vector<32x256xf32>
      %184 = arith.mulf %177, %183 : vector<32x256xf32>
      %c7 = arith.constant 7 : index
      %c0_80 = arith.constant 0 : index
      %185 = vector.load %arg9[%c7, %c0_80] : memref<32x256xf32, #tpu.memory_space<vmem>>, vector<1x256xf32>
      %186 = vector.broadcast %185 : vector<1x256xf32> to vector<32x256xf32>
      %187 = arith.mulf %184, %186 : vector<32x256xf32>
      %c8 = arith.constant 8 : index
      %c0_81 = arith.constant 0 : index
      %188 = vector.load %arg9[%c8, %c0_81] : memref<32x256xf32, #tpu.memory_space<vmem>>, vector<1x256xf32>
      %189 = vector.broadcast %188 : vector<1x256xf32> to vector<32x256xf32>
      %190 = arith.addf %187, %189 : vector<32x256xf32>
      %cst_82 = arith.constant 0.000000e+00 : f32
      %191 = vector.broadcast %cst_82 : f32 to vector<32x256xf32>
      %192 = arith.maximumf %190, %191 : vector<32x256xf32>
      %193 = arith.truncf %192 : vector<32x256xf32> to vector<32x256xbf16>
      %cst_83 = arith.constant dense<0.000000e+00> : vector<32x256xf32>
      %194 = tpu.matmul %193, %162, %cst_83 {dimension_numbers = #tpu.dot_dimension_numbers<[1], [0], [0], [1], [0, 0, 1, 1], [], []>} : vector<32x256xbf16>, vector<256x256xbf16>, vector<32x256xf32> -> vector<32x256xf32>
      %c9 = arith.constant 9 : index
      %c0_84 = arith.constant 0 : index
      %195 = vector.load %arg9[%c9, %c0_84] : memref<32x256xf32, #tpu.memory_space<vmem>>, vector<1x256xf32>
      %196 = vector.broadcast %195 : vector<1x256xf32> to vector<32x256xf32>
      %197 = arith.addf %194, %196 : vector<32x256xf32>
      %cst_85 = arith.constant dense<0.000000e+00> : vector<32xf32>
      %198 = vector.multi_reduction <add>, %197, %cst_85 [1] : vector<32x256xf32> to vector<32xf32>
      %199 = vector.shape_cast %198 : vector<32xf32> to vector<32x1xf32>
      %cst_86 = arith.constant 2.560000e+02 : f32
      %200 = vector.broadcast %cst_86 : f32 to vector<32x1xf32>
      %201 = arith.divf %199, %200 : vector<32x1xf32>
      %202 = arith.mulf %197, %197 : vector<32x256xf32>
      %cst_87 = arith.constant dense<0.000000e+00> : vector<32xf32>
      %203 = vector.multi_reduction <add>, %202, %cst_87 [1] : vector<32x256xf32> to vector<32xf32>
      %204 = vector.shape_cast %203 : vector<32xf32> to vector<32x1xf32>
      %cst_88 = arith.constant 2.560000e+02 : f32
      %205 = vector.broadcast %cst_88 : f32 to vector<32x1xf32>
      %206 = arith.divf %204, %205 : vector<32x1xf32>
      %207 = arith.mulf %201, %201 : vector<32x1xf32>
      %208 = arith.subf %206, %207 : vector<32x1xf32>
      %209 = vector.broadcast %201 : vector<32x1xf32> to vector<32x256xf32>
      %210 = arith.subf %197, %209 : vector<32x256xf32>
      %cst_89 = arith.constant 0.000000e+00 : f32
      %211 = vector.broadcast %cst_89 : f32 to vector<32x1xf32>
      %212 = arith.maximumf %208, %211 : vector<32x1xf32>
      %cst_90 = arith.constant 9.99999974E-6 : f32
      %213 = vector.broadcast %cst_90 : f32 to vector<32x1xf32>
      %214 = arith.addf %212, %213 : vector<32x1xf32>
      %215 = math.rsqrt %214 : vector<32x1xf32>
      %216 = vector.broadcast %215 : vector<32x1xf32> to vector<32x256xf32>
      %217 = arith.mulf %210, %216 : vector<32x256xf32>
      %c10 = arith.constant 10 : index
      %c0_91 = arith.constant 0 : index
      %218 = vector.load %arg9[%c10, %c0_91] : memref<32x256xf32, #tpu.memory_space<vmem>>, vector<1x256xf32>
      %219 = vector.broadcast %218 : vector<1x256xf32> to vector<32x256xf32>
      %220 = arith.mulf %217, %219 : vector<32x256xf32>
      %c11 = arith.constant 11 : index
      %c0_92 = arith.constant 0 : index
      %221 = vector.load %arg9[%c11, %c0_92] : memref<32x256xf32, #tpu.memory_space<vmem>>, vector<1x256xf32>
      %222 = vector.broadcast %221 : vector<1x256xf32> to vector<32x256xf32>
      %223 = arith.addf %220, %222 : vector<32x256xf32>
      %cst_93 = arith.constant 0.000000e+00 : f32
      %224 = vector.broadcast %cst_93 : f32 to vector<32x256xf32>
      %225 = arith.maximumf %223, %224 : vector<32x256xf32>
      %226 = arith.truncf %225 : vector<32x256xf32> to vector<32x256xbf16>
      %cst_94 = arith.constant dense<0.000000e+00> : vector<32x64xf32>
      %227 = tpu.matmul %226, %163, %cst_94 {dimension_numbers = #tpu.dot_dimension_numbers<[1], [0], [0], [1], [0, 0, 1, 1], [], []>} : vector<32x256xbf16>, vector<256x64xbf16>, vector<32x64xf32> -> vector<32x64xf32>
      %228 = vector.broadcast %164 : vector<1x64xf32> to vector<32x64xf32>
      %229 = arith.addf %227, %228 : vector<32x64xf32>
      %230 = math.tanh %229 : vector<32x64xf32>
      %231 = arith.truncf %230 : vector<32x64xf32> to vector<32x64xbf16>
      %cst_95 = arith.constant dense<0.000000e+00> : vector<24x64xf32>
      %232 = tpu.matmul %153, %231, %cst_95 {dimension_numbers = #tpu.dot_dimension_numbers<[1], [0], [0], [1], [0, 0, 1, 1], [], []>} : vector<24x32xbf16>, vector<32x64xbf16>, vector<24x64xf32> -> vector<24x64xf32>
      %233 = vector.broadcast %154 : vector<24x1xf32> to vector<24x64xf32>
      %234 = arith.mulf %232, %233 : vector<24x64xf32>
      %235 = tpu.concatenate %234, %arg12 in 1 : vector<24x64xf32>, vector<24x64xf32> -> vector<24x128xf32>
      %236 = arith.truncf %235 : vector<24x128xf32> to vector<24x128xbf16>
      %c608 = arith.constant 608 : index
      %c0_96 = arith.constant 0 : index
      %237 = vector.load %arg6[%c608, %c0_96] : memref<1312x256xbf16, #tpu.memory_space<vmem>>, vector<128x256xbf16>
      %cst_97 = arith.constant dense<0.000000e+00> : vector<24x256xf32>
      %238 = tpu.matmul %236, %237, %cst_97 {dimension_numbers = #tpu.dot_dimension_numbers<[1], [0], [0], [1], [0, 0, 1, 1], [], []>} : vector<24x128xbf16>, vector<128x256xbf16>, vector<24x256xf32> -> vector<24x256xf32>
      %c13 = arith.constant 13 : index
      %c0_98 = arith.constant 0 : index
      %239 = vector.load %arg9[%c13, %c0_98] : memref<32x256xf32, #tpu.memory_space<vmem>>, vector<1x256xf32>
      %240 = vector.broadcast %239 : vector<1x256xf32> to vector<24x256xf32>
      %241 = arith.addf %238, %240 : vector<24x256xf32>
      %c736 = arith.constant 736 : index
      %c0_99 = arith.constant 0 : index
      %242 = vector.load %arg6[%c736, %c0_99] : memref<1312x256xbf16, #tpu.memory_space<vmem>>, vector<256x256xbf16>
      %c512 = arith.constant 512 : index
      %c0_100 = arith.constant 0 : index
      %243 = vector.load %arg7[%c512, %c0_100] : memref<768x64xbf16, #tpu.memory_space<vmem>>, vector<256x64xbf16>
      %c19 = arith.constant 19 : index
      %c0_101 = arith.constant 0 : index
      %244 = vector.load %arg9[%c19, %c0_101] : memref<32x256xf32, #tpu.memory_space<vmem>>, vector<1x64xf32>
      %cst_102 = arith.constant dense<0.000000e+00> : vector<24xf32>
      %245 = vector.multi_reduction <add>, %241, %cst_102 [1] : vector<24x256xf32> to vector<24xf32>
      %246 = vector.shape_cast %245 : vector<24xf32> to vector<24x1xf32>
      %cst_103 = arith.constant 2.560000e+02 : f32
      %247 = vector.broadcast %cst_103 : f32 to vector<24x1xf32>
      %248 = arith.divf %246, %247 : vector<24x1xf32>
      %249 = arith.mulf %241, %241 : vector<24x256xf32>
      %cst_104 = arith.constant dense<0.000000e+00> : vector<24xf32>
      %250 = vector.multi_reduction <add>, %249, %cst_104 [1] : vector<24x256xf32> to vector<24xf32>
      %251 = vector.shape_cast %250 : vector<24xf32> to vector<24x1xf32>
      %cst_105 = arith.constant 2.560000e+02 : f32
      %252 = vector.broadcast %cst_105 : f32 to vector<24x1xf32>
      %253 = arith.divf %251, %252 : vector<24x1xf32>
      %254 = arith.mulf %248, %248 : vector<24x1xf32>
      %255 = arith.subf %253, %254 : vector<24x1xf32>
      %256 = vector.broadcast %248 : vector<24x1xf32> to vector<24x256xf32>
      %257 = arith.subf %241, %256 : vector<24x256xf32>
      %cst_106 = arith.constant 0.000000e+00 : f32
      %258 = vector.broadcast %cst_106 : f32 to vector<24x1xf32>
      %259 = arith.maximumf %255, %258 : vector<24x1xf32>
      %cst_107 = arith.constant 9.99999974E-6 : f32
      %260 = vector.broadcast %cst_107 : f32 to vector<24x1xf32>
      %261 = arith.addf %259, %260 : vector<24x1xf32>
      %262 = math.rsqrt %261 : vector<24x1xf32>
      %263 = vector.broadcast %262 : vector<24x1xf32> to vector<24x256xf32>
      %264 = arith.mulf %257, %263 : vector<24x256xf32>
      %c14 = arith.constant 14 : index
      %c0_108 = arith.constant 0 : index
      %265 = vector.load %arg9[%c14, %c0_108] : memref<32x256xf32, #tpu.memory_space<vmem>>, vector<1x256xf32>
      %266 = vector.broadcast %265 : vector<1x256xf32> to vector<24x256xf32>
      %267 = arith.mulf %264, %266 : vector<24x256xf32>
      %c15 = arith.constant 15 : index
      %c0_109 = arith.constant 0 : index
      %268 = vector.load %arg9[%c15, %c0_109] : memref<32x256xf32, #tpu.memory_space<vmem>>, vector<1x256xf32>
      %269 = vector.broadcast %268 : vector<1x256xf32> to vector<24x256xf32>
      %270 = arith.addf %267, %269 : vector<24x256xf32>
      %cst_110 = arith.constant 0.000000e+00 : f32
      %271 = vector.broadcast %cst_110 : f32 to vector<24x256xf32>
      %272 = arith.maximumf %270, %271 : vector<24x256xf32>
      %273 = arith.truncf %272 : vector<24x256xf32> to vector<24x256xbf16>
      %cst_111 = arith.constant dense<0.000000e+00> : vector<24x256xf32>
      %274 = tpu.matmul %273, %242, %cst_111 {dimension_numbers = #tpu.dot_dimension_numbers<[1], [0], [0], [1], [0, 0, 1, 1], [], []>} : vector<24x256xbf16>, vector<256x256xbf16>, vector<24x256xf32> -> vector<24x256xf32>
      %c16 = arith.constant 16 : index
      %c0_112 = arith.constant 0 : index
      %275 = vector.load %arg9[%c16, %c0_112] : memref<32x256xf32, #tpu.memory_space<vmem>>, vector<1x256xf32>
      %276 = vector.broadcast %275 : vector<1x256xf32> to vector<24x256xf32>
      %277 = arith.addf %274, %276 : vector<24x256xf32>
      %cst_113 = arith.constant dense<0.000000e+00> : vector<24xf32>
      %278 = vector.multi_reduction <add>, %277, %cst_113 [1] : vector<24x256xf32> to vector<24xf32>
      %279 = vector.shape_cast %278 : vector<24xf32> to vector<24x1xf32>
      %cst_114 = arith.constant 2.560000e+02 : f32
      %280 = vector.broadcast %cst_114 : f32 to vector<24x1xf32>
      %281 = arith.divf %279, %280 : vector<24x1xf32>
      %282 = arith.mulf %277, %277 : vector<24x256xf32>
      %cst_115 = arith.constant dense<0.000000e+00> : vector<24xf32>
      %283 = vector.multi_reduction <add>, %282, %cst_115 [1] : vector<24x256xf32> to vector<24xf32>
      %284 = vector.shape_cast %283 : vector<24xf32> to vector<24x1xf32>
      %cst_116 = arith.constant 2.560000e+02 : f32
      %285 = vector.broadcast %cst_116 : f32 to vector<24x1xf32>
      %286 = arith.divf %284, %285 : vector<24x1xf32>
      %287 = arith.mulf %281, %281 : vector<24x1xf32>
      %288 = arith.subf %286, %287 : vector<24x1xf32>
      %289 = vector.broadcast %281 : vector<24x1xf32> to vector<24x256xf32>
      %290 = arith.subf %277, %289 : vector<24x256xf32>
      %cst_117 = arith.constant 0.000000e+00 : f32
      %291 = vector.broadcast %cst_117 : f32 to vector<24x1xf32>
      %292 = arith.maximumf %288, %291 : vector<24x1xf32>
      %cst_118 = arith.constant 9.99999974E-6 : f32
      %293 = vector.broadcast %cst_118 : f32 to vector<24x1xf32>
      %294 = arith.addf %292, %293 : vector<24x1xf32>
      %295 = math.rsqrt %294 : vector<24x1xf32>
      %296 = vector.broadcast %295 : vector<24x1xf32> to vector<24x256xf32>
      %297 = arith.mulf %290, %296 : vector<24x256xf32>
      %c17 = arith.constant 17 : index
      %c0_119 = arith.constant 0 : index
      %298 = vector.load %arg9[%c17, %c0_119] : memref<32x256xf32, #tpu.memory_space<vmem>>, vector<1x256xf32>
      %299 = vector.broadcast %298 : vector<1x256xf32> to vector<24x256xf32>
      %300 = arith.mulf %297, %299 : vector<24x256xf32>
      %c18 = arith.constant 18 : index
      %c0_120 = arith.constant 0 : index
      %301 = vector.load %arg9[%c18, %c0_120] : memref<32x256xf32, #tpu.memory_space<vmem>>, vector<1x256xf32>
      %302 = vector.broadcast %301 : vector<1x256xf32> to vector<24x256xf32>
      %303 = arith.addf %300, %302 : vector<24x256xf32>
      %cst_121 = arith.constant 0.000000e+00 : f32
      %304 = vector.broadcast %cst_121 : f32 to vector<24x256xf32>
      %305 = arith.maximumf %303, %304 : vector<24x256xf32>
      %306 = arith.truncf %305 : vector<24x256xf32> to vector<24x256xbf16>
      %cst_122 = arith.constant dense<0.000000e+00> : vector<24x64xf32>
      %307 = tpu.matmul %306, %243, %cst_122 {dimension_numbers = #tpu.dot_dimension_numbers<[1], [0], [0], [1], [0, 0, 1, 1], [], []>} : vector<24x256xbf16>, vector<256x64xbf16>, vector<24x64xf32> -> vector<24x64xf32>
      %308 = vector.broadcast %244 : vector<1x64xf32> to vector<24x64xf32>
      %309 = arith.addf %307, %308 : vector<24x64xf32>
      scf.yield %309 : vector<24x64xf32>
    }
    %76 = arith.truncf %75 : vector<24x64xf32> to vector<24x64xbf16>
    %c992 = arith.constant 992 : index
    %c0_30 = arith.constant 0 : index
    %77 = vector.load %arg6[%c992, %c0_30] : memref<1312x256xbf16, #tpu.memory_space<vmem>>, vector<64x256xbf16>
    %cst_31 = arith.constant dense<0.000000e+00> : vector<24x256xf32>
    %78 = tpu.matmul %76, %77, %cst_31 {dimension_numbers = #tpu.dot_dimension_numbers<[1], [0], [0], [1], [0, 0, 1, 1], [], []>} : vector<24x64xbf16>, vector<64x256xbf16>, vector<24x256xf32> -> vector<24x256xf32>
    %c20 = arith.constant 20 : index
    %c0_32 = arith.constant 0 : index
    %79 = vector.load %arg9[%c20, %c0_32] : memref<32x256xf32, #tpu.memory_space<vmem>>, vector<1x256xf32>
    %80 = vector.broadcast %79 : vector<1x256xf32> to vector<24x256xf32>
    %81 = arith.addf %78, %80 : vector<24x256xf32>
    %c1056 = arith.constant 1056 : index
    %c0_33 = arith.constant 0 : index
    %82 = vector.load %arg6[%c1056, %c0_33] : memref<1312x256xbf16, #tpu.memory_space<vmem>>, vector<256x256xbf16>
    %c0_34 = arith.constant 0 : index
    %c0_35 = arith.constant 0 : index
    %83 = vector.load %arg8[%c0_34, %c0_35] : memref<256x128xbf16, #tpu.memory_space<vmem>>, vector<256x128xbf16>
    %c26 = arith.constant 26 : index
    %c0_36 = arith.constant 0 : index
    %84 = vector.load %arg9[%c26, %c0_36] : memref<32x256xf32, #tpu.memory_space<vmem>>, vector<1x128xf32>
    %cst_37 = arith.constant dense<0.000000e+00> : vector<24xf32>
    %85 = vector.multi_reduction <add>, %81, %cst_37 [1] : vector<24x256xf32> to vector<24xf32>
    %86 = vector.shape_cast %85 : vector<24xf32> to vector<24x1xf32>
    %cst_38 = arith.constant 2.560000e+02 : f32
    %87 = vector.broadcast %cst_38 : f32 to vector<24x1xf32>
    %88 = arith.divf %86, %87 : vector<24x1xf32>
    %89 = arith.mulf %81, %81 : vector<24x256xf32>
    %cst_39 = arith.constant dense<0.000000e+00> : vector<24xf32>
    %90 = vector.multi_reduction <add>, %89, %cst_39 [1] : vector<24x256xf32> to vector<24xf32>
    %91 = vector.shape_cast %90 : vector<24xf32> to vector<24x1xf32>
    %cst_40 = arith.constant 2.560000e+02 : f32
    %92 = vector.broadcast %cst_40 : f32 to vector<24x1xf32>
    %93 = arith.divf %91, %92 : vector<24x1xf32>
    %94 = arith.mulf %88, %88 : vector<24x1xf32>
    %95 = arith.subf %93, %94 : vector<24x1xf32>
    %96 = vector.broadcast %88 : vector<24x1xf32> to vector<24x256xf32>
    %97 = arith.subf %81, %96 : vector<24x256xf32>
    %cst_41 = arith.constant 0.000000e+00 : f32
    %98 = vector.broadcast %cst_41 : f32 to vector<24x1xf32>
    %99 = arith.maximumf %95, %98 : vector<24x1xf32>
    %cst_42 = arith.constant 9.99999974E-6 : f32
    %100 = vector.broadcast %cst_42 : f32 to vector<24x1xf32>
    %101 = arith.addf %99, %100 : vector<24x1xf32>
    %102 = math.rsqrt %101 : vector<24x1xf32>
    %103 = vector.broadcast %102 : vector<24x1xf32> to vector<24x256xf32>
    %104 = arith.mulf %97, %103 : vector<24x256xf32>
    %c21 = arith.constant 21 : index
    %c0_43 = arith.constant 0 : index
    %105 = vector.load %arg9[%c21, %c0_43] : memref<32x256xf32, #tpu.memory_space<vmem>>, vector<1x256xf32>
    %106 = vector.broadcast %105 : vector<1x256xf32> to vector<24x256xf32>
    %107 = arith.mulf %104, %106 : vector<24x256xf32>
    %c22 = arith.constant 22 : index
    %c0_44 = arith.constant 0 : index
    %108 = vector.load %arg9[%c22, %c0_44] : memref<32x256xf32, #tpu.memory_space<vmem>>, vector<1x256xf32>
    %109 = vector.broadcast %108 : vector<1x256xf32> to vector<24x256xf32>
    %110 = arith.addf %107, %109 : vector<24x256xf32>
    %cst_45 = arith.constant 0.000000e+00 : f32
    %111 = vector.broadcast %cst_45 : f32 to vector<24x256xf32>
    %112 = arith.maximumf %110, %111 : vector<24x256xf32>
    %113 = arith.truncf %112 : vector<24x256xf32> to vector<24x256xbf16>
    %cst_46 = arith.constant dense<0.000000e+00> : vector<24x256xf32>
    %114 = tpu.matmul %113, %82, %cst_46 {dimension_numbers = #tpu.dot_dimension_numbers<[1], [0], [0], [1], [0, 0, 1, 1], [], []>} : vector<24x256xbf16>, vector<256x256xbf16>, vector<24x256xf32> -> vector<24x256xf32>
    %c23 = arith.constant 23 : index
    %c0_47 = arith.constant 0 : index
    %115 = vector.load %arg9[%c23, %c0_47] : memref<32x256xf32, #tpu.memory_space<vmem>>, vector<1x256xf32>
    %116 = vector.broadcast %115 : vector<1x256xf32> to vector<24x256xf32>
    %117 = arith.addf %114, %116 : vector<24x256xf32>
    %cst_48 = arith.constant dense<0.000000e+00> : vector<24xf32>
    %118 = vector.multi_reduction <add>, %117, %cst_48 [1] : vector<24x256xf32> to vector<24xf32>
    %119 = vector.shape_cast %118 : vector<24xf32> to vector<24x1xf32>
    %cst_49 = arith.constant 2.560000e+02 : f32
    %120 = vector.broadcast %cst_49 : f32 to vector<24x1xf32>
    %121 = arith.divf %119, %120 : vector<24x1xf32>
    %122 = arith.mulf %117, %117 : vector<24x256xf32>
    %cst_50 = arith.constant dense<0.000000e+00> : vector<24xf32>
    %123 = vector.multi_reduction <add>, %122, %cst_50 [1] : vector<24x256xf32> to vector<24xf32>
    %124 = vector.shape_cast %123 : vector<24xf32> to vector<24x1xf32>
    %cst_51 = arith.constant 2.560000e+02 : f32
    %125 = vector.broadcast %cst_51 : f32 to vector<24x1xf32>
    %126 = arith.divf %124, %125 : vector<24x1xf32>
    %127 = arith.mulf %121, %121 : vector<24x1xf32>
    %128 = arith.subf %126, %127 : vector<24x1xf32>
    %129 = vector.broadcast %121 : vector<24x1xf32> to vector<24x256xf32>
    %130 = arith.subf %117, %129 : vector<24x256xf32>
    %cst_52 = arith.constant 0.000000e+00 : f32
    %131 = vector.broadcast %cst_52 : f32 to vector<24x1xf32>
    %132 = arith.maximumf %128, %131 : vector<24x1xf32>
    %cst_53 = arith.constant 9.99999974E-6 : f32
    %133 = vector.broadcast %cst_53 : f32 to vector<24x1xf32>
    %134 = arith.addf %132, %133 : vector<24x1xf32>
    %135 = math.rsqrt %134 : vector<24x1xf32>
    %136 = vector.broadcast %135 : vector<24x1xf32> to vector<24x256xf32>
    %137 = arith.mulf %130, %136 : vector<24x256xf32>
    %c24 = arith.constant 24 : index
    %c0_54 = arith.constant 0 : index
    %138 = vector.load %arg9[%c24, %c0_54] : memref<32x256xf32, #tpu.memory_space<vmem>>, vector<1x256xf32>
    %139 = vector.broadcast %138 : vector<1x256xf32> to vector<24x256xf32>
    %140 = arith.mulf %137, %139 : vector<24x256xf32>
    %c25 = arith.constant 25 : index
    %c0_55 = arith.constant 0 : index
    %141 = vector.load %arg9[%c25, %c0_55] : memref<32x256xf32, #tpu.memory_space<vmem>>, vector<1x256xf32>
    %142 = vector.broadcast %141 : vector<1x256xf32> to vector<24x256xf32>
    %143 = arith.addf %140, %142 : vector<24x256xf32>
    %cst_56 = arith.constant 0.000000e+00 : f32
    %144 = vector.broadcast %cst_56 : f32 to vector<24x256xf32>
    %145 = arith.maximumf %143, %144 : vector<24x256xf32>
    %146 = arith.truncf %145 : vector<24x256xf32> to vector<24x256xbf16>
    %cst_57 = arith.constant dense<0.000000e+00> : vector<24x128xf32>
    %147 = tpu.matmul %146, %83, %cst_57 {dimension_numbers = #tpu.dot_dimension_numbers<[1], [0], [0], [1], [0, 0, 1, 1], [], []>} : vector<24x256xbf16>, vector<256x128xbf16>, vector<24x128xf32> -> vector<24x128xf32>
    %148 = vector.broadcast %84 : vector<1x128xf32> to vector<24x128xf32>
    %149 = arith.addf %147, %148 : vector<24x128xf32>
    %150 = math.tanh %149 : vector<24x128xf32>
    %c0_58 = arith.constant 0 : index
    %c0_59 = arith.constant 0 : index
    %151 = vector.load %arg10[%c0_58, %c0_59] : memref<24x128xf32, #tpu.memory_space<vmem>>, vector<24x128xf32>
    tpu.vector_store %arg10[%c0_58, %c0_59], %150 {strides = array<i32>} : memref<24x128xf32, #tpu.memory_space<vmem>>, vector<24x128xf32>,
    return
  }
  func.func @transform_0(%arg0: i32) -> (i32, i32) {
    %c0_i32 = arith.constant 0 : i32
    %c0_i32_0 = arith.constant 0 : i32
    %c0_i32_1 = arith.constant 0 : i32
    return %c0_i32, %c0_i32_0 : i32, i32
  }
  func.func @transform_1(%arg0: i32) -> (i32, i32) {
    %c0_i32 = arith.constant 0 : i32
    %c0_i32_0 = arith.constant 0 : i32
    %c0_i32_1 = arith.constant 0 : i32
    return %c0_i32, %c0_i32_0 : i32, i32
  }
  func.func @transform_2(%arg0: i32) -> (i32, i32) {
    %c0_i32 = arith.constant 0 : i32
    %c0_i32_0 = arith.constant 0 : i32
    %c0_i32_1 = arith.constant 0 : i32
    return %c0_i32, %c0_i32_0 : i32, i32
  }
  func.func @transform_3(%arg0: i32) -> (i32, i32) {
    %c0_i32 = arith.constant 0 : i32
    %c0_i32_0 = arith.constant 0 : i32
    %c0_i32_1 = arith.constant 0 : i32
    return %c0_i32, %c0_i32_0 : i32, i32
  }
  func.func @transform_4(%arg0: i32) -> (i32, i32) {
    %c0_i32 = arith.constant 0 : i32
    %c0_i32_0 = arith.constant 0 : i32
    %c0_i32_1 = arith.constant 0 : i32
    return %c0_i32, %c0_i32_0 : i32, i32
  }
  func.func @transform_5(%arg0: i32) -> (i32, i32) {
    %c0_i32 = arith.constant 0 : i32
    %c0_i32_0 = arith.constant 0 : i32
    %c0_i32_1 = arith.constant 0 : i32
    return %c0_i32, %c0_i32_0 : i32, i32
  }
  func.func @transform_6(%arg0: i32) -> (i32, i32) {
    %c0_i32 = arith.constant 0 : i32
    %c0_i32_0 = arith.constant 0 : i32
    %c0_i32_1 = arith.constant 0 : i32
    return %c0_i32, %c0_i32_0 : i32, i32
  }
  func.func @transform_7(%arg0: i32) -> (i32, i32) {
    %c0_i32 = arith.constant 0 : i32
    %c0_i32_0 = arith.constant 0 : i32
    %c0_i32_1 = arith.constant 0 : i32
    return %c0_i32, %c0_i32_0 : i32, i32
  }
  func.func @transform_8(%arg0: i32) -> (i32, i32) {
    %c0_i32 = arith.constant 0 : i32
    %c0_i32_0 = arith.constant 0 : i32
    %c0_i32_1 = arith.constant 0 : i32
    return %c0_i32, %c0_i32_0 : i32, i32
  }
  func.func @transform_9(%arg0: i32) -> (i32, i32) {
    %c0_i32 = arith.constant 0 : i32
    %c0_i32_0 = arith.constant 0 : i32
    %c0_i32_1 = arith.constant 0 : i32
    return %c0_i32, %c0_i32_0 : i32, i32
  }
}

</mosaic_0001>

<llo_original>
// kernel: squeeze.1
$region0: #{squeeze.1}
  %s0 = inlined_call_operand.vmem [shape: f32[24], index: 0, kind: input, shape index: {}]
  %s1 = inlined_call_operand.hbm [shape: f32[3,8], index: 1, kind: output, shape index: {}]
  $region1: #{squeeze.1} parent=0
    #allocation0 [shape = 'u8[2048]{0}', space=vmem, size = 0x800, scoped, tag = 'operand span for operand 1']
    #allocation1 [shape = 's32[1]{0}', space=sflag, size = 0x4, scoped, tag = 'scoped memory for squeeze.1']
    #allocation2 [shape = 'u8[4096]{0}', space=vmem, size = 0x1000, scoped, tag = 'scoped mem for output reshape']
    #allocation3 [shape = 'u8[4096]{0}', space=vmem, size = 0x1000, scoped, tag = 'scoped mem for input reshape']
    %2 = vsyncpa [#allocation1], 0
    %s4 = sshllo.u32 0, 1
    %v5 = vld [vmem:[%s0] sm:%s4]
    %6 = vst [vmem:[#allocation3] sm:%s4] %v5
    %v7 = vld [vmem:[#allocation3] sm:$0x1]
    %vm8 = vcmask 64512
    %9 = vst.msk [vmem:[#allocation2] sm:$0x1] %vm8, %v7
    %v10 = vld [vmem:[#allocation3] sm:$0x1]
    %11 = vrot.lane.b32.xlu0 %v10, 120
    %v12 = vpop.permute.xlu0 %11
    %vm13 = vcmask 64512
    %s14 = scalar_lea.vmem [#allocation2], 1
    %15 = vst.msk [vmem:[%s14] sm:$0x1] %vm13, %v12
    %v16 = vld [vmem:[#allocation3] sm:$0x1]
    %17 = vrot.lane.b32.xlu0 %v16, 112
    %v18 = vpop.permute.xlu0 %17
    %vm19 = vcmask 64512
    %s20 = scalar_lea.vmem [#allocation2], 2
    %21 = vst.msk [vmem:[%s20] sm:$0x1] %vm19, %v18
    %s23 = sshllo.u32 0, 4
    %v25 = vld [vmem:[#allocation2] sm:%s23]
    %s26 = sshllo.u32 0, 4
    %27 = vst [vmem:[#allocation0] sm:%s26] %v25
    %s29 = ssub.s32 64, 64
    %30 = vsyncadd [#allocation1], %s29
    %s32 = sshll.u32 [#allocation0], 4
    %s33 = int_to_ptr.vmem [resolvable:$true] %s32
    %35 = dma.vmem_to_hbm [thread:$0]  %s33, 64, %s1, [#allocation1]
    %36 = dma.done [#allocation1], 64
    %37 = vsyncpa [#allocation1], 1

// kernel: gnn_forward.1
$region0: #{gnn_forward.1}
  #allocation0 [shape = 'u32[]', space=smem, size = 0x4, offset = 0x4, fixed_abs, tag = 'smem constant byte address 0x4 - core index']
  #allocation1 [shape = 'u32[144,128]{1,0:T(1,128)}', space=vmem, size = 0x12000, scoped, tag = 'internal scratch']
  %s0 = inlined_call_operand.vmem [shape: bf16[24,32], index: 0, kind: input, shape index: {}]
  %s1 = inlined_call_operand.vmem [shape: f32[32,256], index: 1, kind: input, shape index: {}]
  %s2 = inlined_call_operand.vmem [shape: bf16[32,24], index: 2, kind: input, shape index: {}]
  %s3 = inlined_call_operand.vmem [shape: bf16[24,32], index: 3, kind: input, shape index: {}]
  %s4 = inlined_call_operand.vmem [shape: f32[24,1], index: 4, kind: input, shape index: {}]
  %s5 = inlined_call_operand.vmem [shape: bf16[1312,256], index: 5, kind: input, shape index: {}]
  %s6 = inlined_call_operand.vmem [shape: bf16[768,64], index: 6, kind: input, shape index: {}]
  %s7 = inlined_call_operand.vmem [shape: bf16[256,128], index: 7, kind: input, shape index: {}]
  %s8 = inlined_call_operand.vmem [shape: f32[32,256], index: 8, kind: input, shape index: {}]
  %s9 = inlined_call_operand.vmem [shape: f32[24,128], index: 9, kind: output, shape index: {}]
  %s10 = sld [smem:[#allocation0]]
  $region53: #{gnn_forward.1} parent=0
    _
  %s12 = ssub.s32 1, %s10
  %s13 = scalar_select 0, %s12, %s10
  // Predicated region
  $region2: #{gnn_forward.1} parent=0 // pred_check
    _
  $region3: #{gnn_forward.1} parent=0 // pred_check_branch
    %15 = sbr.rel (0) target = $region5
  $region4: #{gnn_forward.1} parent=0 // pred_region
    _
  $region5: #{gnn_forward.1} parent=0 // pred_fallthru
    _
  // Predicated region
  $region6: #{gnn_forward.1} parent=0 // pred_check
    _
  $region7: #{gnn_forward.1} parent=0 // pred_check_branch
    %17 = sbr.rel (0) target = $region9
  $region8: #{gnn_forward.1} parent=0 // pred_region
    _
  $region9: #{gnn_forward.1} parent=0 // pred_fallthru
    _
  // Predicated region
  $region10: #{gnn_forward.1} parent=0 // pred_check
    _
  $region11: #{gnn_forward.1} parent=0 // pred_check_branch
    %19 = sbr.rel (0) target = $region13
  $region12: #{gnn_forward.1} parent=0 // pred_region
    _
  $region13: #{gnn_forward.1} parent=0 // pred_fallthru
    _
  // Predicated region
  $region14: #{gnn_forward.1} parent=0 // pred_check
    _
  $region15: #{gnn_forward.1} parent=0 // pred_check_branch
    %21 = sbr.rel (0) target = $region17
  $region16: #{gnn_forward.1} parent=0 // pred_region
    _
  $region17: #{gnn_forward.1} parent=0 // pred_fallthru
    _
  // Predicated region
  $region18: #{gnn_forward.1} parent=0 // pred_check
    _
  $region19: #{gnn_forward.1} parent=0 // pred_check_branch
    %23 = sbr.rel (0) target = $region21
  $region20: #{gnn_forward.1} parent=0 // pred_region
    _
  $region21: #{gnn_forward.1} parent=0 // pred_fallthru
    _
  // Predicated region
  $region22: #{gnn_forward.1} parent=0 // pred_check
    _
  $region23: #{gnn_forward.1} parent=0 // pred_check_branch
    %25 = sbr.rel (0) target = $region25
  $region24: #{gnn_forward.1} parent=0 // pred_region
    _
  $region25: #{gnn_forward.1} parent=0 // pred_fallthru
    _
  // Predicated region
  $region26: #{gnn_forward.1} parent=0 // pred_check
    _
  $region27: #{gnn_forward.1} parent=0 // pred_check_branch
    %27 = sbr.rel (0) target = $region29
  $region28: #{gnn_forward.1} parent=0 // pred_region
    _
  $region29: #{gnn_forward.1} parent=0 // pred_fallthru
    _
  // Predicated region
  $region30: #{gnn_forward.1} parent=0 // pred_check
    _
  $region31: #{gnn_forward.1} parent=0 // pred_check_branch
    %29 = sbr.rel (0) target = $region33
  $region32: #{gnn_forward.1} parent=0 // pred_region
    _
  $region33: #{gnn_forward.1} parent=0 // pred_fallthru
    _
  // Predicated region
  $region34: #{gnn_forward.1} parent=0 // pred_check
    _
  $region35: #{gnn_forward.1} parent=0 // pred_check_branch
    %31 = sbr.rel (0) target = $region37
  $region36: #{gnn_forward.1} parent=0 // pred_region
    _
  $region37: #{gnn_forward.1} parent=0 // pred_fallthru
    _
  %v33 = vld [vmem:[%s0] sm:$0xf]
  %v34 = vld [vmem:[%s0 + $0x4] sm:$0xf]
  %v35 = vld [vmem:[%s0 + $0x8] sm:$0xf]
  %v36 = vld [vmem:[%s5] sm:$0xff]
  %v37 = vld [vmem:[%s5 + $0x8] sm:$0xff]
  %v38 = vld [vmem:[%s5 + $0x10] sm:$0xff]
  %v39 = vld [vmem:[%s5 + $0x18] sm:$0xff]
  %v40 = vld [vmem:[%s8] ss:$8 sm:$0x3]
  %v42 = vlaneseq
  %v43 = vshrl.u32 %v42, 7
  %v44 = vsub.s32 0, %v43
  %v45 = vrot.slane %v40, %v44
  %v46 = vlaneseq
  %v47 = vshrl.u32 %v46, 7
  %v48 = vsub.s32 1, %v47
  %v49 = vrot.slane %v40, %v48
  %v55 = vunpack.c.l.b16 %v33
  %v56 = vunpack.c.l.b16 %v34
  %v57 = vunpack.c.l.b16 %v35
  %v58 = vpack.c.b16 %v56, %v55
  %v59 = vpack.c.b16 %v57, %v57
  %v64 = vunpack.c.l.b16 %v36
  %v65 = vunpack.c.h.b16 %v36
  %v66 = vunpack.c.l.b16 %v37
  %v67 = vunpack.c.h.b16 %v37
  %v68 = vunpack.c.l.b16 %v38
  %v69 = vunpack.c.h.b16 %v38
  %v70 = vunpack.c.l.b16 %v39
  %v71 = vunpack.c.h.b16 %v39
  %v72 = vpack.c.b16 %v66, %v64
  %v73 = vpack.c.b16 %v67, %v65
  %v74 = vpack.c.b16 %v70, %v68
  %v75 = vpack.c.b16 %v71, %v69
  %vm80 = vcmask 261120
  %v82 = vsel %vm80, %v58, 0
  %v85 = vsel %vm80, %v59, 0
  %87 = vmatprep.subr.bf16.mxu0 %v73
  %88 = vmatpush1.bf16.msra.mxu0 %v72
  %89 = vmatprep.subr.bf16.mxu0 %v75
  %90 = vmatpush1.bf16.msra.mxu0 %v74
  %91 = vmatprep.subr.bf16.mxu0 0
  %92 = vmatpush1.bf16.msra.mxu0 0
  %93 = vmatprep.subr.bf16.mxu0 0
  %94 = vmatpush1.bf16.msra.mxu0 0
  %95 = vmatprep.subr.bf16.mxu0 0
  %96 = vmatpush1.bf16.msra.mxu0 0
  %97 = vmatprep.subr.bf16.mxu0 0
  %98 = vmatpush1.bf16.msra.mxu0 0
  %99 = vmatprep.subr.bf16.mxu0 0
  %100 = vmatpush1.bf16.msra.mxu0 0
  %101 = vmatprep.subr.bf16.mxu0 0
  %102 = vmatpush1.bf16.msra.mxu0 0
  %103 = vmatprep.subr.bf16.mxu0 0
  %104 = vmatpush1.bf16.msra.mxu0 0
  %105 = vmatprep.subr.bf16.mxu0 0
  %106 = vmatpush1.bf16.msra.mxu0 0
  %107 = vmatprep.subr.bf16.mxu0 0
  %108 = vmatpush1.bf16.msra.mxu0 0
  %109 = vmatprep.subr.bf16.mxu0 0
  %110 = vmatpush1.bf16.msra.mxu0 0
  %111 = vmatprep.subr.bf16.mxu0 0
  %112 = vmatpush1.bf16.msra.mxu0 0
  %113 = vmatprep.subr.bf16.mxu0 0
  %114 = vmatpush1.bf16.msra.mxu0 0
  %115 = vmatprep.subr.bf16.mxu0 0
  %116 = vmatpush1.bf16.msra.mxu0 0
  %117 = vmatprep.subr.bf16.mxu0 0
  %118 = vmatpush1.bf16.msra.mxu0 0
  %119 = vmatprep.mubr.bf16.mxu0 0
  %120 = vmatmul.mubr.bf16.gmra.mrb[0].mxu0 %v82
  %v121 = vpop.f32.mrb[0].mxu0
  %v122 = vadd.f32 %v45, %v121
  %v123 = vpop.f32.mrb[0].mxu0
  %v124 = vadd.f32 %v49, %v123
  %v125 = vpop.f32.mrb[0].mxu0
  %v126 = vadd.f32 %v45, %v125
  %v127 = vpop.f32.mrb[0].mxu0
  %v128 = vadd.f32 %v49, %v127
  %129 = vmatprep.mubr.bf16.mxu0 0
  %130 = vmatmul.mubr.bf16.gmra.mrb[0].mxu0 %v85
  %v131 = vpop.f32.mrb[0].mxu0
  %v132 = vadd.f32 %v45, %v131
  %v133 = vpop.f32.mrb[0].mxu0
  %v134 = vadd.f32 %v49, %v133
  %v135 = vpop.f32.mrb[0].mxu0
  %v136 = vpop.f32.mrb[0].mxu0
  %137 = vdwg.mxu0
  %v138 = vld [vmem:[%s5 + $0x20] sm:$0xff]
  %v139 = vld [vmem:[%s5 + $0x28] sm:$0xff]
  %v140 = vld [vmem:[%s5 + $0x30] sm:$0xff]
  %v141 = vld [vmem:[%s5 + $0x38] sm:$0xff]
  %v142 = vld [vmem:[%s5 + $0x40] sm:$0xff]
  %v143 = vld [vmem:[%s5 + $0x48] sm:$0xff]
  %v144 = vld [vmem:[%s5 + $0x50] sm:$0xff]
  %v145 = vld [vmem:[%s5 + $0x58] sm:$0xff]
  %v146 = vld [vmem:[%s5 + $0x60] sm:$0xff]
  %v147 = vld [vmem:[%s5 + $0x68] sm:$0xff]
  %v148 = vld [vmem:[%s5 + $0x70] sm:$0xff]
  %v149 = vld [vmem:[%s5 + $0x78] sm:$0xff]
  %v150 = vld [vmem:[%s5 + $0x80] sm:$0xff]
  %v151 = vld [vmem:[%s5 + $0x88] sm:$0xff]
  %v152 = vld [vmem:[%s5 + $0x90] sm:$0xff]
  %v153 = vld [vmem:[%s5 + $0x98] sm:$0xff]
  %v154 = vld [vmem:[%s5 + $0xa0] sm:$0xff]
  %v155 = vld [vmem:[%s5 + $0xa8] sm:$0xff]
  %v156 = vld [vmem:[%s5 + $0xb0] sm:$0xff]
  %v157 = vld [vmem:[%s5 + $0xb8] sm:$0xff]
  %v158 = vld [vmem:[%s5 + $0xc0] sm:$0xff]
  %v159 = vld [vmem:[%s5 + $0xc8] sm:$0xff]
  %v160 = vld [vmem:[%s5 + $0xd0] sm:$0xff]
  %v161 = vld [vmem:[%s5 + $0xd8] sm:$0xff]
  %v162 = vld [vmem:[%s5 + $0xe0] sm:$0xff]
  %v163 = vld [vmem:[%s5 + $0xe8] sm:$0xff]
  %v164 = vld [vmem:[%s5 + $0xf0] sm:$0xff]
  %v165 = vld [vmem:[%s5 + $0xf8] sm:$0xff]
  %v166 = vld [vmem:[%s5 + $0x100] sm:$0xff]
  %v167 = vld [vmem:[%s5 + $0x108] sm:$0xff]
  %v168 = vld [vmem:[%s5 + $0x110] sm:$0xff]
  %v169 = vld [vmem:[%s5 + $0x118] sm:$0xff]
  %v170 = vld [vmem:[%s6] sm:$0xf]
  %v171 = vld [vmem:[%s6 + $0x4] sm:$0xf]
  %v172 = vld [vmem:[%s6 + $0x8] sm:$0xf]
  %v173 = vld [vmem:[%s6 + $0xc] sm:$0xf]
  %v174 = vld [vmem:[%s6 + $0x10] sm:$0xf]
  %v175 = vld [vmem:[%s6 + $0x14] sm:$0xf]
  %v176 = vld [vmem:[%s6 + $0x18] sm:$0xf]
  %v177 = vld [vmem:[%s6 + $0x1c] sm:$0xf]
  %v178 = vld [vmem:[%s6 + $0x20] sm:$0xf]
  %v179 = vld [vmem:[%s6 + $0x24] sm:$0xf]
  %v180 = vld [vmem:[%s6 + $0x28] sm:$0xf]
  %v181 = vld [vmem:[%s6 + $0x2c] sm:$0xf]
  %v182 = vld [vmem:[%s6 + $0x30] sm:$0xf]
  %v183 = vld [vmem:[%s6 + $0x34] sm:$0xf]
  %v184 = vld [vmem:[%s6 + $0x38] sm:$0xf]
  %v185 = vld [vmem:[%s6 + $0x3c] sm:$0xf]
  %v186 = vld [vmem:[%s6 + $0x40] sm:$0xf]
  %v187 = vld [vmem:[%s6 + $0x44] sm:$0xf]
  %v188 = vld [vmem:[%s6 + $0x48] sm:$0xf]
  %v189 = vld [vmem:[%s6 + $0x4c] sm:$0xf]
  %v190 = vld [vmem:[%s6 + $0x50] sm:$0xf]
  %v191 = vld [vmem:[%s6 + $0x54] sm:$0xf]
  %v192 = vld [vmem:[%s6 + $0x58] sm:$0xf]
  %v193 = vld [vmem:[%s6 + $0x5c] sm:$0xf]
  %v194 = vld [vmem:[%s6 + $0x60] sm:$0xf]
  %v195 = vld [vmem:[%s6 + $0x64] sm:$0xf]
  %v196 = vld [vmem:[%s6 + $0x68] sm:$0xf]
  %v197 = vld [vmem:[%s6 + $0x6c] sm:$0xf]
  %v198 = vld [vmem:[%s6 + $0x70] sm:$0xf]
  %v199 = vld [vmem:[%s6 + $0x74] sm:$0xf]
  %v200 = vld [vmem:[%s6 + $0x78] sm:$0xf]
  %v201 = vld [vmem:[%s6 + $0x7c] sm:$0xf]
  %v202 = vld [vmem:[%s8 + $0x6] ss:$0 sm:$0xff]
  %v203 = vadd.f32 %v122, %v124
  %204 = vadd.xlane.f32.xlu0 %v203
  %v205 = vpop.xlane.xlu0 %204
  %v206 = vadd.f32 %v126, %v128
  %207 = vadd.xlane.f32.xlu0 %v206
  %v208 = vpop.xlane.xlu0 %207
  %v209 = vadd.f32 %v132, %v134
  %210 = vadd.xlane.f32.xlu0 %v209
  %v211 = vpop.xlane.xlu0 %210
  %v212 = vrcp.pop 256.0
  %v213 = vmul.f32 %v205, %v212
  %v214 = vmul.f32 %v208, %v212
  %v215 = vmul.f32 %v211, %v212
  %v216 = vmul.f32 %v122, %v122
  %v217 = vmul.f32 %v124, %v124
  %v218 = vmul.f32 %v126, %v126
  %v219 = vmul.f32 %v128, %v128
  %v220 = vmul.f32 %v132, %v132
  %v221 = vmul.f32 %v134, %v134
  %v222 = vadd.f32 %v216, %v217
  %223 = vadd.xlane.f32.xlu0 %v222
  %v224 = vpop.xlane.xlu0 %223
  %v225 = vadd.f32 %v218, %v219
  %226 = vadd.xlane.f32.xlu0 %v225
  %v227 = vpop.xlane.xlu0 %226
  %v228 = vadd.f32 %v220, %v221
  %229 = vadd.xlane.f32.xlu0 %v228
  %v230 = vpop.xlane.xlu0 %229
  %v231 = vmul.f32 %v224, %v212
  %v232 = vmul.f32 %v227, %v212
  %v233 = vmul.f32 %v230, %v212
  %v234 = vmul.f32 %v213, %v213
  %v235 = vmul.f32 %v214, %v214
  %v236 = vmul.f32 %v215, %v215
  %v237 = vsub.f32 %v231, %v234
  %v238 = vsub.f32 %v232, %v235
  %v239 = vsub.f32 %v233, %v236
  %v240 = vsub.f32 %v122, %v213
  %v241 = vsub.f32 %v124, %v213
  %v242 = vsub.f32 %v126, %v214
  %v243 = vsub.f32 %v128, %v214
  %v244 = vsub.f32 %v132, %v215
  %v245 = vsub.f32 %v134, %v215
  %v246 = vmax.f32 %v237, 0.0
  %v247 = vmax.f32 %v238, 0.0
  %v248 = vmax.f32 %v239, 0.0
  %v249 = vadd.f32 %v246, 1e-05
  %v250 = vadd.f32 %v247, 1e-05
  %v251 = vadd.f32 %v248, 1e-05
  %v252 = vrsqrt.pop %v249
  %v253 = vrsqrt.pop %v250
  %v254 = vrsqrt.pop %v251
  %v255 = vmul.f32 %v240, %v252
  %v256 = vmul.f32 %v241, %v252
  %v257 = vmul.f32 %v242, %v253
  %v258 = vmul.f32 %v243, %v253
  %v259 = vmul.f32 %v244, %v254
  %v260 = vmul.f32 %v245, %v254
  %s261 = scalar_lea.vmem %s8, 1
  %v262 = vld [vmem:[%s261] ss:$8 sm:$0x3]
  %v264 = vlaneseq
  %v265 = vshrl.u32 %v264, 7
  %v266 = vsub.s32 0, %v265
  %v267 = vrot.slane %v262, %v266
  %v268 = vlaneseq
  %v269 = vshrl.u32 %v268, 7
  %v270 = vsub.s32 1, %v269
  %v271 = vrot.slane %v262, %v270
  %v274 = vmul.f32 %v255, %v267
  %v275 = vmul.f32 %v256, %v271
  %v276 = vmul.f32 %v257, %v267
  %v277 = vmul.f32 %v258, %v271
  %v278 = vmul.f32 %v259, %v267
  %v279 = vmul.f32 %v260, %v271
  %s280 = scalar_lea.vmem %s8, 2
  %v281 = vld [vmem:[%s280] ss:$8 sm:$0x3]
  %v283 = vlaneseq
  %v284 = vshrl.u32 %v283, 7
  %v285 = vsub.s32 0, %v284
  %v286 = vrot.slane %v281, %v285
  %v287 = vlaneseq
  %v288 = vshrl.u32 %v287, 7
  %v289 = vsub.s32 1, %v288
  %v290 = vrot.slane %v281, %v289
  %v293 = vadd.f32 %v274, %v286
  %v294 = vadd.f32 %v275, %v290
  %v295 = vadd.f32 %v276, %v286
  %v296 = vadd.f32 %v277, %v290
  %v297 = vadd.f32 %v278, %v286
  %v298 = vadd.f32 %v279, %v290
  %v299 = vmax.f32 %v293, 0.0
  %v300 = vmax.f32 %v294, 0.0
  %v301 = vmax.f32 %v295, 0.0
  %v302 = vmax.f32 %v296, 0.0
  %v303 = vmax.f32 %v297, 0.0
  %v304 = vmax.f32 %v298, 0.0
  %v305 = vpack.c.bf16 %v301, %v299
  %v306 = vpack.c.bf16 %v302, %v300
  %v307 = vpack.c.bf16 %v303, %v303
  %v308 = vpack.c.bf16 %v304, %v304
  %s309 = scalar_lea.vmem %s8, 3
  %v310 = vld [vmem:[%s309] ss:$8 sm:$0x3]
  %v312 = vlaneseq
  %v313 = vshrl.u32 %v312, 7
  %v314 = vsub.s32 0, %v313
  %v315 = vrot.slane %v310, %v314
  %v316 = vlaneseq
  %v317 = vshrl.u32 %v316, 7
  %v318 = vsub.s32 1, %v317
  %v319 = vrot.slane %v310, %v318
  %v354 = vunpack.c.l.b16 %v138
  %v355 = vunpack.c.h.b16 %v138
  %v356 = vunpack.c.l.b16 %v139
  %v357 = vunpack.c.h.b16 %v139
  %v358 = vunpack.c.l.b16 %v140
  %v359 = vunpack.c.h.b16 %v140
  %v360 = vunpack.c.l.b16 %v141
  %v361 = vunpack.c.h.b16 %v141
  %v362 = vunpack.c.l.b16 %v142
  %v363 = vunpack.c.h.b16 %v142
  %v364 = vunpack.c.l.b16 %v143
  %v365 = vunpack.c.h.b16 %v143
  %v366 = vunpack.c.l.b16 %v144
  %v367 = vunpack.c.h.b16 %v144
  %v368 = vunpack.c.l.b16 %v145
  %v369 = vunpack.c.h.b16 %v145
  %v370 = vunpack.c.l.b16 %v146
  %v371 = vunpack.c.h.b16 %v146
  %v372 = vunpack.c.l.b16 %v147
  %v373 = vunpack.c.h.b16 %v147
  %v374 = vunpack.c.l.b16 %v148
  %v375 = vunpack.c.h.b16 %v148
  %v376 = vunpack.c.l.b16 %v149
  %v377 = vunpack.c.h.b16 %v149
  %v378 = vunpack.c.l.b16 %v150
  %v379 = vunpack.c.h.b16 %v150
  %v380 = vunpack.c.l.b16 %v151
  %v381 = vunpack.c.h.b16 %v151
  %v382 = vunpack.c.l.b16 %v152
  %v383 = vunpack.c.h.b16 %v152
  %v384 = vunpack.c.l.b16 %v153
  %v385 = vunpack.c.h.b16 %v153
  %v386 = vunpack.c.l.b16 %v154
  %v387 = vunpack.c.h.b16 %v154
  %v388 = vunpack.c.l.b16 %v155
  %v389 = vunpack.c.h.b16 %v155
  %v390 = vunpack.c.l.b16 %v156
  %v391 = vunpack.c.h.b16 %v156
  %v392 = vunpack.c.l.b16 %v157
  %v393 = vunpack.c.h.b16 %v157
  %v394 = vunpack.c.l.b16 %v158
  %v395 = vunpack.c.h.b16 %v158
  %v396 = vunpack.c.l.b16 %v159
  %v397 = vunpack.c.h.b16 %v159
  %v398 = vunpack.c.l.b16 %v160
  %v399 = vunpack.c.h.b16 %v160
  %v400 = vunpack.c.l.b16 %v161
  %v401 = vunpack.c.h.b16 %v161
  %v402 = vunpack.c.l.b16 %v162
  %v403 = vunpack.c.h.b16 %v162
  %v404 = vunpack.c.l.b16 %v163
  %v405 = vunpack.c.h.b16 %v163
  %v406 = vunpack.c.l.b16 %v164
  %v407 = vunpack.c.h.b16 %v164
  %v408 = vunpack.c.l.b16 %v165
  %v409 = vunpack.c.h.b16 %v165
  %v410 = vunpack.c.l.b16 %v166
  %v411 = vunpack.c.h.b16 %v166
  %v412 = vunpack.c.l.b16 %v167
  %v413 = vunpack.c.h.b16 %v167
  %v414 = vunpack.c.l.b16 %v168
  %v415 = vunpack.c.h.b16 %v168
  %v416 = vunpack.c.l.b16 %v169
  %v417 = vunpack.c.h.b16 %v169
  %v418 = vpack.c.b16 %v356, %v354
  %v419 = vpack.c.b16 %v357, %v355
  %v420 = vpack.c.b16 %v360, %v358
  %v421 = vpack.c.b16 %v361, %v359
  %v422 = vpack.c.b16 %v364, %v362
  %v423 = vpack.c.b16 %v365, %v363
  %v424 = vpack.c.b16 %v368, %v366
  %v425 = vpack.c.b16 %v369, %v367
  %v426 = vpack.c.b16 %v372, %v370
  %v427 = vpack.c.b16 %v373, %v371
  %v428 = vpack.c.b16 %v376, %v374
  %v429 = vpack.c.b16 %v377, %v375
  %v430 = vpack.c.b16 %v380, %v378
  %v431 = vpack.c.b16 %v381, %v379
  %v432 = vpack.c.b16 %v384, %v382
  %v433 = vpack.c.b16 %v385, %v383
  %v434 = vpack.c.b16 %v388, %v386
  %v435 = vpack.c.b16 %v389, %v387
  %v436 = vpack.c.b16 %v392, %v390
  %v437 = vpack.c.b16 %v393, %v391
  %v438 = vpack.c.b16 %v396, %v394
  %v439 = vpack.c.b16 %v397, %v395
  %v440 = vpack.c.b16 %v400, %v398
  %v441 = vpack.c.b16 %v401, %v399
  %v442 = vpack.c.b16 %v404, %v402
  %v443 = vpack.c.b16 %v405, %v403
  %v444 = vpack.c.b16 %v408, %v406
  %v445 = vpack.c.b16 %v409, %v407
  %v446 = vpack.c.b16 %v412, %v410
  %v447 = vpack.c.b16 %v413, %v411
  %v448 = vpack.c.b16 %v416, %v414
  %v449 = vpack.c.b16 %v417, %v415
  %482 = vmatprep.subr.bf16.mxu0 %v419
  %483 = vmatpush1.bf16.msra.mxu0 %v418
  %484 = vmatprep.subr.bf16.mxu0 %v421
  %485 = vmatpush1.bf16.msra.mxu0 %v420
  %486 = vmatprep.subr.bf16.mxu0 %v423
  %487 = vmatpush1.bf16.msra.mxu0 %v422
  %488 = vmatprep.subr.bf16.mxu0 %v425
  %489 = vmatpush1.bf16.msra.mxu0 %v424
  %490 = vmatprep.subr.bf16.mxu0 %v427
  %491 = vmatpush1.bf16.msra.mxu0 %v426
  %492 = vmatprep.subr.bf16.mxu0 %v429
  %493 = vmatpush1.bf16.msra.mxu0 %v428
  %494 = vmatprep.subr.bf16.mxu0 %v431
  %495 = vmatpush1.bf16.msra.mxu0 %v430
  %496 = vmatprep.subr.bf16.mxu0 %v433
  %497 = vmatpush1.bf16.msra.mxu0 %v432
  %498 = vmatprep.subr.bf16.mxu0 %v435
  %499 = vmatpush1.bf16.msra.mxu0 %v434
  %500 = vmatprep.subr.bf16.mxu0 %v437
  %501 = vmatpush1.bf16.msra.mxu0 %v436
  %502 = vmatprep.subr.bf16.mxu0 %v439
  %503 = vmatpush1.bf16.msra.mxu0 %v438
  %504 = vmatprep.subr.bf16.mxu0 %v441
  %505 = vmatpush1.bf16.msra.mxu0 %v440
  %506 = vmatprep.subr.bf16.mxu0 %v443
  %507 = vmatpush1.bf16.msra.mxu0 %v442
  %508 = vmatprep.subr.bf16.mxu0 %v445
  %509 = vmatpush1.bf16.msra.mxu0 %v444
  %510 = vmatprep.subr.bf16.mxu0 %v447
  %511 = vmatpush1.bf16.msra.mxu0 %v446
  %512 = vmatprep.subr.bf16.mxu0 %v449
  %513 = vmatpush1.bf16.msra.mxu0 %v448
  %514 = vmatprep.mubr.bf16.mxu0 %v306
  %515 = vmatmul.mubr.bf16.gmra.mrb[0].mxu0 %v305
  %v516 = vpop.f32.mrb[0].mxu0
  %v517 = vadd.f32 %v315, %v516
  %v518 = vpop.f32.mrb[0].mxu0
  %v519 = vadd.f32 %v319, %v518
  %v520 = vpop.f32.mrb[0].mxu0
  %v521 = vadd.f32 %v315, %v520
  %v522 = vpop.f32.mrb[0].mxu0
  %v523 = vadd.f32 %v319, %v522
  %524 = vmatprep.mubr.bf16.mxu0 %v308
  %525 = vmatmul.mubr.bf16.gmra.mrb[0].mxu0 %v307
  %v526 = vpop.f32.mrb[0].mxu0
  %v527 = vadd.f32 %v315, %v526
  %v528 = vpop.f32.mrb[0].mxu0
  %v529 = vadd.f32 %v319, %v528
  %v530 = vpop.f32.mrb[0].mxu0
  %v531 = vpop.f32.mrb[0].mxu0
  %532 = vdwg.mxu0
  %v533 = vadd.f32 %v517, %v519
  %534 = vadd.xlane.f32.xlu0 %v533
  %v535 = vpop.xlane.xlu0 %534
  %v536 = vadd.f32 %v521, %v523
  %537 = vadd.xlane.f32.xlu0 %v536
  %v538 = vpop.xlane.xlu0 %537
  %v539 = vadd.f32 %v527, %v529
  %540 = vadd.xlane.f32.xlu0 %v539
  %v541 = vpop.xlane.xlu0 %540
  %v542 = vmul.f32 %v535, %v212
  %v543 = vmul.f32 %v538, %v212
  %v544 = vmul.f32 %v541, %v212
  %v545 = vmul.f32 %v517, %v517
  %v546 = vmul.f32 %v519, %v519
  %v547 = vmul.f32 %v521, %v521
  %v548 = vmul.f32 %v523, %v523
  %v549 = vmul.f32 %v527, %v527
  %v550 = vmul.f32 %v529, %v529
  %v551 = vadd.f32 %v545, %v546
  %552 = vadd.xlane.f32.xlu0 %v551
  %v553 = vpop.xlane.xlu0 %552
  %v554 = vadd.f32 %v547, %v548
  %555 = vadd.xlane.f32.xlu0 %v554
  %v556 = vpop.xlane.xlu0 %555
  %v557 = vadd.f32 %v549, %v550
  %558 = vadd.xlane.f32.xlu0 %v557
  %v559 = vpop.xlane.xlu0 %558
  %v560 = vmul.f32 %v553, %v212
  %v561 = vmul.f32 %v556, %v212
  %v562 = vmul.f32 %v559, %v212
  %v563 = vmul.f32 %v542, %v542
  %v564 = vmul.f32 %v543, %v543
  %v565 = vmul.f32 %v544, %v544
  %v566 = vsub.f32 %v560, %v563
  %v567 = vsub.f32 %v561, %v564
  %v568 = vsub.f32 %v562, %v565
  %v569 = vsub.f32 %v517, %v542
  %v570 = vsub.f32 %v519, %v542
  %v571 = vsub.f32 %v521, %v543
  %v572 = vsub.f32 %v523, %v543
  %v573 = vsub.f32 %v527, %v544
  %v574 = vsub.f32 %v529, %v544
  %v575 = vmax.f32 %v566, 0.0
  %v576 = vmax.f32 %v567, 0.0
  %v577 = vmax.f32 %v568, 0.0
  %v578 = vadd.f32 %v575, 1e-05
  %v579 = vadd.f32 %v576, 1e-05
  %v580 = vadd.f32 %v577, 1e-05
  %v581 = vrsqrt.pop %v578
  %v582 = vrsqrt.pop %v579
  %v583 = vrsqrt.pop %v580
  %v584 = vmul.f32 %v569, %v581
  %v585 = vmul.f32 %v570, %v581
  %v586 = vmul.f32 %v571, %v582
  %v587 = vmul.f32 %v572, %v582
  %v588 = vmul.f32 %v573, %v583
  %v589 = vmul.f32 %v574, %v583
  %s590 = scalar_lea.vmem %s8, 4
  %v591 = vld [vmem:[%s590] ss:$8 sm:$0x3]
  %v593 = vlaneseq
  %v594 = vshrl.u32 %v593, 7
  %v595 = vsub.s32 0, %v594
  %v596 = vrot.slane %v591, %v595
  %v597 = vlaneseq
  %v598 = vshrl.u32 %v597, 7
  %v599 = vsub.s32 1, %v598
  %v600 = vrot.slane %v591, %v599
  %v603 = vmul.f32 %v584, %v596
  %v604 = vmul.f32 %v585, %v600
  %v605 = vmul.f32 %v586, %v596
  %v606 = vmul.f32 %v587, %v600
  %v607 = vmul.f32 %v588, %v596
  %v608 = vmul.f32 %v589, %v600
  %s609 = scalar_lea.vmem %s8, 5
  %v610 = vld [vmem:[%s609] ss:$8 sm:$0x3]
  %v612 = vlaneseq
  %v613 = vshrl.u32 %v612, 7
  %v614 = vsub.s32 0, %v613
  %v615 = vrot.slane %v610, %v614
  %v616 = vlaneseq
  %v617 = vshrl.u32 %v616, 7
  %v618 = vsub.s32 1, %v617
  %v619 = vrot.slane %v610, %v618
  %v622 = vadd.f32 %v603, %v615
  %v623 = vadd.f32 %v604, %v619
  %v624 = vadd.f32 %v605, %v615
  %v625 = vadd.f32 %v606, %v619
  %v626 = vadd.f32 %v607, %v615
  %v627 = vadd.f32 %v608, %v619
  %v628 = vmax.f32 %v622, 0.0
  %v629 = vmax.f32 %v623, 0.0
  %v630 = vmax.f32 %v624, 0.0
  %v631 = vmax.f32 %v625, 0.0
  %v632 = vmax.f32 %v626, 0.0
  %v633 = vmax.f32 %v627, 0.0
  %v634 = vpack.c.bf16 %v630, %v628
  %v635 = vpack.c.bf16 %v631, %v629
  %v636 = vpack.c.bf16 %v632, %v632
  %v637 = vpack.c.bf16 %v633, %v633
  %v670 = vunpack.c.l.b16 %v170
  %v671 = vunpack.c.l.b16 %v171
  %v672 = vunpack.c.l.b16 %v172
  %v673 = vunpack.c.l.b16 %v173
  %v674 = vunpack.c.l.b16 %v174
  %v675 = vunpack.c.l.b16 %v175
  %v676 = vunpack.c.l.b16 %v176
  %v677 = vunpack.c.l.b16 %v177
  %v678 = vunpack.c.l.b16 %v178
  %v679 = vunpack.c.l.b16 %v179
  %v680 = vunpack.c.l.b16 %v180
  %v681 = vunpack.c.l.b16 %v181
  %v682 = vunpack.c.l.b16 %v182
  %v683 = vunpack.c.l.b16 %v183
  %v684 = vunpack.c.l.b16 %v184
  %v685 = vunpack.c.l.b16 %v185
  %v686 = vunpack.c.l.b16 %v186
  %v687 = vunpack.c.l.b16 %v187
  %v688 = vunpack.c.l.b16 %v188
  %v689 = vunpack.c.l.b16 %v189
  %v690 = vunpack.c.l.b16 %v190
  %v691 = vunpack.c.l.b16 %v191
  %v692 = vunpack.c.l.b16 %v192
  %v693 = vunpack.c.l.b16 %v193
  %v694 = vunpack.c.l.b16 %v194
  %v695 = vunpack.c.l.b16 %v195
  %v696 = vunpack.c.l.b16 %v196
  %v697 = vunpack.c.l.b16 %v197
  %v698 = vunpack.c.l.b16 %v198
  %v699 = vunpack.c.l.b16 %v199
  %v700 = vunpack.c.l.b16 %v200
  %v701 = vunpack.c.l.b16 %v201
  %v702 = vpack.c.b16 %v671, %v670
  %v703 = vpack.c.b16 %v673, %v672
  %v704 = vpack.c.b16 %v675, %v674
  %v705 = vpack.c.b16 %v677, %v676
  %v706 = vpack.c.b16 %v679, %v678
  %v707 = vpack.c.b16 %v681, %v680
  %v708 = vpack.c.b16 %v683, %v682
  %v709 = vpack.c.b16 %v685, %v684
  %v710 = vpack.c.b16 %v687, %v686
  %v711 = vpack.c.b16 %v689, %v688
  %v712 = vpack.c.b16 %v691, %v690
  %v713 = vpack.c.b16 %v693, %v692
  %v714 = vpack.c.b16 %v695, %v694
  %v715 = vpack.c.b16 %v697, %v696
  %v716 = vpack.c.b16 %v699, %v698
  %v717 = vpack.c.b16 %v701, %v700
  %734 = vmatprep.subr.bf16.mxu0 0
  %735 = vmatpush1.bf16.msra.mxu0 %v702
  %736 = vmatprep.subr.bf16.mxu0 0
  %737 = vmatpush1.bf16.msra.mxu0 %v703
  %738 = vmatprep.subr.bf16.mxu0 0
  %739 = vmatpush1.bf16.msra.mxu0 %v704
  %740 = vmatprep.subr.bf16.mxu0 0
  %741 = vmatpush1.bf16.msra.mxu0 %v705
  %742 = vmatprep.subr.bf16.mxu0 0
  %743 = vmatpush1.bf16.msra.mxu0 %v706
  %744 = vmatprep.subr.bf16.mxu0 0
  %745 = vmatpush1.bf16.msra.mxu0 %v707
  %746 = vmatprep.subr.bf16.mxu0 0
  %747 = vmatpush1.bf16.msra.mxu0 %v708
  %748 = vmatprep.subr.bf16.mxu0 0
  %749 = vmatpush1.bf16.msra.mxu0 %v709
  %750 = vmatprep.subr.bf16.mxu0 0
  %751 = vmatpush1.bf16.msra.mxu0 %v710
  %752 = vmatprep.subr.bf16.mxu0 0
  %753 = vmatpush1.bf16.msra.mxu0 %v711
  %754 = vmatprep.subr.bf16.mxu0 0
  %755 = vmatpush1.bf16.msra.mxu0 %v712
  %756 = vmatprep.subr.bf16.mxu0 0
  %757 = vmatpush1.bf16.msra.mxu0 %v713
  %758 = vmatprep.subr.bf16.mxu0 0
  %759 = vmatpush1.bf16.msra.mxu0 %v714
  %760 = vmatprep.subr.bf16.mxu0 0
  %761 = vmatpush1.bf16.msra.mxu0 %v715
  %762 = vmatprep.subr.bf16.mxu0 0
  %763 = vmatpush1.bf16.msra.mxu0 %v716
  %764 = vmatprep.subr.bf16.mxu0 0
  %765 = vmatpush1.bf16.msra.mxu0 %v717
  %766 = vmatprep.mubr.bf16.mxu0 %v635
  %767 = vmatmul.mubr.bf16.gmra.mrb[0].mxu0 %v634
  %v768 = vpop.f32.mrb[0].mxu0
  %v769 = vadd.f32 %v202, %v768
  %v770 = vpop.f32.mrb[0].mxu0
  %v771 = vpop.f32.mrb[0].mxu0
  %v772 = vadd.f32 %v202, %v771
  %v773 = vpop.f32.mrb[0].mxu0
  %774 = vmatprep.mubr.bf16.mxu0 %v637
  %775 = vmatmul.mubr.bf16.gmra.mrb[0].mxu0 %v636
  %v776 = vpop.f32.mrb[0].mxu0
  %v777 = vadd.f32 %v202, %v776
  %v778 = vpop.f32.mrb[0].mxu0
  %v779 = vpop.f32.mrb[0].mxu0
  %v780 = vpop.f32.mrb[0].mxu0
  %781 = vdwg.mxu0
  loop: start=0, step=1, limit=6
  $region38: #{gnn_forward.1} parent=0 // loop_pre_header
    _
  $region39: #{gnn_forward.1} parent=0 // loop_header
    %s783 = sphi 0, %s787
    %p784 = scmp.ge.s32.totalorder %s783, 6
    %v788 = vphi %v769, %v2580
    %v789 = vphi %v772, %v2583
    %v790 = vphi %v777, %v2588
  $region40: #{gnn_forward.1} parent=0 // loop_header_branch
    %786 = sbr.rel (%p784) target = $region44
  $region41: #{gnn_forward.1} parent=0 // loop_body
    %v791 = vld [vmem:[%s2] sm:$0xf]
    %v792 = vld [vmem:[%s2 + $0x4] sm:$0xf]
    %v793 = vld [vmem:[%s2 + $0x8] sm:$0xf]
    %v794 = vld [vmem:[%s2 + $0xc] sm:$0xf]
    %v795 = vld [vmem:[%s3] sm:$0xf]
    %v796 = vld [vmem:[%s3 + $0x4] sm:$0xf]
    %v797 = vld [vmem:[%s3 + $0x8] sm:$0xf]
    %v798 = vld [vmem:[%s4] sm:$0xff]
    %v799 = vld [vmem:[%s4 + $0x8] sm:$0xff]
    %v800 = vld [vmem:[%s4 + $0x10] sm:$0xff]
    %v801 = vpack.c.bf16 %v789, %v788
    %v802 = vpack.c.bf16 %v790, %v790
    %v807 = vunpack.c.l.b16 %v791
    %v808 = vunpack.c.l.b16 %v792
    %v809 = vunpack.c.l.b16 %v793
    %v810 = vunpack.c.l.b16 %v794
    %v811 = vpack.c.b16 %v808, %v807
    %v812 = vpack.c.b16 %v810, %v809
    %vm813 = vcmask 195584
    %v815 = vsel %vm813, %v811, 0
    %v818 = vsel %vm813, %v812, 0
    %vm820 = vcmask 1043456
    %v822 = vsel %vm820, %v802, 0
    %824 = vmatprep.subr.bf16.mxu0 0
    %825 = vmatpush1.bf16.msra.mxu0 %v801
    %826 = vmatprep.subr.bf16.mxu0 0
    %827 = vmatpush1.bf16.msra.mxu0 %v822
    %828 = vmatprep.subr.bf16.mxu0 0
    %829 = vmatpush1.bf16.msra.mxu0 0
    %830 = vmatprep.subr.bf16.mxu0 0
    %831 = vmatpush1.bf16.msra.mxu0 0
    %832 = vmatprep.subr.bf16.mxu0 0
    %833 = vmatpush1.bf16.msra.mxu0 0
    %834 = vmatprep.subr.bf16.mxu0 0
    %835 = vmatpush1.bf16.msra.mxu0 0
    %836 = vmatprep.subr.bf16.mxu0 0
    %837 = vmatpush1.bf16.msra.mxu0 0
    %838 = vmatprep.subr.bf16.mxu0 0
    %839 = vmatpush1.bf16.msra.mxu0 0
    %840 = vmatprep.subr.bf16.mxu0 0
    %841 = vmatpush1.bf16.msra.mxu0 0
    %842 = vmatprep.subr.bf16.mxu0 0
    %843 = vmatpush1.bf16.msra.mxu0 0
    %844 = vmatprep.subr.bf16.mxu0 0
    %845 = vmatpush1.bf16.msra.mxu0 0
    %846 = vmatprep.subr.bf16.mxu0 0
    %847 = vmatpush1.bf16.msra.mxu0 0
    %848 = vmatprep.subr.bf16.mxu0 0
    %849 = vmatpush1.bf16.msra.mxu0 0
    %850 = vmatprep.subr.bf16.mxu0 0
    %851 = vmatpush1.bf16.msra.mxu0 0
    %852 = vmatprep.subr.bf16.mxu0 0
    %853 = vmatpush1.bf16.msra.mxu0 0
    %854 = vmatprep.subr.bf16.mxu0 0
    %855 = vmatpush1.bf16.msra.mxu0 0
    %856 = vmatprep.mubr.bf16.mxu0 0
    %857 = vmatmul.mubr.bf16.gmra.mrb[0].mxu0 %v815
    %v858 = vpop.f32.mrb[0].mxu0
    %v859 = vadd.f32 0.0, %v858
    %v860 = vpop.f32.mrb[0].mxu0
    %v861 = vpop.f32.mrb[0].mxu0
    %v862 = vadd.f32 0.0, %v861
    %v863 = vpop.f32.mrb[0].mxu0
    %864 = vmatprep.mubr.bf16.mxu0 0
    %865 = vmatmul.mubr.bf16.gmra.mrb[0].mxu0 %v818
    %v866 = vpop.f32.mrb[0].mxu0
    %v867 = vadd.f32 0.0, %v866
    %v868 = vpop.f32.mrb[0].mxu0
    %v869 = vpop.f32.mrb[0].mxu0
    %v870 = vadd.f32 0.0, %v869
    %v871 = vpop.f32.mrb[0].mxu0
    %872 = vdwg.mxu0
    %v873 = vpack.c.bf16 %v862, %v859
    %v874 = vpack.c.bf16 %v870, %v867
    %v875 = vld [vmem:[%s5 + $0x120] sm:$0xff]
    %v876 = vld [vmem:[%s5 + $0x128] sm:$0xff]
    %v877 = vld [vmem:[%s5 + $0x130] sm:$0xff]
    %v878 = vld [vmem:[%s5 + $0x138] sm:$0xff]
    %v879 = vld [vmem:[%s5 + $0x140] sm:$0xff]
    %v880 = vld [vmem:[%s5 + $0x148] sm:$0xff]
    %v881 = vld [vmem:[%s5 + $0x150] sm:$0xff]
    %v882 = vld [vmem:[%s5 + $0x158] sm:$0xff]
    %v883 = vld [vmem:[%s1] sm:$0xff]
    %v884 = vld [vmem:[%s1 + $0x8] sm:$0xff]
    %v885 = vld [vmem:[%s1 + $0x10] sm:$0xff]
    %v886 = vld [vmem:[%s1 + $0x18] sm:$0xff]
    %v887 = vld [vmem:[%s1 + $0x20] sm:$0xff]
    %v888 = vld [vmem:[%s1 + $0x28] sm:$0xff]
    %v889 = vld [vmem:[%s1 + $0x30] sm:$0xff]
    %v890 = vld [vmem:[%s1 + $0x38] sm:$0xff]
    %v899 = vunpack.c.l.b16 %v875
    %v900 = vunpack.c.h.b16 %v875
    %v901 = vunpack.c.l.b16 %v876
    %v902 = vunpack.c.h.b16 %v876
    %v903 = vunpack.c.l.b16 %v877
    %v904 = vunpack.c.h.b16 %v877
    %v905 = vunpack.c.l.b16 %v878
    %v906 = vunpack.c.h.b16 %v878
    %v907 = vunpack.c.l.b16 %v879
    %v908 = vunpack.c.h.b16 %v879
    %v909 = vunpack.c.l.b16 %v880
    %v910 = vunpack.c.h.b16 %v880
    %v911 = vunpack.c.l.b16 %v881
    %v912 = vunpack.c.h.b16 %v881
    %v913 = vunpack.c.l.b16 %v882
    %v914 = vunpack.c.h.b16 %v882
    %v915 = vpack.c.b16 %v901, %v899
    %v916 = vpack.c.b16 %v902, %v900
    %v917 = vpack.c.b16 %v905, %v903
    %v918 = vpack.c.b16 %v906, %v904
    %v919 = vpack.c.b16 %v909, %v907
    %v920 = vpack.c.b16 %v910, %v908
    %v921 = vpack.c.b16 %v913, %v911
    %v922 = vpack.c.b16 %v914, %v912
    %vm931 = vcmask 523264
    %v933 = vsel %vm931, %v873, 0
    %v936 = vsel %vm931, %v874, 0
    %938 = vmatprep.subr.bf16.mxu0 %v916
    %939 = vmatpush1.bf16.msra.mxu0 %v915
    %940 = vmatprep.subr.bf16.mxu0 %v918
    %941 = vmatpush1.bf16.msra.mxu0 %v917
    %942 = vmatprep.subr.bf16.mxu0 %v920
    %943 = vmatpush1.bf16.msra.mxu0 %v919
    %944 = vmatprep.subr.bf16.mxu0 %v922
    %945 = vmatpush1.bf16.msra.mxu0 %v921
    %946 = vmatprep.subr.bf16.mxu0 0
    %947 = vmatpush1.bf16.msra.mxu0 0
    %948 = vmatprep.subr.bf16.mxu0 0
    %949 = vmatpush1.bf16.msra.mxu0 0
    %950 = vmatprep.subr.bf16.mxu0 0
    %951 = vmatpush1.bf16.msra.mxu0 0
    %952 = vmatprep.subr.bf16.mxu0 0
    %953 = vmatpush1.bf16.msra.mxu0 0
    %954 = vmatprep.subr.bf16.mxu0 0
    %955 = vmatpush1.bf16.msra.mxu0 0
    %956 = vmatprep.subr.bf16.mxu0 0
    %957 = vmatpush1.bf16.msra.mxu0 0
    %958 = vmatprep.subr.bf16.mxu0 0
    %959 = vmatpush1.bf16.msra.mxu0 0
    %960 = vmatprep.subr.bf16.mxu0 0
    %961 = vmatpush1.bf16.msra.mxu0 0
    %962 = vmatprep.subr.bf16.mxu0 0
    %963 = vmatpush1.bf16.msra.mxu0 0
    %964 = vmatprep.subr.bf16.mxu0 0
    %965 = vmatpush1.bf16.msra.mxu0 0
    %966 = vmatprep.subr.bf16.mxu0 0
    %967 = vmatpush1.bf16.msra.mxu0 0
    %968 = vmatprep.subr.bf16.mxu0 0
    %969 = vmatpush1.bf16.msra.mxu0 0
    %970 = vmatprep.mubr.bf16.mxu0 0
    %971 = vmatmul.mubr.bf16.gmra.mrb[0].mxu0 %v933
    %v972 = vpop.f32.mrb[0].mxu0
    %v973 = vadd.f32 %v883, %v972
    %v974 = vpop.f32.mrb[0].mxu0
    %v975 = vadd.f32 %v884, %v974
    %v976 = vpop.f32.mrb[0].mxu0
    %v977 = vadd.f32 %v885, %v976
    %v978 = vpop.f32.mrb[0].mxu0
    %v979 = vadd.f32 %v886, %v978
    %980 = vmatprep.mubr.bf16.mxu0 0
    %981 = vmatmul.mubr.bf16.gmra.mrb[0].mxu0 %v936
    %v982 = vpop.f32.mrb[0].mxu0
    %v983 = vadd.f32 %v887, %v982
    %v984 = vpop.f32.mrb[0].mxu0
    %v985 = vadd.f32 %v888, %v984
    %v986 = vpop.f32.mrb[0].mxu0
    %v987 = vadd.f32 %v889, %v986
    %v988 = vpop.f32.mrb[0].mxu0
    %v989 = vadd.f32 %v890, %v988
    %990 = vdwg.mxu0
    %v991 = vld [vmem:[%s5 + $0x160] sm:$0xff]
    %v992 = vld [vmem:[%s5 + $0x168] sm:$0xff]
    %v993 = vld [vmem:[%s5 + $0x170] sm:$0xff]
    %v994 = vld [vmem:[%s5 + $0x178] sm:$0xff]
    %v995 = vld [vmem:[%s5 + $0x180] sm:$0xff]
    %v996 = vld [vmem:[%s5 + $0x188] sm:$0xff]
    %v997 = vld [vmem:[%s5 + $0x190] sm:$0xff]
    %v998 = vld [vmem:[%s5 + $0x198] sm:$0xff]
    %v999 = vld [vmem:[%s5 + $0x1a0] sm:$0xff]
    %v1000 = vld [vmem:[%s5 + $0x1a8] sm:$0xff]
    %v1001 = vld [vmem:[%s5 + $0x1b0] sm:$0xff]
    %v1002 = vld [vmem:[%s5 + $0x1b8] sm:$0xff]
    %v1003 = vld [vmem:[%s5 + $0x1c0] sm:$0xff]
    %v1004 = vld [vmem:[%s5 + $0x1c8] sm:$0xff]
    %v1005 = vld [vmem:[%s5 + $0x1d0] sm:$0xff]
    %v1006 = vld [vmem:[%s5 + $0x1d8] sm:$0xff]
    %v1007 = vld [vmem:[%s5 + $0x1e0] sm:$0xff]
    %v1008 = vld [vmem:[%s5 + $0x1e8] sm:$0xff]
    %v1009 = vld [vmem:[%s5 + $0x1f0] sm:$0xff]
    %v1010 = vld [vmem:[%s5 + $0x1f8] sm:$0xff]
    %v1011 = vld [vmem:[%s5 + $0x200] sm:$0xff]
    %v1012 = vld [vmem:[%s5 + $0x208] sm:$0xff]
    %v1013 = vld [vmem:[%s5 + $0x210] sm:$0xff]
    %v1014 = vld [vmem:[%s5 + $0x218] sm:$0xff]
    %v1015 = vld [vmem:[%s5 + $0x220] sm:$0xff]
    %v1016 = vld [vmem:[%s5 + $0x228] sm:$0xff]
    %v1017 = vld [vmem:[%s5 + $0x230] sm:$0xff]
    %v1018 = vld [vmem:[%s5 + $0x238] sm:$0xff]
    %v1019 = vld [vmem:[%s5 + $0x240] sm:$0xff]
    %v1020 = vld [vmem:[%s5 + $0x248] sm:$0xff]
    %v1021 = vld [vmem:[%s5 + $0x250] sm:$0xff]
    %v1022 = vld [vmem:[%s5 + $0x258] sm:$0xff]
    %v1023 = vld [vmem:[%s6 + $0x80] sm:$0xf]
    %v1024 = vld [vmem:[%s6 + $0x84] sm:$0xf]
    %v1025 = vld [vmem:[%s6 + $0x88] sm:$0xf]
    %v1026 = vld [vmem:[%s6 + $0x8c] sm:$0xf]
    %v1027 = vld [vmem:[%s6 + $0x90] sm:$0xf]
    %v1028 = vld [vmem:[%s6 + $0x94] sm:$0xf]
    %v1029 = vld [vmem:[%s6 + $0x98] sm:$0xf]
    %v1030 = vld [vmem:[%s6 + $0x9c] sm:$0xf]
    %v1031 = vld [vmem:[%s6 + $0xa0] sm:$0xf]
    %v1032 = vld [vmem:[%s6 + $0xa4] sm:$0xf]
    %v1033 = vld [vmem:[%s6 + $0xa8] sm:$0xf]
    %v1034 = vld [vmem:[%s6 + $0xac] sm:$0xf]
    %v1035 = vld [vmem:[%s6 + $0xb0] sm:$0xf]
    %v1036 = vld [vmem:[%s6 + $0xb4] sm:$0xf]
    %v1037 = vld [vmem:[%s6 + $0xb8] sm:$0xf]
    %v1038 = vld [vmem:[%s6 + $0xbc] sm:$0xf]
    %v1039 = vld [vmem:[%s6 + $0xc0] sm:$0xf]
    %v1040 = vld [vmem:[%s6 + $0xc4] sm:$0xf]
    %v1041 = vld [vmem:[%s6 + $0xc8] sm:$0xf]
    %v1042 = vld [vmem:[%s6 + $0xcc] sm:$0xf]
    %v1043 = vld [vmem:[%s6 + $0xd0] sm:$0xf]
    %v1044 = vld [vmem:[%s6 + $0xd4] sm:$0xf]
    %v1045 = vld [vmem:[%s6 + $0xd8] sm:$0xf]
    %v1046 = vld [vmem:[%s6 + $0xdc] sm:$0xf]
    %v1047 = vld [vmem:[%s6 + $0xe0] sm:$0xf]
    %v1048 = vld [vmem:[%s6 + $0xe4] sm:$0xf]
    %v1049 = vld [vmem:[%s6 + $0xe8] sm:$0xf]
    %v1050 = vld [vmem:[%s6 + $0xec] sm:$0xf]
    %v1051 = vld [vmem:[%s6 + $0xf0] sm:$0xf]
    %v1052 = vld [vmem:[%s6 + $0xf4] sm:$0xf]
    %v1053 = vld [vmem:[%s6 + $0xf8] sm:$0xf]
    %v1054 = vld [vmem:[%s6 + $0xfc] sm:$0xf]
    %v1055 = vld [vmem:[%s8 + $0x14] ss:$0 sm:$0xff]
    %v1056 = vadd.f32 %v973, %v975
    %1057 = vadd.xlane.f32.xlu0 %v1056
    %v1058 = vpop.xlane.xlu0 %1057
    %v1059 = vadd.f32 %v977, %v979
    %1060 = vadd.xlane.f32.xlu0 %v1059
    %v1061 = vpop.xlane.xlu0 %1060
    %v1062 = vadd.f32 %v983, %v985
    %1063 = vadd.xlane.f32.xlu0 %v1062
    %v1064 = vpop.xlane.xlu0 %1063
    %v1065 = vadd.f32 %v987, %v989
    %1066 = vadd.xlane.f32.xlu0 %v1065
    %v1067 = vpop.xlane.xlu0 %1066
    %v1068 = vmul.f32 %v1058, %v212
    %v1069 = vmul.f32 %v1061, %v212
    %v1070 = vmul.f32 %v1064, %v212
    %v1071 = vmul.f32 %v1067, %v212
    %v1072 = vmul.f32 %v973, %v973
    %v1073 = vmul.f32 %v975, %v975
    %v1074 = vmul.f32 %v977, %v977
    %v1075 = vmul.f32 %v979, %v979
    %v1076 = vmul.f32 %v983, %v983
    %v1077 = vmul.f32 %v985, %v985
    %v1078 = vmul.f32 %v987, %v987
    %v1079 = vmul.f32 %v989, %v989
    %v1080 = vadd.f32 %v1072, %v1073
    %1081 = vadd.xlane.f32.xlu0 %v1080
    %v1082 = vpop.xlane.xlu0 %1081
    %v1083 = vadd.f32 %v1074, %v1075
    %1084 = vadd.xlane.f32.xlu0 %v1083
    %v1085 = vpop.xlane.xlu0 %1084
    %v1086 = vadd.f32 %v1076, %v1077
    %1087 = vadd.xlane.f32.xlu0 %v1086
    %v1088 = vpop.xlane.xlu0 %1087
    %v1089 = vadd.f32 %v1078, %v1079
    %1090 = vadd.xlane.f32.xlu0 %v1089
    %v1091 = vpop.xlane.xlu0 %1090
    %v1092 = vmul.f32 %v1082, %v212
    %v1093 = vmul.f32 %v1085, %v212
    %v1094 = vmul.f32 %v1088, %v212
    %v1095 = vmul.f32 %v1091, %v212
    %v1096 = vmul.f32 %v1068, %v1068
    %v1097 = vmul.f32 %v1069, %v1069
    %v1098 = vmul.f32 %v1070, %v1070
    %v1099 = vmul.f32 %v1071, %v1071
    %v1100 = vsub.f32 %v1092, %v1096
    %v1101 = vsub.f32 %v1093, %v1097
    %v1102 = vsub.f32 %v1094, %v1098
    %v1103 = vsub.f32 %v1095, %v1099
    %v1104 = vsub.f32 %v973, %v1068
    %v1105 = vsub.f32 %v975, %v1068
    %v1106 = vsub.f32 %v977, %v1069
    %v1107 = vsub.f32 %v979, %v1069
    %v1108 = vsub.f32 %v983, %v1070
    %v1109 = vsub.f32 %v985, %v1070
    %v1110 = vsub.f32 %v987, %v1071
    %v1111 = vsub.f32 %v989, %v1071
    %v1112 = vmax.f32 %v1100, 0.0
    %v1113 = vmax.f32 %v1101, 0.0
    %v1114 = vmax.f32 %v1102, 0.0
    %v1115 = vmax.f32 %v1103, 0.0
    %v1116 = vadd.f32 %v1112, 1e-05
    %v1117 = vadd.f32 %v1113, 1e-05
    %v1118 = vadd.f32 %v1114, 1e-05
    %v1119 = vadd.f32 %v1115, 1e-05
    %v1120 = vrsqrt.pop %v1116
    %v1121 = vrsqrt.pop %v1117
    %v1122 = vrsqrt.pop %v1118
    %v1123 = vrsqrt.pop %v1119
    %v1124 = vmul.f32 %v1104, %v1120
    %v1125 = vmul.f32 %v1105, %v1120
    %v1126 = vmul.f32 %v1106, %v1121
    %v1127 = vmul.f32 %v1107, %v1121
    %v1128 = vmul.f32 %v1108, %v1122
    %v1129 = vmul.f32 %v1109, %v1122
    %v1130 = vmul.f32 %v1110, %v1123
    %v1131 = vmul.f32 %v1111, %v1123
    %s1132 = scalar_lea.vmem %s8, 7
    %v1133 = vld [vmem:[%s1132] ss:$8 sm:$0x3]
    %v1135 = vlaneseq
    %v1136 = vshrl.u32 %v1135, 7
    %v1137 = vsub.s32 0, %v1136
    %v1138 = vrot.slane %v1133, %v1137
    %v1139 = vlaneseq
    %v1140 = vshrl.u32 %v1139, 7
    %v1141 = vsub.s32 1, %v1140
    %v1142 = vrot.slane %v1133, %v1141
    %v1145 = vmul.f32 %v1124, %v1138
    %v1146 = vmul.f32 %v1125, %v1142
    %v1147 = vmul.f32 %v1126, %v1138
    %v1148 = vmul.f32 %v1127, %v1142
    %v1149 = vmul.f32 %v1128, %v1138
    %v1150 = vmul.f32 %v1129, %v1142
    %v1151 = vmul.f32 %v1130, %v1138
    %v1152 = vmul.f32 %v1131, %v1142
    %s1153 = scalar_lea.vmem %s8, 16
    %v1154 = vld [vmem:[%s1153] ss:$8 sm:$0x3]
    %v1156 = vlaneseq
    %v1157 = vshrl.u32 %v1156, 7
    %v1158 = vsub.s32 0, %v1157
    %v1159 = vrot.slane %v1154, %v1158
    %v1160 = vlaneseq
    %v1161 = vshrl.u32 %v1160, 7
    %v1162 = vsub.s32 1, %v1161
    %v1163 = vrot.slane %v1154, %v1162
    %v1166 = vadd.f32 %v1145, %v1159
    %v1167 = vadd.f32 %v1146, %v1163
    %v1168 = vadd.f32 %v1147, %v1159
    %v1169 = vadd.f32 %v1148, %v1163
    %v1170 = vadd.f32 %v1149, %v1159
    %v1171 = vadd.f32 %v1150, %v1163
    %v1172 = vadd.f32 %v1151, %v1159
    %v1173 = vadd.f32 %v1152, %v1163
    %v1174 = vmax.f32 %v1166, 0.0
    %v1175 = vmax.f32 %v1167, 0.0
    %v1176 = vmax.f32 %v1168, 0.0
    %v1177 = vmax.f32 %v1169, 0.0
    %v1178 = vmax.f32 %v1170, 0.0
    %v1179 = vmax.f32 %v1171, 0.0
    %v1180 = vmax.f32 %v1172, 0.0
    %v1181 = vmax.f32 %v1173, 0.0
    %v1182 = vpack.c.bf16 %v1176, %v1174
    %v1183 = vpack.c.bf16 %v1177, %v1175
    %v1184 = vpack.c.bf16 %v1180, %v1178
    %v1185 = vpack.c.bf16 %v1181, %v1179
    %s1186 = scalar_lea.vmem %s8, 17
    %v1187 = vld [vmem:[%s1186] ss:$8 sm:$0x3]
    %v1189 = vlaneseq
    %v1190 = vshrl.u32 %v1189, 7
    %v1191 = vsub.s32 0, %v1190
    %v1192 = vrot.slane %v1187, %v1191
    %v1193 = vlaneseq
    %v1194 = vshrl.u32 %v1193, 7
    %v1195 = vsub.s32 1, %v1194
    %v1196 = vrot.slane %v1187, %v1195
    %v1231 = vunpack.c.l.b16 %v991
    %v1232 = vunpack.c.h.b16 %v991
    %v1233 = vunpack.c.l.b16 %v992
    %v1234 = vunpack.c.h.b16 %v992
    %v1235 = vunpack.c.l.b16 %v993
    %v1236 = vunpack.c.h.b16 %v993
    %v1237 = vunpack.c.l.b16 %v994
    %v1238 = vunpack.c.h.b16 %v994
    %v1239 = vunpack.c.l.b16 %v995
    %v1240 = vunpack.c.h.b16 %v995
    %v1241 = vunpack.c.l.b16 %v996
    %v1242 = vunpack.c.h.b16 %v996
    %v1243 = vunpack.c.l.b16 %v997
    %v1244 = vunpack.c.h.b16 %v997
    %v1245 = vunpack.c.l.b16 %v998
    %v1246 = vunpack.c.h.b16 %v998
    %v1247 = vunpack.c.l.b16 %v999
    %v1248 = vunpack.c.h.b16 %v999
    %v1249 = vunpack.c.l.b16 %v1000
    %v1250 = vunpack.c.h.b16 %v1000
    %v1251 = vunpack.c.l.b16 %v1001
    %v1252 = vunpack.c.h.b16 %v1001
    %v1253 = vunpack.c.l.b16 %v1002
    %v1254 = vunpack.c.h.b16 %v1002
    %v1255 = vunpack.c.l.b16 %v1003
    %v1256 = vunpack.c.h.b16 %v1003
    %v1257 = vunpack.c.l.b16 %v1004
    %v1258 = vunpack.c.h.b16 %v1004
    %v1259 = vunpack.c.l.b16 %v1005
    %v1260 = vunpack.c.h.b16 %v1005
    %v1261 = vunpack.c.l.b16 %v1006
    %v1262 = vunpack.c.h.b16 %v1006
    %v1263 = vunpack.c.l.b16 %v1007
    %v1264 = vunpack.c.h.b16 %v1007
    %v1265 = vunpack.c.l.b16 %v1008
    %v1266 = vunpack.c.h.b16 %v1008
    %v1267 = vunpack.c.l.b16 %v1009
    %v1268 = vunpack.c.h.b16 %v1009
    %v1269 = vunpack.c.l.b16 %v1010
    %v1270 = vunpack.c.h.b16 %v1010
    %v1271 = vunpack.c.l.b16 %v1011
    %v1272 = vunpack.c.h.b16 %v1011
    %v1273 = vunpack.c.l.b16 %v1012
    %v1274 = vunpack.c.h.b16 %v1012
    %v1275 = vunpack.c.l.b16 %v1013
    %v1276 = vunpack.c.h.b16 %v1013
    %v1277 = vunpack.c.l.b16 %v1014
    %v1278 = vunpack.c.h.b16 %v1014
    %v1279 = vunpack.c.l.b16 %v1015
    %v1280 = vunpack.c.h.b16 %v1015
    %v1281 = vunpack.c.l.b16 %v1016
    %v1282 = vunpack.c.h.b16 %v1016
    %v1283 = vunpack.c.l.b16 %v1017
    %v1284 = vunpack.c.h.b16 %v1017
    %v1285 = vunpack.c.l.b16 %v1018
    %v1286 = vunpack.c.h.b16 %v1018
    %v1287 = vunpack.c.l.b16 %v1019
    %v1288 = vunpack.c.h.b16 %v1019
    %v1289 = vunpack.c.l.b16 %v1020
    %v1290 = vunpack.c.h.b16 %v1020
    %v1291 = vunpack.c.l.b16 %v1021
    %v1292 = vunpack.c.h.b16 %v1021
    %v1293 = vunpack.c.l.b16 %v1022
    %v1294 = vunpack.c.h.b16 %v1022
    %v1295 = vpack.c.b16 %v1233, %v1231
    %v1296 = vpack.c.b16 %v1234, %v1232
    %v1297 = vpack.c.b16 %v1237, %v1235
    %v1298 = vpack.c.b16 %v1238, %v1236
    %v1299 = vpack.c.b16 %v1241, %v1239
    %v1300 = vpack.c.b16 %v1242, %v1240
    %v1301 = vpack.c.b16 %v1245, %v1243
    %v1302 = vpack.c.b16 %v1246, %v1244
    %v1303 = vpack.c.b16 %v1249, %v1247
    %v1304 = vpack.c.b16 %v1250, %v1248
    %v1305 = vpack.c.b16 %v1253, %v1251
    %v1306 = vpack.c.b16 %v1254, %v1252
    %v1307 = vpack.c.b16 %v1257, %v1255
    %v1308 = vpack.c.b16 %v1258, %v1256
    %v1309 = vpack.c.b16 %v1261, %v1259
    %v1310 = vpack.c.b16 %v1262, %v1260
    %v1311 = vpack.c.b16 %v1265, %v1263
    %v1312 = vpack.c.b16 %v1266, %v1264
    %v1313 = vpack.c.b16 %v1269, %v1267
    %v1314 = vpack.c.b16 %v1270, %v1268
    %v1315 = vpack.c.b16 %v1273, %v1271
    %v1316 = vpack.c.b16 %v1274, %v1272
    %v1317 = vpack.c.b16 %v1277, %v1275
    %v1318 = vpack.c.b16 %v1278, %v1276
    %v1319 = vpack.c.b16 %v1281, %v1279
    %v1320 = vpack.c.b16 %v1282, %v1280
    %v1321 = vpack.c.b16 %v1285, %v1283
    %v1322 = vpack.c.b16 %v1286, %v1284
    %v1323 = vpack.c.b16 %v1289, %v1287
    %v1324 = vpack.c.b16 %v1290, %v1288
    %v1325 = vpack.c.b16 %v1293, %v1291
    %v1326 = vpack.c.b16 %v1294, %v1292
    %1359 = vmatprep.subr.bf16.mxu0 %v1296
    %1360 = vmatpush1.bf16.msra.mxu0 %v1295
    %1361 = vmatprep.subr.bf16.mxu0 %v1298
    %1362 = vmatpush1.bf16.msra.mxu0 %v1297
    %1363 = vmatprep.subr.bf16.mxu0 %v1300
    %1364 = vmatpush1.bf16.msra.mxu0 %v1299
    %1365 = vmatprep.subr.bf16.mxu0 %v1302
    %1366 = vmatpush1.bf16.msra.mxu0 %v1301
    %1367 = vmatprep.subr.bf16.mxu0 %v1304
    %1368 = vmatpush1.bf16.msra.mxu0 %v1303
    %1369 = vmatprep.subr.bf16.mxu0 %v1306
    %1370 = vmatpush1.bf16.msra.mxu0 %v1305
    %1371 = vmatprep.subr.bf16.mxu0 %v1308
    %1372 = vmatpush1.bf16.msra.mxu0 %v1307
    %1373 = vmatprep.subr.bf16.mxu0 %v1310
    %1374 = vmatpush1.bf16.msra.mxu0 %v1309
    %1375 = vmatprep.subr.bf16.mxu0 %v1312
    %1376 = vmatpush1.bf16.msra.mxu0 %v1311
    %1377 = vmatprep.subr.bf16.mxu0 %v1314
    %1378 = vmatpush1.bf16.msra.mxu0 %v1313
    %1379 = vmatprep.subr.bf16.mxu0 %v1316
    %1380 = vmatpush1.bf16.msra.mxu0 %v1315
    %1381 = vmatprep.subr.bf16.mxu0 %v1318
    %1382 = vmatpush1.bf16.msra.mxu0 %v1317
    %1383 = vmatprep.subr.bf16.mxu0 %v1320
    %1384 = vmatpush1.bf16.msra.mxu0 %v1319
    %1385 = vmatprep.subr.bf16.mxu0 %v1322
    %1386 = vmatpush1.bf16.msra.mxu0 %v1321
    %1387 = vmatprep.subr.bf16.mxu0 %v1324
    %1388 = vmatpush1.bf16.msra.mxu0 %v1323
    %1389 = vmatprep.subr.bf16.mxu0 %v1326
    %1390 = vmatpush1.bf16.msra.mxu0 %v1325
    %1391 = vmatprep.mubr.bf16.mxu0 %v1183
    %1392 = vmatmul.mubr.bf16.gmra.mrb[0].mxu0 %v1182
    %v1393 = vpop.f32.mrb[0].mxu0
    %v1394 = vadd.f32 %v1192, %v1393
    %v1395 = vpop.f32.mrb[0].mxu0
    %v1396 = vadd.f32 %v1196, %v1395
    %v1397 = vpop.f32.mrb[0].mxu0
    %v1398 = vadd.f32 %v1192, %v1397
    %v1399 = vpop.f32.mrb[0].mxu0
    %v1400 = vadd.f32 %v1196, %v1399
    %1401 = vmatprep.mubr.bf16.mxu0 %v1185
    %1402 = vmatmul.mubr.bf16.gmra.mrb[0].mxu0 %v1184
    %v1403 = vpop.f32.mrb[0].mxu0
    %v1404 = vadd.f32 %v1192, %v1403
    %v1405 = vpop.f32.mrb[0].mxu0
    %v1406 = vadd.f32 %v1196, %v1405
    %v1407 = vpop.f32.mrb[0].mxu0
    %v1408 = vadd.f32 %v1192, %v1407
    %v1409 = vpop.f32.mrb[0].mxu0
    %v1410 = vadd.f32 %v1196, %v1409
    %1411 = vdwg.mxu0
    %v1412 = vadd.f32 %v1394, %v1396
    %1413 = vadd.xlane.f32.xlu0 %v1412
    %v1414 = vpop.xlane.xlu0 %1413
    %v1415 = vadd.f32 %v1398, %v1400
    %1416 = vadd.xlane.f32.xlu0 %v1415
    %v1417 = vpop.xlane.xlu0 %1416
    %v1418 = vadd.f32 %v1404, %v1406
    %1419 = vadd.xlane.f32.xlu0 %v1418
    %v1420 = vpop.xlane.xlu0 %1419
    %v1421 = vadd.f32 %v1408, %v1410
    %1422 = vadd.xlane.f32.xlu0 %v1421
    %v1423 = vpop.xlane.xlu0 %1422
    %v1424 = vmul.f32 %v1414, %v212
    %v1425 = vmul.f32 %v1417, %v212
    %v1426 = vmul.f32 %v1420, %v212
    %v1427 = vmul.f32 %v1423, %v212
    %v1428 = vmul.f32 %v1394, %v1394
    %v1429 = vmul.f32 %v1396, %v1396
    %v1430 = vmul.f32 %v1398, %v1398
    %v1431 = vmul.f32 %v1400, %v1400
    %v1432 = vmul.f32 %v1404, %v1404
    %v1433 = vmul.f32 %v1406, %v1406
    %v1434 = vmul.f32 %v1408, %v1408
    %v1435 = vmul.f32 %v1410, %v1410
    %v1436 = vadd.f32 %v1428, %v1429
    %1437 = vadd.xlane.f32.xlu0 %v1436
    %v1438 = vpop.xlane.xlu0 %1437
    %v1439 = vadd.f32 %v1430, %v1431
    %1440 = vadd.xlane.f32.xlu0 %v1439
    %v1441 = vpop.xlane.xlu0 %1440
    %v1442 = vadd.f32 %v1432, %v1433
    %1443 = vadd.xlane.f32.xlu0 %v1442
    %v1444 = vpop.xlane.xlu0 %1443
    %v1445 = vadd.f32 %v1434, %v1435
    %1446 = vadd.xlane.f32.xlu0 %v1445
    %v1447 = vpop.xlane.xlu0 %1446
    %v1448 = vmul.f32 %v1438, %v212
    %v1449 = vmul.f32 %v1441, %v212
    %v1450 = vmul.f32 %v1444, %v212
    %v1451 = vmul.f32 %v1447, %v212
    %v1452 = vmul.f32 %v1424, %v1424
    %v1453 = vmul.f32 %v1425, %v1425
    %v1454 = vmul.f32 %v1426, %v1426
    %v1455 = vmul.f32 %v1427, %v1427
    %v1456 = vsub.f32 %v1448, %v1452
    %v1457 = vsub.f32 %v1449, %v1453
    %v1458 = vsub.f32 %v1450, %v1454
    %v1459 = vsub.f32 %v1451, %v1455
    %v1460 = vsub.f32 %v1394, %v1424
    %v1461 = vsub.f32 %v1396, %v1424
    %v1462 = vsub.f32 %v1398, %v1425
    %v1463 = vsub.f32 %v1400, %v1425
    %v1464 = vsub.f32 %v1404, %v1426
    %v1465 = vsub.f32 %v1406, %v1426
    %v1466 = vsub.f32 %v1408, %v1427
    %v1467 = vsub.f32 %v1410, %v1427
    %v1468 = vmax.f32 %v1456, 0.0
    %v1469 = vmax.f32 %v1457, 0.0
    %v1470 = vmax.f32 %v1458, 0.0
    %v1471 = vmax.f32 %v1459, 0.0
    %v1472 = vadd.f32 %v1468, 1e-05
    %v1473 = vadd.f32 %v1469, 1e-05
    %v1474 = vadd.f32 %v1470, 1e-05
    %v1475 = vadd.f32 %v1471, 1e-05
    %v1476 = vrsqrt.pop %v1472
    %v1477 = vrsqrt.pop %v1473
    %v1478 = vrsqrt.pop %v1474
    %v1479 = vrsqrt.pop %v1475
    %v1480 = vmul.f32 %v1460, %v1476
    %v1481 = vmul.f32 %v1461, %v1476
    %v1482 = vmul.f32 %v1462, %v1477
    %v1483 = vmul.f32 %v1463, %v1477
    %v1484 = vmul.f32 %v1464, %v1478
    %v1485 = vmul.f32 %v1465, %v1478
    %v1486 = vmul.f32 %v1466, %v1479
    %v1487 = vmul.f32 %v1467, %v1479
    %s1488 = scalar_lea.vmem %s8, 18
    %v1489 = vld [vmem:[%s1488] ss:$8 sm:$0x3]
    %v1491 = vlaneseq
    %v1492 = vshrl.u32 %v1491, 7
    %v1493 = vsub.s32 0, %v1492
    %v1494 = vrot.slane %v1489, %v1493
    %v1495 = vlaneseq
    %v1496 = vshrl.u32 %v1495, 7
    %v1497 = vsub.s32 1, %v1496
    %v1498 = vrot.slane %v1489, %v1497
    %v1501 = vmul.f32 %v1480, %v1494
    %v1502 = vmul.f32 %v1481, %v1498
    %v1503 = vmul.f32 %v1482, %v1494
    %v1504 = vmul.f32 %v1483, %v1498
    %v1505 = vmul.f32 %v1484, %v1494
    %v1506 = vmul.f32 %v1485, %v1498
    %v1507 = vmul.f32 %v1486, %v1494
    %v1508 = vmul.f32 %v1487, %v1498
    %s1509 = scalar_lea.vmem %s8, 19
    %v1510 = vld [vmem:[%s1509] ss:$8 sm:$0x3]
    %v1512 = vlaneseq
    %v1513 = vshrl.u32 %v1512, 7
    %v1514 = vsub.s32 0, %v1513
    %v1515 = vrot.slane %v1510, %v1514
    %v1516 = vlaneseq
    %v1517 = vshrl.u32 %v1516, 7
    %v1518 = vsub.s32 1, %v1517
    %v1519 = vrot.slane %v1510, %v1518
    %v1522 = vadd.f32 %v1501, %v1515
    %v1523 = vadd.f32 %v1502, %v1519
    %v1524 = vadd.f32 %v1503, %v1515
    %v1525 = vadd.f32 %v1504, %v1519
    %v1526 = vadd.f32 %v1505, %v1515
    %v1527 = vadd.f32 %v1506, %v1519
    %v1528 = vadd.f32 %v1507, %v1515
    %v1529 = vadd.f32 %v1508, %v1519
    %v1530 = vmax.f32 %v1522, 0.0
    %v1531 = vmax.f32 %v1523, 0.0
    %v1532 = vmax.f32 %v1524, 0.0
    %v1533 = vmax.f32 %v1525, 0.0
    %v1534 = vmax.f32 %v1526, 0.0
    %v1535 = vmax.f32 %v1527, 0.0
    %v1536 = vmax.f32 %v1528, 0.0
    %v1537 = vmax.f32 %v1529, 0.0
    %v1538 = vpack.c.bf16 %v1532, %v1530
    %v1539 = vpack.c.bf16 %v1533, %v1531
    %v1540 = vpack.c.bf16 %v1536, %v1534
    %v1541 = vpack.c.bf16 %v1537, %v1535
    %v1574 = vunpack.c.l.b16 %v1023
    %v1575 = vunpack.c.l.b16 %v1024
    %v1576 = vunpack.c.l.b16 %v1025
    %v1577 = vunpack.c.l.b16 %v1026
    %v1578 = vunpack.c.l.b16 %v1027
    %v1579 = vunpack.c.l.b16 %v1028
    %v1580 = vunpack.c.l.b16 %v1029
    %v1581 = vunpack.c.l.b16 %v1030
    %v1582 = vunpack.c.l.b16 %v1031
    %v1583 = vunpack.c.l.b16 %v1032
    %v1584 = vunpack.c.l.b16 %v1033
    %v1585 = vunpack.c.l.b16 %v1034
    %v1586 = vunpack.c.l.b16 %v1035
    %v1587 = vunpack.c.l.b16 %v1036
    %v1588 = vunpack.c.l.b16 %v1037
    %v1589 = vunpack.c.l.b16 %v1038
    %v1590 = vunpack.c.l.b16 %v1039
    %v1591 = vunpack.c.l.b16 %v1040
    %v1592 = vunpack.c.l.b16 %v1041
    %v1593 = vunpack.c.l.b16 %v1042
    %v1594 = vunpack.c.l.b16 %v1043
    %v1595 = vunpack.c.l.b16 %v1044
    %v1596 = vunpack.c.l.b16 %v1045
    %v1597 = vunpack.c.l.b16 %v1046
    %v1598 = vunpack.c.l.b16 %v1047
    %v1599 = vunpack.c.l.b16 %v1048
    %v1600 = vunpack.c.l.b16 %v1049
    %v1601 = vunpack.c.l.b16 %v1050
    %v1602 = vunpack.c.l.b16 %v1051
    %v1603 = vunpack.c.l.b16 %v1052
    %v1604 = vunpack.c.l.b16 %v1053
    %v1605 = vunpack.c.l.b16 %v1054
    %v1606 = vpack.c.b16 %v1575, %v1574
    %v1607 = vpack.c.b16 %v1577, %v1576
    %v1608 = vpack.c.b16 %v1579, %v1578
    %v1609 = vpack.c.b16 %v1581, %v1580
    %v1610 = vpack.c.b16 %v1583, %v1582
    %v1611 = vpack.c.b16 %v1585, %v1584
    %v1612 = vpack.c.b16 %v1587, %v1586
    %v1613 = vpack.c.b16 %v1589, %v1588
    %v1614 = vpack.c.b16 %v1591, %v1590
    %v1615 = vpack.c.b16 %v1593, %v1592
    %v1616 = vpack.c.b16 %v1595, %v1594
    %v1617 = vpack.c.b16 %v1597, %v1596
    %v1618 = vpack.c.b16 %v1599, %v1598
    %v1619 = vpack.c.b16 %v1601, %v1600
    %v1620 = vpack.c.b16 %v1603, %v1602
    %v1621 = vpack.c.b16 %v1605, %v1604
    %1638 = vmatprep.subr.bf16.mxu0 0
    %1639 = vmatpush1.bf16.msra.mxu0 %v1606
    %1640 = vmatprep.subr.bf16.mxu0 0
    %1641 = vmatpush1.bf16.msra.mxu0 %v1607
    %1642 = vmatprep.subr.bf16.mxu0 0
    %1643 = vmatpush1.bf16.msra.mxu0 %v1608
    %1644 = vmatprep.subr.bf16.mxu0 0
    %1645 = vmatpush1.bf16.msra.mxu0 %v1609
    %1646 = vmatprep.subr.bf16.mxu0 0
    %1647 = vmatpush1.bf16.msra.mxu0 %v1610
    %1648 = vmatprep.subr.bf16.mxu0 0
    %1649 = vmatpush1.bf16.msra.mxu0 %v1611
    %1650 = vmatprep.subr.bf16.mxu0 0
    %1651 = vmatpush1.bf16.msra.mxu0 %v1612
    %1652 = vmatprep.subr.bf16.mxu0 0
    %1653 = vmatpush1.bf16.msra.mxu0 %v1613
    %1654 = vmatprep.subr.bf16.mxu0 0
    %1655 = vmatpush1.bf16.msra.mxu0 %v1614
    %1656 = vmatprep.subr.bf16.mxu0 0
    %1657 = vmatpush1.bf16.msra.mxu0 %v1615
    %1658 = vmatprep.subr.bf16.mxu0 0
    %1659 = vmatpush1.bf16.msra.mxu0 %v1616
    %1660 = vmatprep.subr.bf16.mxu0 0
    %1661 = vmatpush1.bf16.msra.mxu0 %v1617
    %1662 = vmatprep.subr.bf16.mxu0 0
    %1663 = vmatpush1.bf16.msra.mxu0 %v1618
    %1664 = vmatprep.subr.bf16.mxu0 0
    %1665 = vmatpush1.bf16.msra.mxu0 %v1619
    %1666 = vmatprep.subr.bf16.mxu0 0
    %1667 = vmatpush1.bf16.msra.mxu0 %v1620
    %1668 = vmatprep.subr.bf16.mxu0 0
    %1669 = vmatpush1.bf16.msra.mxu0 %v1621
    %1670 = vmatprep.mubr.bf16.mxu0 %v1539
    %1671 = vmatmul.mubr.bf16.gmra.mrb[0].mxu0 %v1538
    %v1672 = vpop.f32.mrb[0].mxu0
    %v1673 = vadd.f32 %v1055, %v1672
    %v1674 = vpop.f32.mrb[0].mxu0
    %v1675 = vpop.f32.mrb[0].mxu0
    %v1676 = vadd.f32 %v1055, %v1675
    %v1677 = vpop.f32.mrb[0].mxu0
    %1678 = vmatprep.mubr.bf16.mxu0 %v1541
    %1679 = vmatmul.mubr.bf16.gmra.mrb[0].mxu0 %v1540
    %v1680 = vpop.f32.mrb[0].mxu0
    %v1681 = vadd.f32 %v1055, %v1680
    %v1682 = vpop.f32.mrb[0].mxu0
    %v1683 = vpop.f32.mrb[0].mxu0
    %v1684 = vadd.f32 %v1055, %v1683
    %v1685 = vpop.f32.mrb[0].mxu0
    %1686 = vdwg.mxu0
    %v1687 = vtanh.pop %v1673
    %v1688 = vtanh.pop %v1676
    %v1689 = vtanh.pop %v1681
    %v1690 = vtanh.pop %v1684
    %v1691 = vpack.c.bf16 %v1688, %v1687
    %v1692 = vpack.c.bf16 %v1690, %v1689
    %v1696 = vunpack.c.l.b16 %v795
    %v1697 = vunpack.c.l.b16 %v796
    %v1698 = vunpack.c.l.b16 %v797
    %v1699 = vpack.c.b16 %v1697, %v1696
    %v1700 = vpack.c.b16 %v1698, %v1698
    %v1702 = vsel %vm80, %v1699, 0
    %v1705 = vsel %vm80, %v1700, 0
    %1707 = vmatprep.subr.bf16.mxu0 0
    %1708 = vmatpush1.bf16.msra.mxu0 %v1691
    %1709 = vmatprep.subr.bf16.mxu0 0
    %1710 = vmatpush1.bf16.msra.mxu0 %v1692
    %1711 = vmatprep.subr.bf16.mxu0 0
    %1712 = vmatpush1.bf16.msra.mxu0 0
    %1713 = vmatprep.subr.bf16.mxu0 0
    %1714 = vmatpush1.bf16.msra.mxu0 0
    %1715 = vmatprep.subr.bf16.mxu0 0
    %1716 = vmatpush1.bf16.msra.mxu0 0
    %1717 = vmatprep.subr.bf16.mxu0 0
    %1718 = vmatpush1.bf16.msra.mxu0 0
    %1719 = vmatprep.subr.bf16.mxu0 0
    %1720 = vmatpush1.bf16.msra.mxu0 0
    %1721 = vmatprep.subr.bf16.mxu0 0
    %1722 = vmatpush1.bf16.msra.mxu0 0
    %1723 = vmatprep.subr.bf16.mxu0 0
    %1724 = vmatpush1.bf16.msra.mxu0 0
    %1725 = vmatprep.subr.bf16.mxu0 0
    %1726 = vmatpush1.bf16.msra.mxu0 0
    %1727 = vmatprep.subr.bf16.mxu0 0
    %1728 = vmatpush1.bf16.msra.mxu0 0
    %1729 = vmatprep.subr.bf16.mxu0 0
    %1730 = vmatpush1.bf16.msra.mxu0 0
    %1731 = vmatprep.subr.bf16.mxu0 0
    %1732 = vmatpush1.bf16.msra.mxu0 0
    %1733 = vmatprep.subr.bf16.mxu0 0
    %1734 = vmatpush1.bf16.msra.mxu0 0
    %1735 = vmatprep.subr.bf16.mxu0 0
    %1736 = vmatpush1.bf16.msra.mxu0 0
    %1737 = vmatprep.subr.bf16.mxu0 0
    %1738 = vmatpush1.bf16.msra.mxu0 0
    %1739 = vmatprep.mubr.bf16.mxu0 0
    %1740 = vmatmul.mubr.bf16.gmra.mrb[0].mxu0 %v1702
    %v1741 = vpop.f32.mrb[0].mxu0
    %v1742 = vadd.f32 0.0, %v1741
    %v1743 = vpop.f32.mrb[0].mxu0
    %v1744 = vpop.f32.mrb[0].mxu0
    %v1745 = vadd.f32 0.0, %v1744
    %v1746 = vpop.f32.mrb[0].mxu0
    %1747 = vmatprep.mubr.bf16.mxu0 0
    %1748 = vmatmul.mubr.bf16.gmra.mrb[0].mxu0 %v1705
    %v1749 = vpop.f32.mrb[0].mxu0
    %v1750 = vadd.f32 0.0, %v1749
    %v1751 = vpop.f32.mrb[0].mxu0
    %v1752 = vpop.f32.mrb[0].mxu0
    %v1753 = vpop.f32.mrb[0].mxu0
    %1754 = vdwg.mxu0
    %1756 = vset.pattern.permute.xlu0 0
    %1757 = vperm.xlu0 %1756, %v798
    %v1758 = vpop.permute.xlu0 %1757
    %1761 = vset.pattern.permute.xlu0 0
    %1762 = vperm.xlu0 %1761, %v799
    %v1763 = vpop.permute.xlu0 %1762
    %1766 = vset.pattern.permute.xlu0 0
    %1767 = vperm.xlu0 %1766, %v800
    %v1768 = vpop.permute.xlu0 %1767
    %v1770 = vmul.f32 %v1742, %v1758
    %v1771 = vmul.f32 %v1745, %v1763
    %v1772 = vmul.f32 %v1750, %v1768
    %1776 = vrot.lane.b32.xlu0 %v788, 64
    %v1777 = vpop.permute.xlu0 %1776
    %1778 = vrot.lane.b32.xlu0 %v789, 64
    %v1779 = vpop.permute.xlu0 %1778
    %1780 = vrot.lane.b32.xlu0 %v790, 64
    %v1781 = vpop.permute.xlu0 %1780
    %v1785 = vsel %vm931, %v1770, %v1777
    %v1786 = vsel %vm931, %v1771, %v1779
    %v1787 = vsel %vm931, %v1772, %v1781
    %v1788 = vpack.c.bf16 %v1786, %v1785
    %v1789 = vpack.c.bf16 %v1787, %v1787
    %v1790 = vld [vmem:[%s5 + $0x260] sm:$0xff]
    %v1791 = vld [vmem:[%s5 + $0x268] sm:$0xff]
    %v1792 = vld [vmem:[%s5 + $0x270] sm:$0xff]
    %v1793 = vld [vmem:[%s5 + $0x278] sm:$0xff]
    %v1794 = vld [vmem:[%s5 + $0x280] sm:$0xff]
    %v1795 = vld [vmem:[%s5 + $0x288] sm:$0xff]
    %v1796 = vld [vmem:[%s5 + $0x290] sm:$0xff]
    %v1797 = vld [vmem:[%s5 + $0x298] sm:$0xff]
    %v1798 = vld [vmem:[%s5 + $0x2a0] sm:$0xff]
    %v1799 = vld [vmem:[%s5 + $0x2a8] sm:$0xff]
    %v1800 = vld [vmem:[%s5 + $0x2b0] sm:$0xff]
    %v1801 = vld [vmem:[%s5 + $0x2b8] sm:$0xff]
    %v1802 = vld [vmem:[%s5 + $0x2c0] sm:$0xff]
    %v1803 = vld [vmem:[%s5 + $0x2c8] sm:$0xff]
    %v1804 = vld [vmem:[%s5 + $0x2d0] sm:$0xff]
    %v1805 = vld [vmem:[%s5 + $0x2d8] sm:$0xff]
    %s1806 = scalar_lea.vmem %s8, 21
    %v1807 = vld [vmem:[%s1806] ss:$8 sm:$0x3]
    %v1809 = vlaneseq
    %v1810 = vshrl.u32 %v1809, 7
    %v1811 = vsub.s32 0, %v1810
    %v1812 = vrot.slane %v1807, %v1811
    %v1813 = vlaneseq
    %v1814 = vshrl.u32 %v1813, 7
    %v1815 = vsub.s32 1, %v1814
    %v1816 = vrot.slane %v1807, %v1815
    %v1835 = vunpack.c.l.b16 %v1790
    %v1836 = vunpack.c.h.b16 %v1790
    %v1837 = vunpack.c.l.b16 %v1791
    %v1838 = vunpack.c.h.b16 %v1791
    %v1839 = vunpack.c.l.b16 %v1792
    %v1840 = vunpack.c.h.b16 %v1792
    %v1841 = vunpack.c.l.b16 %v1793
    %v1842 = vunpack.c.h.b16 %v1793
    %v1843 = vunpack.c.l.b16 %v1794
    %v1844 = vunpack.c.h.b16 %v1794
    %v1845 = vunpack.c.l.b16 %v1795
    %v1846 = vunpack.c.h.b16 %v1795
    %v1847 = vunpack.c.l.b16 %v1796
    %v1848 = vunpack.c.h.b16 %v1796
    %v1849 = vunpack.c.l.b16 %v1797
    %v1850 = vunpack.c.h.b16 %v1797
    %v1851 = vunpack.c.l.b16 %v1798
    %v1852 = vunpack.c.h.b16 %v1798
    %v1853 = vunpack.c.l.b16 %v1799
    %v1854 = vunpack.c.h.b16 %v1799
    %v1855 = vunpack.c.l.b16 %v1800
    %v1856 = vunpack.c.h.b16 %v1800
    %v1857 = vunpack.c.l.b16 %v1801
    %v1858 = vunpack.c.h.b16 %v1801
    %v1859 = vunpack.c.l.b16 %v1802
    %v1860 = vunpack.c.h.b16 %v1802
    %v1861 = vunpack.c.l.b16 %v1803
    %v1862 = vunpack.c.h.b16 %v1803
    %v1863 = vunpack.c.l.b16 %v1804
    %v1864 = vunpack.c.h.b16 %v1804
    %v1865 = vunpack.c.l.b16 %v1805
    %v1866 = vunpack.c.h.b16 %v1805
    %v1867 = vpack.c.b16 %v1837, %v1835
    %v1868 = vpack.c.b16 %v1838, %v1836
    %v1869 = vpack.c.b16 %v1841, %v1839
    %v1870 = vpack.c.b16 %v1842, %v1840
    %v1871 = vpack.c.b16 %v1845, %v1843
    %v1872 = vpack.c.b16 %v1846, %v1844
    %v1873 = vpack.c.b16 %v1849, %v1847
    %v1874 = vpack.c.b16 %v1850, %v1848
    %v1875 = vpack.c.b16 %v1853, %v1851
    %v1876 = vpack.c.b16 %v1854, %v1852
    %v1877 = vpack.c.b16 %v1857, %v1855
    %v1878 = vpack.c.b16 %v1858, %v1856
    %v1879 = vpack.c.b16 %v1861, %v1859
    %v1880 = vpack.c.b16 %v1862, %v1860
    %v1881 = vpack.c.b16 %v1865, %v1863
    %v1882 = vpack.c.b16 %v1866, %v1864
    %1899 = vmatprep.subr.bf16.mxu0 %v1868
    %1900 = vmatpush1.bf16.msra.mxu0 %v1867
    %1901 = vmatprep.subr.bf16.mxu0 %v1870
    %1902 = vmatpush1.bf16.msra.mxu0 %v1869
    %1903 = vmatprep.subr.bf16.mxu0 %v1872
    %1904 = vmatpush1.bf16.msra.mxu0 %v1871
    %1905 = vmatprep.subr.bf16.mxu0 %v1874
    %1906 = vmatpush1.bf16.msra.mxu0 %v1873
    %1907 = vmatprep.subr.bf16.mxu0 %v1876
    %1908 = vmatpush1.bf16.msra.mxu0 %v1875
    %1909 = vmatprep.subr.bf16.mxu0 %v1878
    %1910 = vmatpush1.bf16.msra.mxu0 %v1877
    %1911 = vmatprep.subr.bf16.mxu0 %v1880
    %1912 = vmatpush1.bf16.msra.mxu0 %v1879
    %1913 = vmatprep.subr.bf16.mxu0 %v1882
    %1914 = vmatpush1.bf16.msra.mxu0 %v1881
    %1915 = vmatprep.subr.bf16.mxu0 0
    %1916 = vmatpush1.bf16.msra.mxu0 0
    %1917 = vmatprep.subr.bf16.mxu0 0
    %1918 = vmatpush1.bf16.msra.mxu0 0
    %1919 = vmatprep.subr.bf16.mxu0 0
    %1920 = vmatpush1.bf16.msra.mxu0 0
    %1921 = vmatprep.subr.bf16.mxu0 0
    %1922 = vmatpush1.bf16.msra.mxu0 0
    %1923 = vmatprep.subr.bf16.mxu0 0
    %1924 = vmatpush1.bf16.msra.mxu0 0
    %1925 = vmatprep.subr.bf16.mxu0 0
    %1926 = vmatpush1.bf16.msra.mxu0 0
    %1927 = vmatprep.subr.bf16.mxu0 0
    %1928 = vmatpush1.bf16.msra.mxu0 0
    %1929 = vmatprep.subr.bf16.mxu0 0
    %1930 = vmatpush1.bf16.msra.mxu0 0
    %1931 = vmatprep.mubr.bf16.mxu0 0
    %1932 = vmatmul.mubr.bf16.gmra.mrb[0].mxu0 %v1788
    %v1933 = vpop.f32.mrb[0].mxu0
    %v1934 = vadd.f32 %v1812, %v1933
    %v1935 = vpop.f32.mrb[0].mxu0
    %v1936 = vadd.f32 %v1816, %v1935
    %v1937 = vpop.f32.mrb[0].mxu0
    %v1938 = vadd.f32 %v1812, %v1937
    %v1939 = vpop.f32.mrb[0].mxu0
    %v1940 = vadd.f32 %v1816, %v1939
    %1941 = vmatprep.mubr.bf16.mxu0 0
    %1942 = vmatmul.mubr.bf16.gmra.mrb[0].mxu0 %v1789
    %v1943 = vpop.f32.mrb[0].mxu0
    %v1944 = vadd.f32 %v1812, %v1943
    %v1945 = vpop.f32.mrb[0].mxu0
    %v1946 = vadd.f32 %v1816, %v1945
    %v1947 = vpop.f32.mrb[0].mxu0
    %v1948 = vpop.f32.mrb[0].mxu0
    %1949 = vdwg.mxu0
    %v1950 = vld [vmem:[%s5 + $0x2e0] sm:$0xff]
    %v1951 = vld [vmem:[%s5 + $0x2e8] sm:$0xff]
    %v1952 = vld [vmem:[%s5 + $0x2f0] sm:$0xff]
    %v1953 = vld [vmem:[%s5 + $0x2f8] sm:$0xff]
    %v1954 = vld [vmem:[%s5 + $0x300] sm:$0xff]
    %v1955 = vld [vmem:[%s5 + $0x308] sm:$0xff]
    %v1956 = vld [vmem:[%s5 + $0x310] sm:$0xff]
    %v1957 = vld [vmem:[%s5 + $0x318] sm:$0xff]
    %v1958 = vld [vmem:[%s5 + $0x320] sm:$0xff]
    %v1959 = vld [vmem:[%s5 + $0x328] sm:$0xff]
    %v1960 = vld [vmem:[%s5 + $0x330] sm:$0xff]
    %v1961 = vld [vmem:[%s5 + $0x338] sm:$0xff]
    %v1962 = vld [vmem:[%s5 + $0x340] sm:$0xff]
    %v1963 = vld [vmem:[%s5 + $0x348] sm:$0xff]
    %v1964 = vld [vmem:[%s5 + $0x350] sm:$0xff]
    %v1965 = vld [vmem:[%s5 + $0x358] sm:$0xff]
    %v1966 = vld [vmem:[%s5 + $0x360] sm:$0xff]
    %v1967 = vld [vmem:[%s5 + $0x368] sm:$0xff]
    %v1968 = vld [vmem:[%s5 + $0x370] sm:$0xff]
    %v1969 = vld [vmem:[%s5 + $0x378] sm:$0xff]
    %v1970 = vld [vmem:[%s5 + $0x380] sm:$0xff]
    %v1971 = vld [vmem:[%s5 + $0x388] sm:$0xff]
    %v1972 = vld [vmem:[%s5 + $0x390] sm:$0xff]
    %v1973 = vld [vmem:[%s5 + $0x398] sm:$0xff]
    %v1974 = vld [vmem:[%s5 + $0x3a0] sm:$0xff]
    %v1975 = vld [vmem:[%s5 + $0x3a8] sm:$0xff]
    %v1976 = vld [vmem:[%s5 + $0x3b0] sm:$0xff]
    %v1977 = vld [vmem:[%s5 + $0x3b8] sm:$0xff]
    %v1978 = vld [vmem:[%s5 + $0x3c0] sm:$0xff]
    %v1979 = vld [vmem:[%s5 + $0x3c8] sm:$0xff]
    %v1980 = vld [vmem:[%s5 + $0x3d0] sm:$0xff]
    %v1981 = vld [vmem:[%s5 + $0x3d8] sm:$0xff]
    %v1982 = vld [vmem:[%s6 + $0x100] sm:$0xf]
    %v1983 = vld [vmem:[%s6 + $0x104] sm:$0xf]
    %v1984 = vld [vmem:[%s6 + $0x108] sm:$0xf]
    %v1985 = vld [vmem:[%s6 + $0x10c] sm:$0xf]
    %v1986 = vld [vmem:[%s6 + $0x110] sm:$0xf]
    %v1987 = vld [vmem:[%s6 + $0x114] sm:$0xf]
    %v1988 = vld [vmem:[%s6 + $0x118] sm:$0xf]
    %v1989 = vld [vmem:[%s6 + $0x11c] sm:$0xf]
    %v1990 = vld [vmem:[%s6 + $0x120] sm:$0xf]
    %v1991 = vld [vmem:[%s6 + $0x124] sm:$0xf]
    %v1992 = vld [vmem:[%s6 + $0x128] sm:$0xf]
    %v1993 = vld [vmem:[%s6 + $0x12c] sm:$0xf]
    %v1994 = vld [vmem:[%s6 + $0x130] sm:$0xf]
    %v1995 = vld [vmem:[%s6 + $0x134] sm:$0xf]
    %v1996 = vld [vmem:[%s6 + $0x138] sm:$0xf]
    %v1997 = vld [vmem:[%s6 + $0x13c] sm:$0xf]
    %v1998 = vld [vmem:[%s6 + $0x140] sm:$0xf]
    %v1999 = vld [vmem:[%s6 + $0x144] sm:$0xf]
    %v2000 = vld [vmem:[%s6 + $0x148] sm:$0xf]
    %v2001 = vld [vmem:[%s6 + $0x14c] sm:$0xf]
    %v2002 = vld [vmem:[%s6 + $0x150] sm:$0xf]
    %v2003 = vld [vmem:[%s6 + $0x154] sm:$0xf]
    %v2004 = vld [vmem:[%s6 + $0x158] sm:$0xf]
    %v2005 = vld [vmem:[%s6 + $0x15c] sm:$0xf]
    %v2006 = vld [vmem:[%s6 + $0x160] sm:$0xf]
    %v2007 = vld [vmem:[%s6 + $0x164] sm:$0xf]
    %v2008 = vld [vmem:[%s6 + $0x168] sm:$0xf]
    %v2009 = vld [vmem:[%s6 + $0x16c] sm:$0xf]
    %v2010 = vld [vmem:[%s6 + $0x170] sm:$0xf]
    %v2011 = vld [vmem:[%s6 + $0x174] sm:$0xf]
    %v2012 = vld [vmem:[%s6 + $0x178] sm:$0xf]
    %v2013 = vld [vmem:[%s6 + $0x17c] sm:$0xf]
    %v2014 = vld [vmem:[%s8 + $0x23] ss:$0 sm:$0xff]
    %v2015 = vadd.f32 %v1934, %v1936
    %2016 = vadd.xlane.f32.xlu0 %v2015
    %v2017 = vpop.xlane.xlu0 %2016
    %v2018 = vadd.f32 %v1938, %v1940
    %2019 = vadd.xlane.f32.xlu0 %v2018
    %v2020 = vpop.xlane.xlu0 %2019
    %v2021 = vadd.f32 %v1944, %v1946
    %2022 = vadd.xlane.f32.xlu0 %v2021
    %v2023 = vpop.xlane.xlu0 %2022
    %v2024 = vmul.f32 %v2017, %v212
    %v2025 = vmul.f32 %v2020, %v212
    %v2026 = vmul.f32 %v2023, %v212
    %v2027 = vmul.f32 %v1934, %v1934
    %v2028 = vmul.f32 %v1936, %v1936
    %v2029 = vmul.f32 %v1938, %v1938
    %v2030 = vmul.f32 %v1940, %v1940
    %v2031 = vmul.f32 %v1944, %v1944
    %v2032 = vmul.f32 %v1946, %v1946
    %v2033 = vadd.f32 %v2027, %v2028
    %2034 = vadd.xlane.f32.xlu0 %v2033
    %v2035 = vpop.xlane.xlu0 %2034
    %v2036 = vadd.f32 %v2029, %v2030
    %2037 = vadd.xlane.f32.xlu0 %v2036
    %v2038 = vpop.xlane.xlu0 %2037
    %v2039 = vadd.f32 %v2031, %v2032
    %2040 = vadd.xlane.f32.xlu0 %v2039
    %v2041 = vpop.xlane.xlu0 %2040
    %v2042 = vmul.f32 %v2035, %v212
    %v2043 = vmul.f32 %v2038, %v212
    %v2044 = vmul.f32 %v2041, %v212
    %v2045 = vmul.f32 %v2024, %v2024
    %v2046 = vmul.f32 %v2025, %v2025
    %v2047 = vmul.f32 %v2026, %v2026
    %v2048 = vsub.f32 %v2042, %v2045
    %v2049 = vsub.f32 %v2043, %v2046
    %v2050 = vsub.f32 %v2044, %v2047
    %v2051 = vsub.f32 %v1934, %v2024
    %v2052 = vsub.f32 %v1936, %v2024
    %v2053 = vsub.f32 %v1938, %v2025
    %v2054 = vsub.f32 %v1940, %v2025
    %v2055 = vsub.f32 %v1944, %v2026
    %v2056 = vsub.f32 %v1946, %v2026
    %v2057 = vmax.f32 %v2048, 0.0
    %v2058 = vmax.f32 %v2049, 0.0
    %v2059 = vmax.f32 %v2050, 0.0
    %v2060 = vadd.f32 %v2057, 1e-05
    %v2061 = vadd.f32 %v2058, 1e-05
    %v2062 = vadd.f32 %v2059, 1e-05
    %v2063 = vrsqrt.pop %v2060
    %v2064 = vrsqrt.pop %v2061
    %v2065 = vrsqrt.pop %v2062
    %v2066 = vmul.f32 %v2051, %v2063
    %v2067 = vmul.f32 %v2052, %v2063
    %v2068 = vmul.f32 %v2053, %v2064
    %v2069 = vmul.f32 %v2054, %v2064
    %v2070 = vmul.f32 %v2055, %v2065
    %v2071 = vmul.f32 %v2056, %v2065
    %s2072 = scalar_lea.vmem %s8, 22
    %v2073 = vld [vmem:[%s2072] ss:$8 sm:$0x3]
    %v2075 = vlaneseq
    %v2076 = vshrl.u32 %v2075, 7
    %v2077 = vsub.s32 0, %v2076
    %v2078 = vrot.slane %v2073, %v2077
    %v2079 = vlaneseq
    %v2080 = vshrl.u32 %v2079, 7
    %v2081 = vsub.s32 1, %v2080
    %v2082 = vrot.slane %v2073, %v2081
    %v2085 = vmul.f32 %v2066, %v2078
    %v2086 = vmul.f32 %v2067, %v2082
    %v2087 = vmul.f32 %v2068, %v2078
    %v2088 = vmul.f32 %v2069, %v2082
    %v2089 = vmul.f32 %v2070, %v2078
    %v2090 = vmul.f32 %v2071, %v2082
    %s2091 = scalar_lea.vmem %s8, 23
    %v2092 = vld [vmem:[%s2091] ss:$8 sm:$0x3]
    %v2094 = vlaneseq
    %v2095 = vshrl.u32 %v2094, 7
    %v2096 = vsub.s32 0, %v2095
    %v2097 = vrot.slane %v2092, %v2096
    %v2098 = vlaneseq
    %v2099 = vshrl.u32 %v2098, 7
    %v2100 = vsub.s32 1, %v2099
    %v2101 = vrot.slane %v2092, %v2100
    %v2104 = vadd.f32 %v2085, %v2097
    %v2105 = vadd.f32 %v2086, %v2101
    %v2106 = vadd.f32 %v2087, %v2097
    %v2107 = vadd.f32 %v2088, %v2101
    %v2108 = vadd.f32 %v2089, %v2097
    %v2109 = vadd.f32 %v2090, %v2101
    %v2110 = vmax.f32 %v2104, 0.0
    %v2111 = vmax.f32 %v2105, 0.0
    %v2112 = vmax.f32 %v2106, 0.0
    %v2113 = vmax.f32 %v2107, 0.0
    %v2114 = vmax.f32 %v2108, 0.0
    %v2115 = vmax.f32 %v2109, 0.0
    %v2116 = vpack.c.bf16 %v2112, %v2110
    %v2117 = vpack.c.bf16 %v2113, %v2111
    %v2118 = vpack.c.bf16 %v2114, %v2114
    %v2119 = vpack.c.bf16 %v2115, %v2115
    %s2120 = scalar_lea.vmem %s8, 32
    %v2121 = vld [vmem:[%s2120] ss:$8 sm:$0x3]
    %v2123 = vlaneseq
    %v2124 = vshrl.u32 %v2123, 7
    %v2125 = vsub.s32 0, %v2124
    %v2126 = vrot.slane %v2121, %v2125
    %v2127 = vlaneseq
    %v2128 = vshrl.u32 %v2127, 7
    %v2129 = vsub.s32 1, %v2128
    %v2130 = vrot.slane %v2121, %v2129
    %v2165 = vunpack.c.l.b16 %v1950
    %v2166 = vunpack.c.h.b16 %v1950
    %v2167 = vunpack.c.l.b16 %v1951
    %v2168 = vunpack.c.h.b16 %v1951
    %v2169 = vunpack.c.l.b16 %v1952
    %v2170 = vunpack.c.h.b16 %v1952
    %v2171 = vunpack.c.l.b16 %v1953
    %v2172 = vunpack.c.h.b16 %v1953
    %v2173 = vunpack.c.l.b16 %v1954
    %v2174 = vunpack.c.h.b16 %v1954
    %v2175 = vunpack.c.l.b16 %v1955
    %v2176 = vunpack.c.h.b16 %v1955
    %v2177 = vunpack.c.l.b16 %v1956
    %v2178 = vunpack.c.h.b16 %v1956
    %v2179 = vunpack.c.l.b16 %v1957
    %v2180 = vunpack.c.h.b16 %v1957
    %v2181 = vunpack.c.l.b16 %v1958
    %v2182 = vunpack.c.h.b16 %v1958
    %v2183 = vunpack.c.l.b16 %v1959
    %v2184 = vunpack.c.h.b16 %v1959
    %v2185 = vunpack.c.l.b16 %v1960
    %v2186 = vunpack.c.h.b16 %v1960
    %v2187 = vunpack.c.l.b16 %v1961
    %v2188 = vunpack.c.h.b16 %v1961
    %v2189 = vunpack.c.l.b16 %v1962
    %v2190 = vunpack.c.h.b16 %v1962
    %v2191 = vunpack.c.l.b16 %v1963
    %v2192 = vunpack.c.h.b16 %v1963
    %v2193 = vunpack.c.l.b16 %v1964
    %v2194 = vunpack.c.h.b16 %v1964
    %v2195 = vunpack.c.l.b16 %v1965
    %v2196 = vunpack.c.h.b16 %v1965
    %v2197 = vunpack.c.l.b16 %v1966
    %v2198 = vunpack.c.h.b16 %v1966
    %v2199 = vunpack.c.l.b16 %v1967
    %v2200 = vunpack.c.h.b16 %v1967
    %v2201 = vunpack.c.l.b16 %v1968
    %v2202 = vunpack.c.h.b16 %v1968
    %v2203 = vunpack.c.l.b16 %v1969
    %v2204 = vunpack.c.h.b16 %v1969
    %v2205 = vunpack.c.l.b16 %v1970
    %v2206 = vunpack.c.h.b16 %v1970
    %v2207 = vunpack.c.l.b16 %v1971
    %v2208 = vunpack.c.h.b16 %v1971
    %v2209 = vunpack.c.l.b16 %v1972
    %v2210 = vunpack.c.h.b16 %v1972
    %v2211 = vunpack.c.l.b16 %v1973
    %v2212 = vunpack.c.h.b16 %v1973
    %v2213 = vunpack.c.l.b16 %v1974
    %v2214 = vunpack.c.h.b16 %v1974
    %v2215 = vunpack.c.l.b16 %v1975
    %v2216 = vunpack.c.h.b16 %v1975
    %v2217 = vunpack.c.l.b16 %v1976
    %v2218 = vunpack.c.h.b16 %v1976
    %v2219 = vunpack.c.l.b16 %v1977
    %v2220 = vunpack.c.h.b16 %v1977
    %v2221 = vunpack.c.l.b16 %v1978
    %v2222 = vunpack.c.h.b16 %v1978
    %v2223 = vunpack.c.l.b16 %v1979
    %v2224 = vunpack.c.h.b16 %v1979
    %v2225 = vunpack.c.l.b16 %v1980
    %v2226 = vunpack.c.h.b16 %v1980
    %v2227 = vunpack.c.l.b16 %v1981
    %v2228 = vunpack.c.h.b16 %v1981
    %v2229 = vpack.c.b16 %v2167, %v2165
    %v2230 = vpack.c.b16 %v2168, %v2166
    %v2231 = vpack.c.b16 %v2171, %v2169
    %v2232 = vpack.c.b16 %v2172, %v2170
    %v2233 = vpack.c.b16 %v2175, %v2173
    %v2234 = vpack.c.b16 %v2176, %v2174
    %v2235 = vpack.c.b16 %v2179, %v2177
    %v2236 = vpack.c.b16 %v2180, %v2178
    %v2237 = vpack.c.b16 %v2183, %v2181
    %v2238 = vpack.c.b16 %v2184, %v2182
    %v2239 = vpack.c.b16 %v2187, %v2185
    %v2240 = vpack.c.b16 %v2188, %v2186
    %v2241 = vpack.c.b16 %v2191, %v2189
    %v2242 = vpack.c.b16 %v2192, %v2190
    %v2243 = vpack.c.b16 %v2195, %v2193
    %v2244 = vpack.c.b16 %v2196, %v2194
    %v2245 = vpack.c.b16 %v2199, %v2197
    %v2246 = vpack.c.b16 %v2200, %v2198
    %v2247 = vpack.c.b16 %v2203, %v2201
    %v2248 = vpack.c.b16 %v2204, %v2202
    %v2249 = vpack.c.b16 %v2207, %v2205
    %v2250 = vpack.c.b16 %v2208, %v2206
    %v2251 = vpack.c.b16 %v2211, %v2209
    %v2252 = vpack.c.b16 %v2212, %v2210
    %v2253 = vpack.c.b16 %v2215, %v2213
    %v2254 = vpack.c.b16 %v2216, %v2214
    %v2255 = vpack.c.b16 %v2219, %v2217
    %v2256 = vpack.c.b16 %v2220, %v2218
    %v2257 = vpack.c.b16 %v2223, %v2221
    %v2258 = vpack.c.b16 %v2224, %v2222
    %v2259 = vpack.c.b16 %v2227, %v2225
    %v2260 = vpack.c.b16 %v2228, %v2226
    %2293 = vmatprep.subr.bf16.mxu0 %v2230
    %2294 = vmatpush1.bf16.msra.mxu0 %v2229
    %2295 = vmatprep.subr.bf16.mxu0 %v2232
    %2296 = vmatpush1.bf16.msra.mxu0 %v2231
    %2297 = vmatprep.subr.bf16.mxu0 %v2234
    %2298 = vmatpush1.bf16.msra.mxu0 %v2233
    %2299 = vmatprep.subr.bf16.mxu0 %v2236
    %2300 = vmatpush1.bf16.msra.mxu0 %v2235
    %2301 = vmatprep.subr.bf16.mxu0 %v2238
    %2302 = vmatpush1.bf16.msra.mxu0 %v2237
    %2303 = vmatprep.subr.bf16.mxu0 %v2240
    %2304 = vmatpush1.bf16.msra.mxu0 %v2239
    %2305 = vmatprep.subr.bf16.mxu0 %v2242
    %2306 = vmatpush1.bf16.msra.mxu0 %v2241
    %2307 = vmatprep.subr.bf16.mxu0 %v2244
    %2308 = vmatpush1.bf16.msra.mxu0 %v2243
    %2309 = vmatprep.subr.bf16.mxu0 %v2246
    %2310 = vmatpush1.bf16.msra.mxu0 %v2245
    %2311 = vmatprep.subr.bf16.mxu0 %v2248
    %2312 = vmatpush1.bf16.msra.mxu0 %v2247
    %2313 = vmatprep.subr.bf16.mxu0 %v2250
    %2314 = vmatpush1.bf16.msra.mxu0 %v2249
    %2315 = vmatprep.subr.bf16.mxu0 %v2252
    %2316 = vmatpush1.bf16.msra.mxu0 %v2251
    %2317 = vmatprep.subr.bf16.mxu0 %v2254
    %2318 = vmatpush1.bf16.msra.mxu0 %v2253
    %2319 = vmatprep.subr.bf16.mxu0 %v2256
    %2320 = vmatpush1.bf16.msra.mxu0 %v2255
    %2321 = vmatprep.subr.bf16.mxu0 %v2258
    %2322 = vmatpush1.bf16.msra.mxu0 %v2257
    %2323 = vmatprep.subr.bf16.mxu0 %v2260
    %2324 = vmatpush1.bf16.msra.mxu0 %v2259
    %2325 = vmatprep.mubr.bf16.mxu0 %v2117
    %2326 = vmatmul.mubr.bf16.gmra.mrb[0].mxu0 %v2116
    %v2327 = vpop.f32.mrb[0].mxu0
    %v2328 = vadd.f32 %v2126, %v2327
    %v2329 = vpop.f32.mrb[0].mxu0
    %v2330 = vadd.f32 %v2130, %v2329
    %v2331 = vpop.f32.mrb[0].mxu0
    %v2332 = vadd.f32 %v2126, %v2331
    %v2333 = vpop.f32.mrb[0].mxu0
    %v2334 = vadd.f32 %v2130, %v2333
    %2335 = vmatprep.mubr.bf16.mxu0 %v2119
    %2336 = vmatmul.mubr.bf16.gmra.mrb[0].mxu0 %v2118
    %v2337 = vpop.f32.mrb[0].mxu0
    %v2338 = vadd.f32 %v2126, %v2337
    %v2339 = vpop.f32.mrb[0].mxu0
    %v2340 = vadd.f32 %v2130, %v2339
    %v2341 = vpop.f32.mrb[0].mxu0
    %v2342 = vpop.f32.mrb[0].mxu0
    %2343 = vdwg.mxu0
    %v2344 = vadd.f32 %v2328, %v2330
    %2345 = vadd.xlane.f32.xlu0 %v2344
    %v2346 = vpop.xlane.xlu0 %2345
    %v2347 = vadd.f32 %v2332, %v2334
    %2348 = vadd.xlane.f32.xlu0 %v2347
    %v2349 = vpop.xlane.xlu0 %2348
    %v2350 = vadd.f32 %v2338, %v2340
    %2351 = vadd.xlane.f32.xlu0 %v2350
    %v2352 = vpop.xlane.xlu0 %2351
    %v2353 = vmul.f32 %v2346, %v212
    %v2354 = vmul.f32 %v2349, %v212
    %v2355 = vmul.f32 %v2352, %v212
    %v2356 = vmul.f32 %v2328, %v2328
    %v2357 = vmul.f32 %v2330, %v2330
    %v2358 = vmul.f32 %v2332, %v2332
    %v2359 = vmul.f32 %v2334, %v2334
    %v2360 = vmul.f32 %v2338, %v2338
    %v2361 = vmul.f32 %v2340, %v2340
    %v2362 = vadd.f32 %v2356, %v2357
    %2363 = vadd.xlane.f32.xlu0 %v2362
    %v2364 = vpop.xlane.xlu0 %2363
    %v2365 = vadd.f32 %v2358, %v2359
    %2366 = vadd.xlane.f32.xlu0 %v2365
    %v2367 = vpop.xlane.xlu0 %2366
    %v2368 = vadd.f32 %v2360, %v2361
    %2369 = vadd.xlane.f32.xlu0 %v2368
    %v2370 = vpop.xlane.xlu0 %2369
    %v2371 = vmul.f32 %v2364, %v212
    %v2372 = vmul.f32 %v2367, %v212
    %v2373 = vmul.f32 %v2370, %v212
    %v2374 = vmul.f32 %v2353, %v2353
    %v2375 = vmul.f32 %v2354, %v2354
    %v2376 = vmul.f32 %v2355, %v2355
    %v2377 = vsub.f32 %v2371, %v2374
    %v2378 = vsub.f32 %v2372, %v2375
    %v2379 = vsub.f32 %v2373, %v2376
    %v2380 = vsub.f32 %v2328, %v2353
    %v2381 = vsub.f32 %v2330, %v2353
    %v2382 = vsub.f32 %v2332, %v2354
    %v2383 = vsub.f32 %v2334, %v2354
    %v2384 = vsub.f32 %v2338, %v2355
    %v2385 = vsub.f32 %v2340, %v2355
    %v2386 = vmax.f32 %v2377, 0.0
    %v2387 = vmax.f32 %v2378, 0.0
    %v2388 = vmax.f32 %v2379, 0.0
    %v2389 = vadd.f32 %v2386, 1e-05
    %v2390 = vadd.f32 %v2387, 1e-05
    %v2391 = vadd.f32 %v2388, 1e-05
    %v2392 = vrsqrt.pop %v2389
    %v2393 = vrsqrt.pop %v2390
    %v2394 = vrsqrt.pop %v2391
    %v2395 = vmul.f32 %v2380, %v2392
    %v2396 = vmul.f32 %v2381, %v2392
    %v2397 = vmul.f32 %v2382, %v2393
    %v2398 = vmul.f32 %v2383, %v2393
    %v2399 = vmul.f32 %v2384, %v2394
    %v2400 = vmul.f32 %v2385, %v2394
    %s2401 = scalar_lea.vmem %s8, 33
    %v2402 = vld [vmem:[%s2401] ss:$8 sm:$0x3]
    %v2404 = vlaneseq
    %v2405 = vshrl.u32 %v2404, 7
    %v2406 = vsub.s32 0, %v2405
    %v2407 = vrot.slane %v2402, %v2406
    %v2408 = vlaneseq
    %v2409 = vshrl.u32 %v2408, 7
    %v2410 = vsub.s32 1, %v2409
    %v2411 = vrot.slane %v2402, %v2410
    %v2414 = vmul.f32 %v2395, %v2407
    %v2415 = vmul.f32 %v2396, %v2411
    %v2416 = vmul.f32 %v2397, %v2407
    %v2417 = vmul.f32 %v2398, %v2411
    %v2418 = vmul.f32 %v2399, %v2407
    %v2419 = vmul.f32 %v2400, %v2411
    %s2420 = scalar_lea.vmem %s8, 34
    %v2421 = vld [vmem:[%s2420] ss:$8 sm:$0x3]
    %v2423 = vlaneseq
    %v2424 = vshrl.u32 %v2423, 7
    %v2425 = vsub.s32 0, %v2424
    %v2426 = vrot.slane %v2421, %v2425
    %v2427 = vlaneseq
    %v2428 = vshrl.u32 %v2427, 7
    %v2429 = vsub.s32 1, %v2428
    %v2430 = vrot.slane %v2421, %v2429
    %v2433 = vadd.f32 %v2414, %v2426
    %v2434 = vadd.f32 %v2415, %v2430
    %v2435 = vadd.f32 %v2416, %v2426
    %v2436 = vadd.f32 %v2417, %v2430
    %v2437 = vadd.f32 %v2418, %v2426
    %v2438 = vadd.f32 %v2419, %v2430
    %v2439 = vmax.f32 %v2433, 0.0
    %v2440 = vmax.f32 %v2434, 0.0
    %v2441 = vmax.f32 %v2435, 0.0
    %v2442 = vmax.f32 %v2436, 0.0
    %v2443 = vmax.f32 %v2437, 0.0
    %v2444 = vmax.f32 %v2438, 0.0
    %v2445 = vpack.c.bf16 %v2441, %v2439
    %v2446 = vpack.c.bf16 %v2442, %v2440
    %v2447 = vpack.c.bf16 %v2443, %v2443
    %v2448 = vpack.c.bf16 %v2444, %v2444
    %v2481 = vunpack.c.l.b16 %v1982
    %v2482 = vunpack.c.l.b16 %v1983
    %v2483 = vunpack.c.l.b16 %v1984
    %v2484 = vunpack.c.l.b16 %v1985
    %v2485 = vunpack.c.l.b16 %v1986
    %v2486 = vunpack.c.l.b16 %v1987
    %v2487 = vunpack.c.l.b16 %v1988
    %v2488 = vunpack.c.l.b16 %v1989
    %v2489 = vunpack.c.l.b16 %v1990
    %v2490 = vunpack.c.l.b16 %v1991
    %v2491 = vunpack.c.l.b16 %v1992
    %v2492 = vunpack.c.l.b16 %v1993
    %v2493 = vunpack.c.l.b16 %v1994
    %v2494 = vunpack.c.l.b16 %v1995
    %v2495 = vunpack.c.l.b16 %v1996
    %v2496 = vunpack.c.l.b16 %v1997
    %v2497 = vunpack.c.l.b16 %v1998
    %v2498 = vunpack.c.l.b16 %v1999
    %v2499 = vunpack.c.l.b16 %v2000
    %v2500 = vunpack.c.l.b16 %v2001
    %v2501 = vunpack.c.l.b16 %v2002
    %v2502 = vunpack.c.l.b16 %v2003
    %v2503 = vunpack.c.l.b16 %v2004
    %v2504 = vunpack.c.l.b16 %v2005
    %v2505 = vunpack.c.l.b16 %v2006
    %v2506 = vunpack.c.l.b16 %v2007
    %v2507 = vunpack.c.l.b16 %v2008
    %v2508 = vunpack.c.l.b16 %v2009
    %v2509 = vunpack.c.l.b16 %v2010
    %v2510 = vunpack.c.l.b16 %v2011
    %v2511 = vunpack.c.l.b16 %v2012
    %v2512 = vunpack.c.l.b16 %v2013
    %v2513 = vpack.c.b16 %v2482, %v2481
    %v2514 = vpack.c.b16 %v2484, %v2483
    %v2515 = vpack.c.b16 %v2486, %v2485
    %v2516 = vpack.c.b16 %v2488, %v2487
    %v2517 = vpack.c.b16 %v2490, %v2489
    %v2518 = vpack.c.b16 %v2492, %v2491
    %v2519 = vpack.c.b16 %v2494, %v2493
    %v2520 = vpack.c.b16 %v2496, %v2495
    %v2521 = vpack.c.b16 %v2498, %v2497
    %v2522 = vpack.c.b16 %v2500, %v2499
    %v2523 = vpack.c.b16 %v2502, %v2501
    %v2524 = vpack.c.b16 %v2504, %v2503
    %v2525 = vpack.c.b16 %v2506, %v2505
    %v2526 = vpack.c.b16 %v2508, %v2507
    %v2527 = vpack.c.b16 %v2510, %v2509
    %v2528 = vpack.c.b16 %v2512, %v2511
    %2545 = vmatprep.subr.bf16.mxu0 0
    %2546 = vmatpush1.bf16.msra.mxu0 %v2513
    %2547 = vmatprep.subr.bf16.mxu0 0
    %2548 = vmatpush1.bf16.msra.mxu0 %v2514
    %2549 = vmatprep.subr.bf16.mxu0 0
    %2550 = vmatpush1.bf16.msra.mxu0 %v2515
    %2551 = vmatprep.subr.bf16.mxu0 0
    %2552 = vmatpush1.bf16.msra.mxu0 %v2516
    %2553 = vmatprep.subr.bf16.mxu0 0
    %2554 = vmatpush1.bf16.msra.mxu0 %v2517
    %2555 = vmatprep.subr.bf16.mxu0 0
    %2556 = vmatpush1.bf16.msra.mxu0 %v2518
    %2557 = vmatprep.subr.bf16.mxu0 0
    %2558 = vmatpush1.bf16.msra.mxu0 %v2519
    %2559 = vmatprep.subr.bf16.mxu0 0
    %2560 = vmatpush1.bf16.msra.mxu0 %v2520
    %2561 = vmatprep.subr.bf16.mxu0 0
    %2562 = vmatpush1.bf16.msra.mxu0 %v2521
    %2563 = vmatprep.subr.bf16.mxu0 0
    %2564 = vmatpush1.bf16.msra.mxu0 %v2522
    %2565 = vmatprep.subr.bf16.mxu0 0
    %2566 = vmatpush1.bf16.msra.mxu0 %v2523
    %2567 = vmatprep.subr.bf16.mxu0 0
    %2568 = vmatpush1.bf16.msra.mxu0 %v2524
    %2569 = vmatprep.subr.bf16.mxu0 0
    %2570 = vmatpush1.bf16.msra.mxu0 %v2525
    %2571 = vmatprep.subr.bf16.mxu0 0
    %2572 = vmatpush1.bf16.msra.mxu0 %v2526
    %2573 = vmatprep.subr.bf16.mxu0 0
    %2574 = vmatpush1.bf16.msra.mxu0 %v2527
    %2575 = vmatprep.subr.bf16.mxu0 0
    %2576 = vmatpush1.bf16.msra.mxu0 %v2528
    %2577 = vmatprep.mubr.bf16.mxu0 %v2446
    %2578 = vmatmul.mubr.bf16.gmra.mrb[0].mxu0 %v2445
    %v2579 = vpop.f32.mrb[0].mxu0
    %v2580 = vadd.f32 %v2014, %v2579
    %v2581 = vpop.f32.mrb[0].mxu0
    %v2582 = vpop.f32.mrb[0].mxu0
    %v2583 = vadd.f32 %v2014, %v2582
    %v2584 = vpop.f32.mrb[0].mxu0
    %2585 = vmatprep.mubr.bf16.mxu0 %v2448
    %2586 = vmatmul.mubr.bf16.gmra.mrb[0].mxu0 %v2447
    %v2587 = vpop.f32.mrb[0].mxu0
    %v2588 = vadd.f32 %v2014, %v2587
    %v2589 = vpop.f32.mrb[0].mxu0
    %v2590 = vpop.f32.mrb[0].mxu0
    %v2591 = vpop.f32.mrb[0].mxu0
    %2592 = vdwg.mxu0
  $region42: #{gnn_forward.1} parent=0 // loop_footer
    %s787 = sadd.s32 1, %s783
  $region43: #{gnn_forward.1} parent=0 // loop_footer_branch
    %782 = sbr.rel target = $region39
  $region44: #{gnn_forward.1} parent=0 // loop_exit
    _
  %v2593 = vpack.c.bf16 %v789, %v788
  %v2594 = vpack.c.bf16 %v790, %v790
  %v2595 = vld [vmem:[%s5 + $0x3e0] sm:$0xff]
  %v2596 = vld [vmem:[%s5 + $0x3e8] sm:$0xff]
  %v2597 = vld [vmem:[%s5 + $0x3f0] sm:$0xff]
  %v2598 = vld [vmem:[%s5 + $0x3f8] sm:$0xff]
  %v2599 = vld [vmem:[%s5 + $0x400] sm:$0xff]
  %v2600 = vld [vmem:[%s5 + $0x408] sm:$0xff]
  %v2601 = vld [vmem:[%s5 + $0x410] sm:$0xff]
  %v2602 = vld [vmem:[%s5 + $0x418] sm:$0xff]
  %s2603 = scalar_lea.vmem %s8, 36
  %v2604 = vld [vmem:[%s2603] ss:$8 sm:$0x3]
  %v2606 = vlaneseq
  %v2607 = vshrl.u32 %v2606, 7
  %v2608 = vsub.s32 0, %v2607
  %v2609 = vrot.slane %v2604, %v2608
  %v2610 = vlaneseq
  %v2611 = vshrl.u32 %v2610, 7
  %v2612 = vsub.s32 1, %v2611
  %v2613 = vrot.slane %v2604, %v2612
  %v2624 = vunpack.c.l.b16 %v2595
  %v2625 = vunpack.c.h.b16 %v2595
  %v2626 = vunpack.c.l.b16 %v2596
  %v2627 = vunpack.c.h.b16 %v2596
  %v2628 = vunpack.c.l.b16 %v2597
  %v2629 = vunpack.c.h.b16 %v2597
  %v2630 = vunpack.c.l.b16 %v2598
  %v2631 = vunpack.c.h.b16 %v2598
  %v2632 = vunpack.c.l.b16 %v2599
  %v2633 = vunpack.c.h.b16 %v2599
  %v2634 = vunpack.c.l.b16 %v2600
  %v2635 = vunpack.c.h.b16 %v2600
  %v2636 = vunpack.c.l.b16 %v2601
  %v2637 = vunpack.c.h.b16 %v2601
  %v2638 = vunpack.c.l.b16 %v2602
  %v2639 = vunpack.c.h.b16 %v2602
  %v2640 = vpack.c.b16 %v2626, %v2624
  %v2641 = vpack.c.b16 %v2627, %v2625
  %v2642 = vpack.c.b16 %v2630, %v2628
  %v2643 = vpack.c.b16 %v2631, %v2629
  %v2644 = vpack.c.b16 %v2634, %v2632
  %v2645 = vpack.c.b16 %v2635, %v2633
  %v2646 = vpack.c.b16 %v2638, %v2636
  %v2647 = vpack.c.b16 %v2639, %v2637
  %vm2656 = vcmask 523264
  %v2658 = vsel %vm2656, %v2593, 0
  %v2661 = vsel %vm2656, %v2594, 0
  %2663 = vmatprep.subr.bf16.mxu0 %v2641
  %2664 = vmatpush1.bf16.msra.mxu0 %v2640
  %2665 = vmatprep.subr.bf16.mxu0 %v2643
  %2666 = vmatpush1.bf16.msra.mxu0 %v2642
  %2667 = vmatprep.subr.bf16.mxu0 %v2645
  %2668 = vmatpush1.bf16.msra.mxu0 %v2644
  %2669 = vmatprep.subr.bf16.mxu0 %v2647
  %2670 = vmatpush1.bf16.msra.mxu0 %v2646
  %2671 = vmatprep.subr.bf16.mxu0 0
  %2672 = vmatpush1.bf16.msra.mxu0 0
  %2673 = vmatprep.subr.bf16.mxu0 0
  %2674 = vmatpush1.bf16.msra.mxu0 0
  %2675 = vmatprep.subr.bf16.mxu0 0
  %2676 = vmatpush1.bf16.msra.mxu0 0
  %2677 = vmatprep.subr.bf16.mxu0 0
  %2678 = vmatpush1.bf16.msra.mxu0 0
  %2679 = vmatprep.subr.bf16.mxu0 0
  %2680 = vmatpush1.bf16.msra.mxu0 0
  %2681 = vmatprep.subr.bf16.mxu0 0
  %2682 = vmatpush1.bf16.msra.mxu0 0
  %2683 = vmatprep.subr.bf16.mxu0 0
  %2684 = vmatpush1.bf16.msra.mxu0 0
  %2685 = vmatprep.subr.bf16.mxu0 0
  %2686 = vmatpush1.bf16.msra.mxu0 0
  %2687 = vmatprep.subr.bf16.mxu0 0
  %2688 = vmatpush1.bf16.msra.mxu0 0
  %2689 = vmatprep.subr.bf16.mxu0 0
  %2690 = vmatpush1.bf16.msra.mxu0 0
  %2691 = vmatprep.subr.bf16.mxu0 0
  %2692 = vmatpush1.bf16.msra.mxu0 0
  %2693 = vmatprep.subr.bf16.mxu0 0
  %2694 = vmatpush1.bf16.msra.mxu0 0
  %2695 = vmatprep.mubr.bf16.mxu0 0
  %2696 = vmatmul.mubr.bf16.gmra.mrb[0].mxu0 %v2658
  %v2697 = vpop.f32.mrb[0].mxu0
  %v2698 = vadd.f32 %v2609, %v2697
  %v2699 = vpop.f32.mrb[0].mxu0
  %v2700 = vadd.f32 %v2613, %v2699
  %v2701 = vpop.f32.mrb[0].mxu0
  %v2702 = vadd.f32 %v2609, %v2701
  %v2703 = vpop.f32.mrb[0].mxu0
  %v2704 = vadd.f32 %v2613, %v2703
  %2705 = vmatprep.mubr.bf16.mxu0 0
  %2706 = vmatmul.mubr.bf16.gmra.mrb[0].mxu0 %v2661
  %v2707 = vpop.f32.mrb[0].mxu0
  %v2708 = vadd.f32 %v2609, %v2707
  %v2709 = vpop.f32.mrb[0].mxu0
  %v2710 = vadd.f32 %v2613, %v2709
  %v2711 = vpop.f32.mrb[0].mxu0
  %v2712 = vpop.f32.mrb[0].mxu0
  %2713 = vdwg.mxu0
  %v2714 = vld [vmem:[%s5 + $0x420] sm:$0xff]
  %v2715 = vld [vmem:[%s5 + $0x428] sm:$0xff]
  %v2716 = vld [vmem:[%s5 + $0x430] sm:$0xff]
  %v2717 = vld [vmem:[%s5 + $0x438] sm:$0xff]
  %v2718 = vld [vmem:[%s5 + $0x440] sm:$0xff]
  %v2719 = vld [vmem:[%s5 + $0x448] sm:$0xff]
  %v2720 = vld [vmem:[%s5 + $0x450] sm:$0xff]
  %v2721 = vld [vmem:[%s5 + $0x458] sm:$0xff]
  %v2722 = vld [vmem:[%s5 + $0x460] sm:$0xff]
  %v2723 = vld [vmem:[%s5 + $0x468] sm:$0xff]
  %v2724 = vld [vmem:[%s5 + $0x470] sm:$0xff]
  %v2725 = vld [vmem:[%s5 + $0x478] sm:$0xff]
  %v2726 = vld [vmem:[%s5 + $0x480] sm:$0xff]
  %v2727 = vld [vmem:[%s5 + $0x488] sm:$0xff]
  %v2728 = vld [vmem:[%s5 + $0x490] sm:$0xff]
  %v2729 = vld [vmem:[%s5 + $0x498] sm:$0xff]
  %v2730 = vld [vmem:[%s5 + $0x4a0] sm:$0xff]
  %v2731 = vld [vmem:[%s5 + $0x4a8] sm:$0xff]
  %v2732 = vld [vmem:[%s5 + $0x4b0] sm:$0xff]
  %v2733 = vld [vmem:[%s5 + $0x4b8] sm:$0xff]
  %v2734 = vld [vmem:[%s5 + $0x4c0] sm:$0xff]
  %v2735 = vld [vmem:[%s5 + $0x4c8] sm:$0xff]
  %v2736 = vld [vmem:[%s5 + $0x4d0] sm:$0xff]
  %v2737 = vld [vmem:[%s5 + $0x4d8] sm:$0xff]
  %v2738 = vld [vmem:[%s5 + $0x4e0] sm:$0xff]
  %v2739 = vld [vmem:[%s5 + $0x4e8] sm:$0xff]
  %v2740 = vld [vmem:[%s5 + $0x4f0] sm:$0xff]
  %v2741 = vld [vmem:[%s5 + $0x4f8] sm:$0xff]
  %v2742 = vld [vmem:[%s5 + $0x500] sm:$0xff]
  %v2743 = vld [vmem:[%s5 + $0x508] sm:$0xff]
  %v2744 = vld [vmem:[%s5 + $0x510] sm:$0xff]
  %v2745 = vld [vmem:[%s5 + $0x518] sm:$0xff]
  %v2746 = vld [vmem:[%s7] sm:$0xf]
  %v2747 = vld [vmem:[%s7 + $0x4] sm:$0xf]
  %v2748 = vld [vmem:[%s7 + $0x8] sm:$0xf]
  %v2749 = vld [vmem:[%s7 + $0xc] sm:$0xf]
  %v2750 = vld [vmem:[%s7 + $0x10] sm:$0xf]
  %v2751 = vld [vmem:[%s7 + $0x14] sm:$0xf]
  %v2752 = vld [vmem:[%s7 + $0x18] sm:$0xf]
  %v2753 = vld [vmem:[%s7 + $0x1c] sm:$0xf]
  %v2754 = vld [vmem:[%s7 + $0x20] sm:$0xf]
  %v2755 = vld [vmem:[%s7 + $0x24] sm:$0xf]
  %v2756 = vld [vmem:[%s7 + $0x28] sm:$0xf]
  %v2757 = vld [vmem:[%s7 + $0x2c] sm:$0xf]
  %v2758 = vld [vmem:[%s7 + $0x30] sm:$0xf]
  %v2759 = vld [vmem:[%s7 + $0x34] sm:$0xf]
  %v2760 = vld [vmem:[%s7 + $0x38] sm:$0xf]
  %v2761 = vld [vmem:[%s7 + $0x3c] sm:$0xf]
  %v2762 = vld [vmem:[%s7 + $0x40] sm:$0xf]
  %v2763 = vld [vmem:[%s7 + $0x44] sm:$0xf]
  %v2764 = vld [vmem:[%s7 + $0x48] sm:$0xf]
  %v2765 = vld [vmem:[%s7 + $0x4c] sm:$0xf]
  %v2766 = vld [vmem:[%s7 + $0x50] sm:$0xf]
  %v2767 = vld [vmem:[%s7 + $0x54] sm:$0xf]
  %v2768 = vld [vmem:[%s7 + $0x58] sm:$0xf]
  %v2769 = vld [vmem:[%s7 + $0x5c] sm:$0xf]
  %v2770 = vld [vmem:[%s7 + $0x60] sm:$0xf]
  %v2771 = vld [vmem:[%s7 + $0x64] sm:$0xf]
  %v2772 = vld [vmem:[%s7 + $0x68] sm:$0xf]
  %v2773 = vld [vmem:[%s7 + $0x6c] sm:$0xf]
  %v2774 = vld [vmem:[%s7 + $0x70] sm:$0xf]
  %v2775 = vld [vmem:[%s7 + $0x74] sm:$0xf]
  %v2776 = vld [vmem:[%s7 + $0x78] sm:$0xf]
  %v2777 = vld [vmem:[%s7 + $0x7c] sm:$0xf]
  %v2778 = vld [vmem:[%s8 + $0x32] ss:$0 sm:$0xff]
  %v2779 = vadd.f32 %v2698, %v2700
  %2780 = vadd.xlane.f32.xlu0 %v2779
  %v2781 = vpop.xlane.xlu0 %2780
  %v2782 = vadd.f32 %v2702, %v2704
  %2783 = vadd.xlane.f32.xlu0 %v2782
  %v2784 = vpop.xlane.xlu0 %2783
  %v2785 = vadd.f32 %v2708, %v2710
  %2786 = vadd.xlane.f32.xlu0 %v2785
  %v2787 = vpop.xlane.xlu0 %2786
  %v2788 = vmul.f32 %v2781, %v212
  %v2789 = vmul.f32 %v2784, %v212
  %v2790 = vmul.f32 %v2787, %v212
  %v2791 = vmul.f32 %v2698, %v2698
  %v2792 = vmul.f32 %v2700, %v2700
  %v2793 = vmul.f32 %v2702, %v2702
  %v2794 = vmul.f32 %v2704, %v2704
  %v2795 = vmul.f32 %v2708, %v2708
  %v2796 = vmul.f32 %v2710, %v2710
  %v2797 = vadd.f32 %v2791, %v2792
  %2798 = vadd.xlane.f32.xlu0 %v2797
  %v2799 = vpop.xlane.xlu0 %2798
  %v2800 = vadd.f32 %v2793, %v2794
  %2801 = vadd.xlane.f32.xlu0 %v2800
  %v2802 = vpop.xlane.xlu0 %2801
  %v2803 = vadd.f32 %v2795, %v2796
  %2804 = vadd.xlane.f32.xlu0 %v2803
  %v2805 = vpop.xlane.xlu0 %2804
  %v2806 = vmul.f32 %v2799, %v212
  %v2807 = vmul.f32 %v2802, %v212
  %v2808 = vmul.f32 %v2805, %v212
  %v2809 = vmul.f32 %v2788, %v2788
  %v2810 = vmul.f32 %v2789, %v2789
  %v2811 = vmul.f32 %v2790, %v2790
  %v2812 = vsub.f32 %v2806, %v2809
  %v2813 = vsub.f32 %v2807, %v2810
  %v2814 = vsub.f32 %v2808, %v2811
  %v2815 = vsub.f32 %v2698, %v2788
  %v2816 = vsub.f32 %v2700, %v2788
  %v2817 = vsub.f32 %v2702, %v2789
  %v2818 = vsub.f32 %v2704, %v2789
  %v2819 = vsub.f32 %v2708, %v2790
  %v2820 = vsub.f32 %v2710, %v2790
  %v2821 = vmax.f32 %v2812, 0.0
  %v2822 = vmax.f32 %v2813, 0.0
  %v2823 = vmax.f32 %v2814, 0.0
  %v2824 = vadd.f32 %v2821, 1e-05
  %v2825 = vadd.f32 %v2822, 1e-05
  %v2826 = vadd.f32 %v2823, 1e-05
  %v2827 = vrsqrt.pop %v2824
  %v2828 = vrsqrt.pop %v2825
  %v2829 = vrsqrt.pop %v2826
  %v2830 = vmul.f32 %v2815, %v2827
  %v2831 = vmul.f32 %v2816, %v2827
  %v2832 = vmul.f32 %v2817, %v2828
  %v2833 = vmul.f32 %v2818, %v2828
  %v2834 = vmul.f32 %v2819, %v2829
  %v2835 = vmul.f32 %v2820, %v2829
  %s2836 = scalar_lea.vmem %s8, 37
  %v2837 = vld [vmem:[%s2836] ss:$8 sm:$0x3]
  %v2839 = vlaneseq
  %v2840 = vshrl.u32 %v2839, 7
  %v2841 = vsub.s32 0, %v2840
  %v2842 = vrot.slane %v2837, %v2841
  %v2843 = vlaneseq
  %v2844 = vshrl.u32 %v2843, 7
  %v2845 = vsub.s32 1, %v2844
  %v2846 = vrot.slane %v2837, %v2845
  %v2849 = vmul.f32 %v2830, %v2842
  %v2850 = vmul.f32 %v2831, %v2846
  %v2851 = vmul.f32 %v2832, %v2842
  %v2852 = vmul.f32 %v2833, %v2846
  %v2853 = vmul.f32 %v2834, %v2842
  %v2854 = vmul.f32 %v2835, %v2846
  %s2855 = scalar_lea.vmem %s8, 38
  %v2856 = vld [vmem:[%s2855] ss:$8 sm:$0x3]
  %v2858 = vlaneseq
  %v2859 = vshrl.u32 %v2858, 7
  %v2860 = vsub.s32 0, %v2859
  %v2861 = vrot.slane %v2856, %v2860
  %v2862 = vlaneseq
  %v2863 = vshrl.u32 %v2862, 7
  %v2864 = vsub.s32 1, %v2863
  %v2865 = vrot.slane %v2856, %v2864
  %v2868 = vadd.f32 %v2849, %v2861
  %v2869 = vadd.f32 %v2850, %v2865
  %v2870 = vadd.f32 %v2851, %v2861
  %v2871 = vadd.f32 %v2852, %v2865
  %v2872 = vadd.f32 %v2853, %v2861
  %v2873 = vadd.f32 %v2854, %v2865
  %v2874 = vmax.f32 %v2868, 0.0
  %v2875 = vmax.f32 %v2869, 0.0
  %v2876 = vmax.f32 %v2870, 0.0
  %v2877 = vmax.f32 %v2871, 0.0
  %v2878 = vmax.f32 %v2872, 0.0
  %v2879 = vmax.f32 %v2873, 0.0
  %v2880 = vpack.c.bf16 %v2876, %v2874
  %v2881 = vpack.c.bf16 %v2877, %v2875
  %v2882 = vpack.c.bf16 %v2878, %v2878
  %v2883 = vpack.c.bf16 %v2879, %v2879
  %s2884 = scalar_lea.vmem %s8, 39
  %v2885 = vld [vmem:[%s2884] ss:$8 sm:$0x3]
  %v2887 = vlaneseq
  %v2888 = vshrl.u32 %v2887, 7
  %v2889 = vsub.s32 0, %v2888
  %v2890 = vrot.slane %v2885, %v2889
  %v2891 = vlaneseq
  %v2892 = vshrl.u32 %v2891, 7
  %v2893 = vsub.s32 1, %v2892
  %v2894 = vrot.slane %v2885, %v2893
  %v2929 = vunpack.c.l.b16 %v2714
  %v2930 = vunpack.c.h.b16 %v2714
  %v2931 = vunpack.c.l.b16 %v2715
  %v2932 = vunpack.c.h.b16 %v2715
  %v2933 = vunpack.c.l.b16 %v2716
  %v2934 = vunpack.c.h.b16 %v2716
  %v2935 = vunpack.c.l.b16 %v2717
  %v2936 = vunpack.c.h.b16 %v2717
  %v2937 = vunpack.c.l.b16 %v2718
  %v2938 = vunpack.c.h.b16 %v2718
  %v2939 = vunpack.c.l.b16 %v2719
  %v2940 = vunpack.c.h.b16 %v2719
  %v2941 = vunpack.c.l.b16 %v2720
  %v2942 = vunpack.c.h.b16 %v2720
  %v2943 = vunpack.c.l.b16 %v2721
  %v2944 = vunpack.c.h.b16 %v2721
  %v2945 = vunpack.c.l.b16 %v2722
  %v2946 = vunpack.c.h.b16 %v2722
  %v2947 = vunpack.c.l.b16 %v2723
  %v2948 = vunpack.c.h.b16 %v2723
  %v2949 = vunpack.c.l.b16 %v2724
  %v2950 = vunpack.c.h.b16 %v2724
  %v2951 = vunpack.c.l.b16 %v2725
  %v2952 = vunpack.c.h.b16 %v2725
  %v2953 = vunpack.c.l.b16 %v2726
  %v2954 = vunpack.c.h.b16 %v2726
  %v2955 = vunpack.c.l.b16 %v2727
  %v2956 = vunpack.c.h.b16 %v2727
  %v2957 = vunpack.c.l.b16 %v2728
  %v2958 = vunpack.c.h.b16 %v2728
  %v2959 = vunpack.c.l.b16 %v2729
  %v2960 = vunpack.c.h.b16 %v2729
  %v2961 = vunpack.c.l.b16 %v2730
  %v2962 = vunpack.c.h.b16 %v2730
  %v2963 = vunpack.c.l.b16 %v2731
  %v2964 = vunpack.c.h.b16 %v2731
  %v2965 = vunpack.c.l.b16 %v2732
  %v2966 = vunpack.c.h.b16 %v2732
  %v2967 = vunpack.c.l.b16 %v2733
  %v2968 = vunpack.c.h.b16 %v2733
  %v2969 = vunpack.c.l.b16 %v2734
  %v2970 = vunpack.c.h.b16 %v2734
  %v2971 = vunpack.c.l.b16 %v2735
  %v2972 = vunpack.c.h.b16 %v2735
  %v2973 = vunpack.c.l.b16 %v2736
  %v2974 = vunpack.c.h.b16 %v2736
  %v2975 = vunpack.c.l.b16 %v2737
  %v2976 = vunpack.c.h.b16 %v2737
  %v2977 = vunpack.c.l.b16 %v2738
  %v2978 = vunpack.c.h.b16 %v2738
  %v2979 = vunpack.c.l.b16 %v2739
  %v2980 = vunpack.c.h.b16 %v2739
  %v2981 = vunpack.c.l.b16 %v2740
  %v2982 = vunpack.c.h.b16 %v2740
  %v2983 = vunpack.c.l.b16 %v2741
  %v2984 = vunpack.c.h.b16 %v2741
  %v2985 = vunpack.c.l.b16 %v2742
  %v2986 = vunpack.c.h.b16 %v2742
  %v2987 = vunpack.c.l.b16 %v2743
  %v2988 = vunpack.c.h.b16 %v2743
  %v2989 = vunpack.c.l.b16 %v2744
  %v2990 = vunpack.c.h.b16 %v2744
  %v2991 = vunpack.c.l.b16 %v2745
  %v2992 = vunpack.c.h.b16 %v2745
  %v2993 = vpack.c.b16 %v2931, %v2929
  %v2994 = vpack.c.b16 %v2932, %v2930
  %v2995 = vpack.c.b16 %v2935, %v2933
  %v2996 = vpack.c.b16 %v2936, %v2934
  %v2997 = vpack.c.b16 %v2939, %v2937
  %v2998 = vpack.c.b16 %v2940, %v2938
  %v2999 = vpack.c.b16 %v2943, %v2941
  %v3000 = vpack.c.b16 %v2944, %v2942
  %v3001 = vpack.c.b16 %v2947, %v2945
  %v3002 = vpack.c.b16 %v2948, %v2946
  %v3003 = vpack.c.b16 %v2951, %v2949
  %v3004 = vpack.c.b16 %v2952, %v2950
  %v3005 = vpack.c.b16 %v2955, %v2953
  %v3006 = vpack.c.b16 %v2956, %v2954
  %v3007 = vpack.c.b16 %v2959, %v2957
  %v3008 = vpack.c.b16 %v2960, %v2958
  %v3009 = vpack.c.b16 %v2963, %v2961
  %v3010 = vpack.c.b16 %v2964, %v2962
  %v3011 = vpack.c.b16 %v2967, %v2965
  %v3012 = vpack.c.b16 %v2968, %v2966
  %v3013 = vpack.c.b16 %v2971, %v2969
  %v3014 = vpack.c.b16 %v2972, %v2970
  %v3015 = vpack.c.b16 %v2975, %v2973
  %v3016 = vpack.c.b16 %v2976, %v2974
  %v3017 = vpack.c.b16 %v2979, %v2977
  %v3018 = vpack.c.b16 %v2980, %v2978
  %v3019 = vpack.c.b16 %v2983, %v2981
  %v3020 = vpack.c.b16 %v2984, %v2982
  %v3021 = vpack.c.b16 %v2987, %v2985
  %v3022 = vpack.c.b16 %v2988, %v2986
  %v3023 = vpack.c.b16 %v2991, %v2989
  %v3024 = vpack.c.b16 %v2992, %v2990
  %3057 = vmatprep.subr.bf16.mxu0 %v2994
  %3058 = vmatpush1.bf16.msra.mxu0 %v2993
  %3059 = vmatprep.subr.bf16.mxu0 %v2996
  %3060 = vmatpush1.bf16.msra.mxu0 %v2995
  %3061 = vmatprep.subr.bf16.mxu0 %v2998
  %3062 = vmatpush1.bf16.msra.mxu0 %v2997
  %3063 = vmatprep.subr.bf16.mxu0 %v3000
  %3064 = vmatpush1.bf16.msra.mxu0 %v2999
  %3065 = vmatprep.subr.bf16.mxu0 %v3002
  %3066 = vmatpush1.bf16.msra.mxu0 %v3001
  %3067 = vmatprep.subr.bf16.mxu0 %v3004
  %3068 = vmatpush1.bf16.msra.mxu0 %v3003
  %3069 = vmatprep.subr.bf16.mxu0 %v3006
  %3070 = vmatpush1.bf16.msra.mxu0 %v3005
  %3071 = vmatprep.subr.bf16.mxu0 %v3008
  %3072 = vmatpush1.bf16.msra.mxu0 %v3007
  %3073 = vmatprep.subr.bf16.mxu0 %v3010
  %3074 = vmatpush1.bf16.msra.mxu0 %v3009
  %3075 = vmatprep.subr.bf16.mxu0 %v3012
  %3076 = vmatpush1.bf16.msra.mxu0 %v3011
  %3077 = vmatprep.subr.bf16.mxu0 %v3014
  %3078 = vmatpush1.bf16.msra.mxu0 %v3013
  %3079 = vmatprep.subr.bf16.mxu0 %v3016
  %3080 = vmatpush1.bf16.msra.mxu0 %v3015
  %3081 = vmatprep.subr.bf16.mxu0 %v3018
  %3082 = vmatpush1.bf16.msra.mxu0 %v3017
  %3083 = vmatprep.subr.bf16.mxu0 %v3020
  %3084 = vmatpush1.bf16.msra.mxu0 %v3019
  %3085 = vmatprep.subr.bf16.mxu0 %v3022
  %3086 = vmatpush1.bf16.msra.mxu0 %v3021
  %3087 = vmatprep.subr.bf16.mxu0 %v3024
  %3088 = vmatpush1.bf16.msra.mxu0 %v3023
  %3089 = vmatprep.mubr.bf16.mxu0 %v2881
  %3090 = vmatmul.mubr.bf16.gmra.mrb[0].mxu0 %v2880
  %v3091 = vpop.f32.mrb[0].mxu0
  %v3092 = vadd.f32 %v2890, %v3091
  %v3093 = vpop.f32.mrb[0].mxu0
  %v3094 = vadd.f32 %v2894, %v3093
  %v3095 = vpop.f32.mrb[0].mxu0
  %v3096 = vadd.f32 %v2890, %v3095
  %v3097 = vpop.f32.mrb[0].mxu0
  %v3098 = vadd.f32 %v2894, %v3097
  %3099 = vmatprep.mubr.bf16.mxu0 %v2883
  %3100 = vmatmul.mubr.bf16.gmra.mrb[0].mxu0 %v2882
  %v3101 = vpop.f32.mrb[0].mxu0
  %v3102 = vadd.f32 %v2890, %v3101
  %v3103 = vpop.f32.mrb[0].mxu0
  %v3104 = vadd.f32 %v2894, %v3103
  %v3105 = vpop.f32.mrb[0].mxu0
  %v3106 = vpop.f32.mrb[0].mxu0
  %3107 = vdwg.mxu0
  %v3108 = vadd.f32 %v3092, %v3094
  %3109 = vadd.xlane.f32.xlu0 %v3108
  %v3110 = vpop.xlane.xlu0 %3109
  %v3111 = vadd.f32 %v3096, %v3098
  %3112 = vadd.xlane.f32.xlu0 %v3111
  %v3113 = vpop.xlane.xlu0 %3112
  %v3114 = vadd.f32 %v3102, %v3104
  %3115 = vadd.xlane.f32.xlu0 %v3114
  %v3116 = vpop.xlane.xlu0 %3115
  %v3117 = vmul.f32 %v3110, %v212
  %v3118 = vmul.f32 %v3113, %v212
  %v3119 = vmul.f32 %v3116, %v212
  %v3120 = vmul.f32 %v3092, %v3092
  %v3121 = vmul.f32 %v3094, %v3094
  %v3122 = vmul.f32 %v3096, %v3096
  %v3123 = vmul.f32 %v3098, %v3098
  %v3124 = vmul.f32 %v3102, %v3102
  %v3125 = vmul.f32 %v3104, %v3104
  %v3126 = vadd.f32 %v3120, %v3121
  %3127 = vadd.xlane.f32.xlu0 %v3126
  %v3128 = vpop.xlane.xlu0 %3127
  %v3129 = vadd.f32 %v3122, %v3123
  %3130 = vadd.xlane.f32.xlu0 %v3129
  %v3131 = vpop.xlane.xlu0 %3130
  %v3132 = vadd.f32 %v3124, %v3125
  %3133 = vadd.xlane.f32.xlu0 %v3132
  %v3134 = vpop.xlane.xlu0 %3133
  %v3135 = vmul.f32 %v3128, %v212
  %v3136 = vmul.f32 %v3131, %v212
  %v3137 = vmul.f32 %v3134, %v212
  %v3138 = vmul.f32 %v3117, %v3117
  %v3139 = vmul.f32 %v3118, %v3118
  %v3140 = vmul.f32 %v3119, %v3119
  %v3141 = vsub.f32 %v3135, %v3138
  %v3142 = vsub.f32 %v3136, %v3139
  %v3143 = vsub.f32 %v3137, %v3140
  %v3144 = vsub.f32 %v3092, %v3117
  %v3145 = vsub.f32 %v3094, %v3117
  %v3146 = vsub.f32 %v3096, %v3118
  %v3147 = vsub.f32 %v3098, %v3118
  %v3148 = vsub.f32 %v3102, %v3119
  %v3149 = vsub.f32 %v3104, %v3119
  %v3150 = vmax.f32 %v3141, 0.0
  %v3151 = vmax.f32 %v3142, 0.0
  %v3152 = vmax.f32 %v3143, 0.0
  %v3153 = vadd.f32 %v3150, 1e-05
  %v3154 = vadd.f32 %v3151, 1e-05
  %v3155 = vadd.f32 %v3152, 1e-05
  %v3156 = vrsqrt.pop %v3153
  %v3157 = vrsqrt.pop %v3154
  %v3158 = vrsqrt.pop %v3155
  %v3159 = vmul.f32 %v3144, %v3156
  %v3160 = vmul.f32 %v3145, %v3156
  %v3161 = vmul.f32 %v3146, %v3157
  %v3162 = vmul.f32 %v3147, %v3157
  %v3163 = vmul.f32 %v3148, %v3158
  %v3164 = vmul.f32 %v3149, %v3158
  %s3165 = scalar_lea.vmem %s8, 48
  %v3166 = vld [vmem:[%s3165] ss:$8 sm:$0x3]
  %v3168 = vlaneseq
  %v3169 = vshrl.u32 %v3168, 7
  %v3170 = vsub.s32 0, %v3169
  %v3171 = vrot.slane %v3166, %v3170
  %v3172 = vlaneseq
  %v3173 = vshrl.u32 %v3172, 7
  %v3174 = vsub.s32 1, %v3173
  %v3175 = vrot.slane %v3166, %v3174
  %v3178 = vmul.f32 %v3159, %v3171
  %v3179 = vmul.f32 %v3160, %v3175
  %v3180 = vmul.f32 %v3161, %v3171
  %v3181 = vmul.f32 %v3162, %v3175
  %v3182 = vmul.f32 %v3163, %v3171
  %v3183 = vmul.f32 %v3164, %v3175
  %s3184 = scalar_lea.vmem %s8, 49
  %v3185 = vld [vmem:[%s3184] ss:$8 sm:$0x3]
  %v3187 = vlaneseq
  %v3188 = vshrl.u32 %v3187, 7
  %v3189 = vsub.s32 0, %v3188
  %v3190 = vrot.slane %v3185, %v3189
  %v3191 = vlaneseq
  %v3192 = vshrl.u32 %v3191, 7
  %v3193 = vsub.s32 1, %v3192
  %v3194 = vrot.slane %v3185, %v3193
  %v3197 = vadd.f32 %v3178, %v3190
  %v3198 = vadd.f32 %v3179, %v3194
  %v3199 = vadd.f32 %v3180, %v3190
  %v3200 = vadd.f32 %v3181, %v3194
  %v3201 = vadd.f32 %v3182, %v3190
  %v3202 = vadd.f32 %v3183, %v3194
  %v3203 = vmax.f32 %v3197, 0.0
  %v3204 = vmax.f32 %v3198, 0.0
  %v3205 = vmax.f32 %v3199, 0.0
  %v3206 = vmax.f32 %v3200, 0.0
  %v3207 = vmax.f32 %v3201, 0.0
  %v3208 = vmax.f32 %v3202, 0.0
  %v3209 = vpack.c.bf16 %v3205, %v3203
  %v3210 = vpack.c.bf16 %v3206, %v3204
  %v3211 = vpack.c.bf16 %v3207, %v3207
  %v3212 = vpack.c.bf16 %v3208, %v3208
  %v3245 = vunpack.c.l.b16 %v2746
  %v3246 = vunpack.c.l.b16 %v2747
  %v3247 = vunpack.c.l.b16 %v2748
  %v3248 = vunpack.c.l.b16 %v2749
  %v3249 = vunpack.c.l.b16 %v2750
  %v3250 = vunpack.c.l.b16 %v2751
  %v3251 = vunpack.c.l.b16 %v2752
  %v3252 = vunpack.c.l.b16 %v2753
  %v3253 = vunpack.c.l.b16 %v2754
  %v3254 = vunpack.c.l.b16 %v2755
  %v3255 = vunpack.c.l.b16 %v2756
  %v3256 = vunpack.c.l.b16 %v2757
  %v3257 = vunpack.c.l.b16 %v2758
  %v3258 = vunpack.c.l.b16 %v2759
  %v3259 = vunpack.c.l.b16 %v2760
  %v3260 = vunpack.c.l.b16 %v2761
  %v3261 = vunpack.c.l.b16 %v2762
  %v3262 = vunpack.c.l.b16 %v2763
  %v3263 = vunpack.c.l.b16 %v2764
  %v3264 = vunpack.c.l.b16 %v2765
  %v3265 = vunpack.c.l.b16 %v2766
  %v3266 = vunpack.c.l.b16 %v2767
  %v3267 = vunpack.c.l.b16 %v2768
  %v3268 = vunpack.c.l.b16 %v2769
  %v3269 = vunpack.c.l.b16 %v2770
  %v3270 = vunpack.c.l.b16 %v2771
  %v3271 = vunpack.c.l.b16 %v2772
  %v3272 = vunpack.c.l.b16 %v2773
  %v3273 = vunpack.c.l.b16 %v2774
  %v3274 = vunpack.c.l.b16 %v2775
  %v3275 = vunpack.c.l.b16 %v2776
  %v3276 = vunpack.c.l.b16 %v2777
  %v3277 = vpack.c.b16 %v3246, %v3245
  %v3278 = vpack.c.b16 %v3248, %v3247
  %v3279 = vpack.c.b16 %v3250, %v3249
  %v3280 = vpack.c.b16 %v3252, %v3251
  %v3281 = vpack.c.b16 %v3254, %v3253
  %v3282 = vpack.c.b16 %v3256, %v3255
  %v3283 = vpack.c.b16 %v3258, %v3257
  %v3284 = vpack.c.b16 %v3260, %v3259
  %v3285 = vpack.c.b16 %v3262, %v3261
  %v3286 = vpack.c.b16 %v3264, %v3263
  %v3287 = vpack.c.b16 %v3266, %v3265
  %v3288 = vpack.c.b16 %v3268, %v3267
  %v3289 = vpack.c.b16 %v3270, %v3269
  %v3290 = vpack.c.b16 %v3272, %v3271
  %v3291 = vpack.c.b16 %v3274, %v3273
  %v3292 = vpack.c.b16 %v3276, %v3275
  %3309 = vmatprep.subr.bf16.mxu0 0
  %3310 = vmatpush1.bf16.msra.mxu0 %v3277
  %3311 = vmatprep.subr.bf16.mxu0 0
  %3312 = vmatpush1.bf16.msra.mxu0 %v3278
  %3313 = vmatprep.subr.bf16.mxu0 0
  %3314 = vmatpush1.bf16.msra.mxu0 %v3279
  %3315 = vmatprep.subr.bf16.mxu0 0
  %3316 = vmatpush1.bf16.msra.mxu0 %v3280
  %3317 = vmatprep.subr.bf16.mxu0 0
  %3318 = vmatpush1.bf16.msra.mxu0 %v3281
  %3319 = vmatprep.subr.bf16.mxu0 0
  %3320 = vmatpush1.bf16.msra.mxu0 %v3282
  %3321 = vmatprep.subr.bf16.mxu0 0
  %3322 = vmatpush1.bf16.msra.mxu0 %v3283
  %3323 = vmatprep.subr.bf16.mxu0 0
  %3324 = vmatpush1.bf16.msra.mxu0 %v3284
  %3325 = vmatprep.subr.bf16.mxu0 0
  %3326 = vmatpush1.bf16.msra.mxu0 %v3285
  %3327 = vmatprep.subr.bf16.mxu0 0
  %3328 = vmatpush1.bf16.msra.mxu0 %v3286
  %3329 = vmatprep.subr.bf16.mxu0 0
  %3330 = vmatpush1.bf16.msra.mxu0 %v3287
  %3331 = vmatprep.subr.bf16.mxu0 0
  %3332 = vmatpush1.bf16.msra.mxu0 %v3288
  %3333 = vmatprep.subr.bf16.mxu0 0
  %3334 = vmatpush1.bf16.msra.mxu0 %v3289
  %3335 = vmatprep.subr.bf16.mxu0 0
  %3336 = vmatpush1.bf16.msra.mxu0 %v3290
  %3337 = vmatprep.subr.bf16.mxu0 0
  %3338 = vmatpush1.bf16.msra.mxu0 %v3291
  %3339 = vmatprep.subr.bf16.mxu0 0
  %3340 = vmatpush1.bf16.msra.mxu0 %v3292
  %3341 = vmatprep.mubr.bf16.mxu0 %v3210
  %3342 = vmatmul.mubr.bf16.gmra.mrb[0].mxu0 %v3209
  %v3343 = vpop.f32.mrb[0].mxu0
  %v3344 = vadd.f32 %v2778, %v3343
  %v3345 = vpop.f32.mrb[0].mxu0
  %v3346 = vpop.f32.mrb[0].mxu0
  %v3347 = vadd.f32 %v2778, %v3346
  %v3348 = vpop.f32.mrb[0].mxu0
  %3349 = vmatprep.mubr.bf16.mxu0 %v3212
  %3350 = vmatmul.mubr.bf16.gmra.mrb[0].mxu0 %v3211
  %v3351 = vpop.f32.mrb[0].mxu0
  %v3352 = vadd.f32 %v2778, %v3351
  %v3353 = vpop.f32.mrb[0].mxu0
  %v3354 = vpop.f32.mrb[0].mxu0
  %v3355 = vpop.f32.mrb[0].mxu0
  %3356 = vdwg.mxu0
  %v3357 = vtanh.pop %v3344
  %v3358 = vtanh.pop %v3347
  %v3359 = vtanh.pop %v3352
  %3360 = vst [vmem:[%s9] sm:$0xff] %v3357
  %3361 = vst [vmem:[%s9 + $0x8] sm:$0xff] %v3358
  %3362 = vst [vmem:[%s9 + $0x10] sm:$0xff] %v3359
  // Predicated region
  $region45: #{gnn_forward.1} parent=0 // pred_check
    _
  $region46: #{gnn_forward.1} parent=0 // pred_check_branch
    %3364 = sbr.rel (0) target = $region48
  $region47: #{gnn_forward.1} parent=0 // pred_region
    _
  $region48: #{gnn_forward.1} parent=0 // pred_fallthru
    _
  // Predicated region
  $region49: #{gnn_forward.1} parent=0 // pred_check
    _
  $region50: #{gnn_forward.1} parent=0 // pred_check_branch
    %3366 = sbr.rel (0) target = $region52
  $region51: #{gnn_forward.1} parent=0 // pred_region
    _
  $region52: #{gnn_forward.1} parent=0 // pred_fallthru
    _

</llo_original>
